<compile_context>
chip_gen: v7x
topology: tpu7x:2x2x1
jax: 0.10.0
libtpu: 0.0.40
codegen_flags: <defaults>
</compile_context>

<pallas_src>
import math
import functools

import jax
import jax.numpy as jnp
from jax.experimental import pallas as pl
from jax.experimental.pallas import tpu as pltpu


# ----------------------------------------------------------------------------
# shared in-kernel helpers
# ----------------------------------------------------------------------------
def _layer_norm(x, a, b, eps=1e-6):
    # Matches annotated-transformer LayerNorm: unbiased std, eps added to std.
    mean = jnp.mean(x, axis=-1, keepdims=True)
    var = jnp.sum((x - mean) ** 2, axis=-1, keepdims=True) / (x.shape[-1] - 1)
    std = jnp.sqrt(var)
    return a * (x - mean) / (std + eps) + b


def _padded_bytes(shape, itemsize=4):
    """Bytes of a f32 block after (8, 128) tile padding of the last two dims."""
    assert len(shape) >= 2
    *lead, r, c = shape
    r = -(-r // 8) * 8
    c = -(-c // 128) * 128
    n = r * c
    for d in lead:
        n *= d
    return n * itemsize


# ----------------------------------------------------------------------------
# per-layer kernel: one grid step == one encoder layer on one batch block.
# PE add at l==0, final LN + mean-pool + classifier at l==L-1.
# ----------------------------------------------------------------------------
def transformer_layer_kernel(x_ref, pe_ref,
                             ln1a_ref, ln1b_ref, wqkv_ref, bqkv_ref,
                             wo_ref, bo_ref, ln2a_ref, ln2b_ref,
                             w1_ref, b1_ref, w2_ref, b2_ref,
                             lnfa_ref, lnfb_ref, fcw_ref, fcb_ref,
                             logits_ref, feat_ref,
                             x_sc,
                             *, num_heads):
    l = pl.program_id(1)
    n_layers = pl.num_programs(1)
    B, S, D = x_sc.shape
    dk = D // num_heads
    inv_sqrt_dk = 1.0 / math.sqrt(dk)

    # --- init: positional-encoding add (B,S,D) + (S,D) broadcast -------------
    @pl.when(l == 0)
    def _init():
        x_sc[...] = x_ref[...] + pe_ref[...]

    x = x_sc[...]

    # --- sublayer 1: x + SelfAttn(LayerNorm(x)) -------------------------------
    h = _layer_norm(x, ln1a_ref[0], ln1b_ref[0])
    qkv = jnp.dot(h.reshape(B * S, D), wqkv_ref[0],
                  preferred_element_type=jnp.float32) + bqkv_ref[0]
    qkv = qkv.reshape(B, S, 3 * D)                 # fused Q|K|V along last dim

    head_outs = []
    for hd in range(num_heads):                    # static unroll; batched over B
        lo = hd * dk
        q = qkv[:, :, lo:lo + dk]                  # (B, S, dk)
        k = qkv[:, :, D + lo:D + lo + dk]
        v = qkv[:, :, 2 * D + lo:2 * D + lo + dk]
        s = jnp.einsum('bqd,bkd->bqk', q, k,
                       preferred_element_type=jnp.float32) * inv_sqrt_dk
        s = s - jnp.max(s, axis=-1, keepdims=True)
        p = jnp.exp(s)
        p = p * pl.reciprocal(jnp.sum(p, axis=-1, keepdims=True), approx=True)
        head_outs.append(jnp.einsum('bqk,bkd->bqd', p, v,
                                    preferred_element_type=jnp.float32))
    # merge heads first, then a single full-K projection through Wo
    o = jnp.concatenate(head_outs, axis=-1)        # (B, S, D)
    attn = jnp.dot(o.reshape(B * S, D), wo_ref[0],
                   preferred_element_type=jnp.float32) + bo_ref[0]
    x = x + attn.reshape(B, S, D)

    # --- sublayer 2: x + FFN(LayerNorm(x)) ------------------------------------
    h2 = _layer_norm(x, ln2a_ref[0], ln2b_ref[0])
    ff = jnp.dot(h2.reshape(B * S, D), w1_ref[0],
                 preferred_element_type=jnp.float32) + b1_ref[0]
    ff = jnp.maximum(ff, 0.0)
    ff = jnp.dot(ff, w2_ref[0],
                 preferred_element_type=jnp.float32) + b2_ref[0]
    x = x + ff.reshape(B, S, D)

    x_sc[...] = x                                  # carry to next layer step

    # --- finalize: final LayerNorm + mean pooling over seq + classifier -------
    @pl.when(l == n_layers - 1)
    def _finalize():
        hf = _layer_norm(x, lnfa_ref[...], lnfb_ref[...])
        feat = jnp.mean(hf, axis=1)                # (B, D), pool over dim=1
        feat_ref[...] = feat
        logits_ref[...] = jnp.dot(feat, fcw_ref[...],
                                  preferred_element_type=jnp.float32) + fcb_ref[...]


_PACK_ORDER = ['ln1a', 'ln1b', 'wqkv', 'bqkv', 'wo', 'bo',
               'ln2a', 'ln2b', 'w1', 'b1', 'w2', 'b2']


def pack_layer_params(params):
    """Stack per-layer params along a leading layer axis; fuse Wq/Wk/Wv."""
    layers = params['layers']
    stack = lambda name: jnp.stack([lp[name] for lp in layers])
    return {
        'ln1a': stack('ln1_a'), 'ln1b': stack('ln1_b'),
        'wqkv': jnp.stack([jnp.concatenate([lp['wq'], lp['wk'], lp['wv']], axis=1)
                           for lp in layers]),
        'bqkv': jnp.stack([jnp.concatenate([lp['bq'], lp['bk'], lp['bv']], axis=1)
                           for lp in layers]),
        'wo': stack('wo'), 'bo': stack('bo'),
        'ln2a': stack('ln2_a'), 'ln2b': stack('ln2_b'),
        'w1': stack('w1'), 'b1': stack('b1'),
        'w2': stack('w2'), 'b2': stack('b2'),
    }


# ----------------------------------------------------------------------------
# full forward (one Pallas kernel for the hot path, JAX glue for the gather)
# ----------------------------------------------------------------------------
def transformer_pe_real_forward(tokens, params, packed, *, num_heads):
    d_model = params['token_emb'].shape[1]
    # token embedding (Embeddings: lut(x) * sqrt(d_model)); gather = JAX glue
    x_tok = (params['token_emb'][tokens.T] * math.sqrt(d_model)).astype(jnp.float32)
    # learned positional encodings, scaled once outside the kernel (small_pe=False)
    pe = (params['pe_emb'] * math.sqrt(d_model)).astype(jnp.float32)      # (S, D)

    B, S, D = x_tok.shape
    C = params['fc_w'].shape[1]
    num_layers = packed['wqkv'].shape[0]

    # batch block: full B here (toy shapes); for large B on v7x use a multiple
    # of 8 so the leading 'parallel' axis shards rows across the 2 TensorCores.
    bb = B
    grid = (B // bb, num_layers)

    kernel = functools.partial(transformer_layer_kernel, num_heads=num_heads)

    layer_args, layer_specs = [], []
    for name in _PACK_ORDER:
        a = packed[name]                              # (L, r, c)
        layer_args.append(a)
        layer_specs.append(pl.BlockSpec((1,) + a.shape[1:],
                                        lambda b, l: (l, 0, 0)))

    static_args = [params['lnf_a'], params['lnf_b'], params['fc_w'], params['fc_b']]
    static_specs = [pl.BlockSpec(a.shape, lambda b, l: (0, 0)) for a in static_args]

    in_specs = ([pl.BlockSpec((bb, S, D), lambda b, l: (b, 0, 0)),
                 pl.BlockSpec((S, D), lambda b, l: (0, 0))]
                + layer_specs + static_specs)
    out_specs = (pl.BlockSpec((bb, C), lambda b, l: (b, 0)),
                 pl.BlockSpec((bb, D), lambda b, l: (b, 0)))

    # explicit VMEM budget: 2x (double-buffered) per-layer weight blocks +
    # resident activation/scratch + small static weights + slack.
    per_layer_b = sum(_padded_bytes((1,) + packed[n].shape[1:]) for n in _PACK_ORDER)
    static_b = sum(_padded_bytes(a.shape) for a in static_args)
    act_b = _padded_bytes((bb, S, D)) * 2 + _padded_bytes((S, D))   # input block + scratch
    out_b = _padded_bytes((bb, C)) + _padded_bytes((bb, D))
    vmem_limit = int(min(100 * 1024 * 1024,
                         max(16 * 1024 * 1024,
                             2 * (per_layer_b + out_b) + act_b + static_b
                             + 4 * 1024 * 1024)))

    logits, feat = pl.pallas_call(
        kernel,
        out_shape=(jax.ShapeDtypeStruct((B, C), jnp.float32),
                   jax.ShapeDtypeStruct((B, D), jnp.float32)),
        grid_spec=pltpu.PrefetchScalarGridSpec(
            num_scalar_prefetch=0,
            grid=grid,
            in_specs=in_specs,
            out_specs=out_specs,
            scratch_shapes=[pltpu.VMEM((bb, S, D), jnp.float32)]),
        compiler_params=pltpu.CompilerParams(
            dimension_semantics=("parallel", "arbitrary"),
            vmem_limit_bytes=vmem_limit),
    )(x_tok, pe, *layer_args, *static_args)
    # forward returns (final_out, final_feature_map, x, pe)
    return logits, feat, x_tok, pe


# ----------------------------------------------------------------------------
# parameters (deterministic synthetic init)
# ----------------------------------------------------------------------------
def init_params(key, vocab, d_model, d_ff, n_layers, n_classes, max_len):
    ks = jax.random.split(key, 3 + n_layers)

    def nrm(k, shape, scale=0.02):
        return (scale * jax.random.normal(k, shape)).astype(jnp.float32)

    params = {
        'token_emb': nrm(ks[0], (vocab, d_model), 1.0),        # nn.Embedding ~ N(0,1)
        'pe_emb':    nrm(ks[1], (max_len, d_model), 0.02),
        'lnf_a': jnp.ones((1, d_model), jnp.float32),
        'lnf_b': jnp.zeros((1, d_model), jnp.float32),
        'fc_w':  nrm(ks[2], (d_model, n_classes)),
        'fc_b':  jnp.zeros((1, n_classes), jnp.float32),
        'layers': [],
    }
    for i in range(n_layers):
        lk = jax.random.split(ks[3 + i], 6)
        params['layers'].append({
            'ln1_a': jnp.ones((1, d_model), jnp.float32),
            'ln1_b': jnp.zeros((1, d_model), jnp.float32),
            'wq': nrm(lk[0], (d_model, d_model)), 'bq': jnp.zeros((1, d_model), jnp.float32),
            'wk': nrm(lk[1], (d_model, d_model)), 'bk': jnp.zeros((1, d_model), jnp.float32),
            'wv': nrm(lk[2], (d_model, d_model)), 'bv': jnp.zeros((1, d_model), jnp.float32),
            'wo': nrm(lk[3], (d_model, d_model)), 'bo': jnp.zeros((1, d_model), jnp.float32),
            'ln2_a': jnp.ones((1, d_model), jnp.float32),
            'ln2_b': jnp.zeros((1, d_model), jnp.float32),
            'w1': nrm(lk[4], (d_model, d_ff)), 'b1': jnp.zeros((1, d_ff), jnp.float32),
            'w2': nrm(lk[5], (d_ff, d_model)), 'b2': jnp.zeros((1, d_model), jnp.float32),
        })
    return params


# ----------------------------------------------------------------------------
# pure-JAX reference for verification
# ----------------------------------------------------------------------------
def reference_forward(tokens, params, num_heads):
    def ln(x, a, b, eps=1e-6):
        mean = jnp.mean(x, axis=-1, keepdims=True)
        var = jnp.sum((x - mean) ** 2, axis=-1, keepdims=True) / (x.shape[-1] - 1)
        return a * (x - mean) / (jnp.sqrt(var) + eps) + b

    d_model = params['token_emb'].shape[1]
    x_tok = params['token_emb'][tokens.T] * math.sqrt(d_model)
    pe = params['pe_emb'] * math.sqrt(d_model)
    x = x_tok + pe[None]
    B, S, D = x.shape
    dk = D // num_heads
    for lp in params['layers']:
        h = ln(x, lp['ln1_a'], lp['ln1_b'])
        q = h @ lp['wq'] + lp['bq']
        k = h @ lp['wk'] + lp['bk']
        v = h @ lp['wv'] + lp['bv']
        qh = q.reshape(B, S, num_heads, dk).transpose(0, 2, 1, 3)
        kh = k.reshape(B, S, num_heads, dk).transpose(0, 2, 1, 3)
        vh = v.reshape(B, S, num_heads, dk).transpose(0, 2, 1, 3)
        scores = qh @ kh.transpose(0, 1, 3, 2) / math.sqrt(dk)
        p = jax.nn.softmax(scores, axis=-1)
        a = (p @ vh).transpose(0, 2, 1, 3).reshape(B, S, D)
        x = x + (a @ lp['wo'] + lp['bo'])
        h2 = ln(x, lp['ln2_a'], lp['ln2_b'])
        x = x + (jax.nn.relu(h2 @ lp['w1'] + lp['b1']) @ lp['w2'] + lp['b2'])
    h = ln(x, params['lnf_a'], params['lnf_b'])
    feat = jnp.mean(h, axis=1)
    logits = feat @ params['fc_w'] + params['fc_b']
    return logits, feat, x_tok, pe


# ----------------------------------------------------------------------------
if __name__ == "__main__":
    # small shapes consistent with the module's forward
    SEQ, BATCH = 8, 2              # tokens arrive as (seq_len, batch) like torchtext
    D_MODEL, N_HEADS, N_LAYERS, D_FF = 32, 4, 2, 64
    VOCAB, N_CLASSES = 50, 4
    MAX_LEN = SEQ                  # PositionalEncoding asserts x.size(1) == max_len

    root = jax.random.PRNGKey(0)
    k_params, k_tokens = jax.random.split(root)
    params = init_params(k_params, VOCAB, D_MODEL, D_FF, N_LAYERS, N_CLASSES, MAX_LEN)
    tokens = jax.random.randint(k_tokens, (SEQ, BATCH), 0, VOCAB, dtype=jnp.int32)

    packed = pack_layer_params(params)
    fwd = jax.jit(functools.partial(transformer_pe_real_forward, num_heads=N_HEADS))
    logits, feat, x_tok, pe = fwd(tokens, params, packed)
    jax.block_until_ready((logits, feat, x_tok, pe))

    ref_logits, ref_feat, _, _ = reference_forward(tokens, params, N_HEADS)
    assert logits.shape == (BATCH, N_CLASSES) and feat.shape == (BATCH, D_MODEL)
    # tolerance 1e-3: pl.reciprocal(approx=True) in the softmax denominator
    assert jnp.allclose(logits, ref_logits, atol=1e-3, rtol=1e-3)
    assert jnp.allclose(feat, ref_feat, atol=1e-3, rtol=1e-3)

    print("KERNEL_OK")
</pallas_src>

<mosaic_0001>
module attributes {stable_mosaic.version = 11 : i64} {
  func.func @transformer_layer_kernel(%arg0: i32, %arg1: i32, %arg2: memref<2x8x32xf32, #tpu.memory_space<vmem>>, %arg3: memref<8x32xf32, #tpu.memory_space<vmem>>, %arg4: memref<1x1x32xf32, #tpu.memory_space<vmem>>, %arg5: memref<1x1x32xf32, #tpu.memory_space<vmem>>, %arg6: memref<1x32x96xf32, #tpu.memory_space<vmem>>, %arg7: memref<1x1x96xf32, #tpu.memory_space<vmem>>, %arg8: memref<1x32x32xf32, #tpu.memory_space<vmem>>, %arg9: memref<1x1x32xf32, #tpu.memory_space<vmem>>, %arg10: memref<1x1x32xf32, #tpu.memory_space<vmem>>, %arg11: memref<1x1x32xf32, #tpu.memory_space<vmem>>, %arg12: memref<1x32x64xf32, #tpu.memory_space<vmem>>, %arg13: memref<1x1x64xf32, #tpu.memory_space<vmem>>, %arg14: memref<1x64x32xf32, #tpu.memory_space<vmem>>, %arg15: memref<1x1x32xf32, #tpu.memory_space<vmem>>, %arg16: memref<1x32xf32, #tpu.memory_space<vmem>>, %arg17: memref<1x32xf32, #tpu.memory_space<vmem>>, %arg18: memref<32x4xf32, #tpu.memory_space<vmem>>, %arg19: memref<1x4xf32, #tpu.memory_space<vmem>>, %arg20: memref<2x4xf32, #tpu.memory_space<vmem>>, %arg21: memref<2x32xf32, #tpu.memory_space<vmem>>, %arg22: memref<2x8x32xf32, #tpu.memory_space<vmem>>) attributes {dimension_semantics = [#tpu.dimension_semantics<parallel>, #tpu.dimension_semantics<arbitrary>], iteration_bounds = array<i64: 1, 2>, scalar_prefetch = 0 : i64, scratch_operands = 1 : i64, tpu.core_type = #tpu.core_type<tc>, window_params = [{transform_indices = @transform_0, window_bounds = array<i64: 2, 8, 32>}, {pipeline_mode = #tpu.pipeline_mode<synchronous>, transform_indices = @transform_1, window_bounds = array<i64: 8, 32>}, {transform_indices = @transform_2, window_bounds = array<i64: 1, 1, 32>}, {transform_indices = @transform_3, window_bounds = array<i64: 1, 1, 32>}, {transform_indices = @transform_4, window_bounds = array<i64: 1, 32, 96>}, {transform_indices = @transform_5, window_bounds = array<i64: 1, 1, 96>}, {transform_indices = @transform_6, window_bounds = array<i64: 1, 32, 32>}, {transform_indices = @transform_7, window_bounds = array<i64: 1, 1, 32>}, {transform_indices = @transform_8, window_bounds = array<i64: 1, 1, 32>}, {transform_indices = @transform_9, window_bounds = array<i64: 1, 1, 32>}, {transform_indices = @transform_10, window_bounds = array<i64: 1, 32, 64>}, {transform_indices = @transform_11, window_bounds = array<i64: 1, 1, 64>}, {transform_indices = @transform_12, window_bounds = array<i64: 1, 64, 32>}, {transform_indices = @transform_13, window_bounds = array<i64: 1, 1, 32>}, {pipeline_mode = #tpu.pipeline_mode<synchronous>, transform_indices = @transform_14, window_bounds = array<i64: 1, 32>}, {pipeline_mode = #tpu.pipeline_mode<synchronous>, transform_indices = @transform_15, window_bounds = array<i64: 1, 32>}, {pipeline_mode = #tpu.pipeline_mode<synchronous>, transform_indices = @transform_16, window_bounds = array<i64: 32, 4>}, {pipeline_mode = #tpu.pipeline_mode<synchronous>, transform_indices = @transform_17, window_bounds = array<i64: 1, 4>}, {transform_indices = @transform_18, window_bounds = array<i64: 2, 4>}, {transform_indices = @transform_19, window_bounds = array<i64: 2, 32>}]} {
    %c0_i32 = arith.constant 0 : i32
    %0 = arith.cmpi eq, %arg1, %c0_i32 : i32
    %1 = arith.extui %0 : i1 to i32
    %c0_i32_0 = arith.constant 0 : i32
    %2 = arith.cmpi ne, %1, %c0_i32_0 : i32
    scf.if %2 {
      %c0_77 = arith.constant 0 : index
      %c0_78 = arith.constant 0 : index
      %c0_79 = arith.constant 0 : index
      %171 = vector.load %arg2[%c0_77, %c0_78, %c0_79] : memref<2x8x32xf32, #tpu.memory_space<vmem>>, vector<2x8x32xf32>
      %c0_80 = arith.constant 0 : index
      %c0_81 = arith.constant 0 : index
      %172 = vector.load %arg3[%c0_80, %c0_81] : memref<8x32xf32, #tpu.memory_space<vmem>>, vector<8x32xf32>
      %173 = vector.shape_cast %172 : vector<8x32xf32> to vector<1x8x32xf32>
      %174 = vector.broadcast %173 : vector<1x8x32xf32> to vector<2x8x32xf32>
      %175 = arith.addf %171, %174 : vector<2x8x32xf32>
      %c0_82 = arith.constant 0 : index
      %c0_83 = arith.constant 0 : index
      %c0_84 = arith.constant 0 : index
      %176 = vector.load %arg22[%c0_82, %c0_83, %c0_84] : memref<2x8x32xf32, #tpu.memory_space<vmem>>, vector<2x8x32xf32>
      tpu.vector_store %arg22[%c0_82, %c0_83, %c0_84], %175 {strides = array<i32>} : memref<2x8x32xf32, #tpu.memory_space<vmem>>, vector<2x8x32xf32>,
    } else {
    }
    %c0 = arith.constant 0 : index
    %c0_1 = arith.constant 0 : index
    %c0_2 = arith.constant 0 : index
    %3 = vector.load %arg22[%c0, %c0_1, %c0_2] : memref<2x8x32xf32, #tpu.memory_space<vmem>>, vector<2x8x32xf32>
    %c0_3 = arith.constant 0 : index
    %c0_4 = arith.constant 0 : index
    %c0_5 = arith.constant 0 : index
    %4 = vector.load %arg4[%c0_3, %c0_4, %c0_5] : memref<1x1x32xf32, #tpu.memory_space<vmem>>, vector<1x1x32xf32>
    %5 = vector.shape_cast %4 : vector<1x1x32xf32> to vector<1x32xf32>
    %c0_6 = arith.constant 0 : index
    %c0_7 = arith.constant 0 : index
    %c0_8 = arith.constant 0 : index
    %6 = vector.load %arg5[%c0_6, %c0_7, %c0_8] : memref<1x1x32xf32, #tpu.memory_space<vmem>>, vector<1x1x32xf32>
    %7 = vector.shape_cast %6 : vector<1x1x32xf32> to vector<1x32xf32>
    %cst = arith.constant dense<0.000000e+00> : vector<2x8xf32>
    %8 = vector.multi_reduction <add>, %3, %cst [2] : vector<2x8x32xf32> to vector<2x8xf32>
    %9 = vector.shape_cast %8 : vector<2x8xf32> to vector<2x8x1xf32>
    %cst_9 = arith.constant 3.200000e+01 : f32
    %10 = vector.broadcast %cst_9 : f32 to vector<2x8x1xf32>
    %11 = arith.divf %9, %10 : vector<2x8x1xf32>
    %12 = vector.broadcast %11 : vector<2x8x1xf32> to vector<2x8x32xf32>
    %13 = arith.subf %3, %12 : vector<2x8x32xf32>
    %14 = arith.mulf %13, %13 : vector<2x8x32xf32>
    %cst_10 = arith.constant dense<0.000000e+00> : vector<2x8xf32>
    %15 = vector.multi_reduction <add>, %14, %cst_10 [2] : vector<2x8x32xf32> to vector<2x8xf32>
    %16 = vector.shape_cast %15 : vector<2x8xf32> to vector<2x8x1xf32>
    %cst_11 = arith.constant 3.100000e+01 : f32
    %17 = vector.broadcast %cst_11 : f32 to vector<2x8x1xf32>
    %18 = arith.divf %16, %17 : vector<2x8x1xf32>
    %19 = math.sqrt %18 : vector<2x8x1xf32>
    %20 = vector.broadcast %11 : vector<2x8x1xf32> to vector<2x8x32xf32>
    %21 = arith.subf %3, %20 : vector<2x8x32xf32>
    %22 = vector.shape_cast %5 : vector<1x32xf32> to vector<1x1x32xf32>
    %23 = vector.broadcast %22 : vector<1x1x32xf32> to vector<2x8x32xf32>
    %24 = arith.mulf %23, %21 : vector<2x8x32xf32>
    %cst_12 = arith.constant 9.99999997E-7 : f32
    %25 = vector.broadcast %cst_12 : f32 to vector<2x8x1xf32>
    %26 = arith.addf %19, %25 : vector<2x8x1xf32>
    %27 = vector.broadcast %26 : vector<2x8x1xf32> to vector<2x8x32xf32>
    %28 = arith.divf %24, %27 : vector<2x8x32xf32>
    %29 = vector.shape_cast %7 : vector<1x32xf32> to vector<1x1x32xf32>
    %30 = vector.broadcast %29 : vector<1x1x32xf32> to vector<2x8x32xf32>
    %31 = arith.addf %28, %30 : vector<2x8x32xf32>
    %32 = vector.shape_cast %31 : vector<2x8x32xf32> to vector<16x32xf32>
    %c0_13 = arith.constant 0 : index
    %c0_14 = arith.constant 0 : index
    %c0_15 = arith.constant 0 : index
    %33 = vector.load %arg6[%c0_13, %c0_14, %c0_15] : memref<1x32x96xf32, #tpu.memory_space<vmem>>, vector<1x32x96xf32>
    %34 = vector.shape_cast %33 : vector<1x32x96xf32> to vector<32x96xf32>
    %cst_16 = arith.constant dense<0.000000e+00> : vector<16x96xf32>
    %35 = tpu.matmul %32, %34, %cst_16 {dimension_numbers = #tpu.dot_dimension_numbers<[1], [0], [0], [1], [0, 0, 1, 1], [], []>} : vector<16x32xf32>, vector<32x96xf32>, vector<16x96xf32> -> vector<16x96xf32>
    %c0_17 = arith.constant 0 : index
    %c0_18 = arith.constant 0 : index
    %c0_19 = arith.constant 0 : index
    %36 = vector.load %arg7[%c0_17, %c0_18, %c0_19] : memref<1x1x96xf32, #tpu.memory_space<vmem>>, vector<1x1x96xf32>
    %37 = vector.shape_cast %36 : vector<1x1x96xf32> to vector<1x96xf32>
    %38 = vector.broadcast %37 : vector<1x96xf32> to vector<16x96xf32>
    %39 = arith.addf %35, %38 : vector<16x96xf32>
    %40 = vector.shape_cast %39 : vector<16x96xf32> to vector<2x8x96xf32>
    %41 = vector.extract_strided_slice %40 {offsets = [0, 0, 0], sizes = [2, 8, 8], strides = [1, 1, 1]} : vector<2x8x96xf32> to vector<2x8x8xf32>
    %42 = vector.extract_strided_slice %40 {offsets = [0, 0, 32], sizes = [2, 8, 8], strides = [1, 1, 1]} : vector<2x8x96xf32> to vector<2x8x8xf32>
    %43 = vector.extract_strided_slice %40 {offsets = [0, 0, 64], sizes = [2, 8, 8], strides = [1, 1, 1]} : vector<2x8x96xf32> to vector<2x8x8xf32>
    "tpu.trace_start"() <{level = 10 : i32, message = "bqd,bkd->bqk"}> : () -> ()
    %cst_20 = arith.constant dense<0.000000e+00> : vector<2x8x8xf32>
    %44 = tpu.matmul %41, %42, %cst_20 {dimension_numbers = #tpu.dot_dimension_numbers<[2], [2], [1], [1], [0, 0, 0, 1, 1, 1], [0], [0]>} : vector<2x8x8xf32>, vector<2x8x8xf32>, vector<2x8x8xf32> -> vector<2x8x8xf32>
    "tpu.trace_stop"() : () -> ()
    %cst_21 = arith.constant 0.353553385 : f32
    %45 = vector.broadcast %cst_21 : f32 to vector<2x8x8xf32>
    %46 = arith.mulf %44, %45 : vector<2x8x8xf32>
    %cst_22 = arith.constant dense<0xFF800000> : vector<2x8xf32>
    %47 = vector.multi_reduction <maximumf>, %46, %cst_22 [2] : vector<2x8x8xf32> to vector<2x8xf32>
    %48 = vector.shape_cast %47 : vector<2x8xf32> to vector<2x8x1xf32>
    %49 = vector.broadcast %48 : vector<2x8x1xf32> to vector<2x8x8xf32>
    %50 = arith.subf %46, %49 : vector<2x8x8xf32>
    %51 = math.exp %50 : vector<2x8x8xf32>
    %cst_23 = arith.constant dense<0.000000e+00> : vector<2x8xf32>
    %52 = vector.multi_reduction <add>, %51, %cst_23 [2] : vector<2x8x8xf32> to vector<2x8xf32>
    %53 = vector.shape_cast %52 : vector<2x8xf32> to vector<2x8x1xf32>
    %54 = tpu.reciprocal %53 {approx = true} : vector<2x8x1xf32> -> vector<2x8x1xf32>
    %55 = vector.broadcast %54 : vector<2x8x1xf32> to vector<2x8x8xf32>
    %56 = arith.mulf %51, %55 : vector<2x8x8xf32>
    "tpu.trace_start"() <{level = 10 : i32, message = "bqk,bkd->bqd"}> : () -> ()
    %cst_24 = arith.constant dense<0.000000e+00> : vector<2x8x8xf32>
    %57 = tpu.matmul %56, %43, %cst_24 {dimension_numbers = #tpu.dot_dimension_numbers<[2], [1], [1], [2], [0, 0, 0, 1, 1, 2], [0], [0]>} : vector<2x8x8xf32>, vector<2x8x8xf32>, vector<2x8x8xf32> -> vector<2x8x8xf32>
    "tpu.trace_stop"() : () -> ()
    %58 = vector.extract_strided_slice %40 {offsets = [0, 0, 8], sizes = [2, 8, 8], strides = [1, 1, 1]} : vector<2x8x96xf32> to vector<2x8x8xf32>
    %59 = vector.extract_strided_slice %40 {offsets = [0, 0, 40], sizes = [2, 8, 8], strides = [1, 1, 1]} : vector<2x8x96xf32> to vector<2x8x8xf32>
    %60 = vector.extract_strided_slice %40 {offsets = [0, 0, 72], sizes = [2, 8, 8], strides = [1, 1, 1]} : vector<2x8x96xf32> to vector<2x8x8xf32>
    "tpu.trace_start"() <{level = 10 : i32, message = "bqd,bkd->bqk"}> : () -> ()
    %cst_25 = arith.constant dense<0.000000e+00> : vector<2x8x8xf32>
    %61 = tpu.matmul %58, %59, %cst_25 {dimension_numbers = #tpu.dot_dimension_numbers<[2], [2], [1], [1], [0, 0, 0, 1, 1, 1], [0], [0]>} : vector<2x8x8xf32>, vector<2x8x8xf32>, vector<2x8x8xf32> -> vector<2x8x8xf32>
    "tpu.trace_stop"() : () -> ()
    %cst_26 = arith.constant 0.353553385 : f32
    %62 = vector.broadcast %cst_26 : f32 to vector<2x8x8xf32>
    %63 = arith.mulf %61, %62 : vector<2x8x8xf32>
    %cst_27 = arith.constant dense<0xFF800000> : vector<2x8xf32>
    %64 = vector.multi_reduction <maximumf>, %63, %cst_27 [2] : vector<2x8x8xf32> to vector<2x8xf32>
    %65 = vector.shape_cast %64 : vector<2x8xf32> to vector<2x8x1xf32>
    %66 = vector.broadcast %65 : vector<2x8x1xf32> to vector<2x8x8xf32>
    %67 = arith.subf %63, %66 : vector<2x8x8xf32>
    %68 = math.exp %67 : vector<2x8x8xf32>
    %cst_28 = arith.constant dense<0.000000e+00> : vector<2x8xf32>
    %69 = vector.multi_reduction <add>, %68, %cst_28 [2] : vector<2x8x8xf32> to vector<2x8xf32>
    %70 = vector.shape_cast %69 : vector<2x8xf32> to vector<2x8x1xf32>
    %71 = tpu.reciprocal %70 {approx = true} : vector<2x8x1xf32> -> vector<2x8x1xf32>
    %72 = vector.broadcast %71 : vector<2x8x1xf32> to vector<2x8x8xf32>
    %73 = arith.mulf %68, %72 : vector<2x8x8xf32>
    "tpu.trace_start"() <{level = 10 : i32, message = "bqk,bkd->bqd"}> : () -> ()
    %cst_29 = arith.constant dense<0.000000e+00> : vector<2x8x8xf32>
    %74 = tpu.matmul %73, %60, %cst_29 {dimension_numbers = #tpu.dot_dimension_numbers<[2], [1], [1], [2], [0, 0, 0, 1, 1, 2], [0], [0]>} : vector<2x8x8xf32>, vector<2x8x8xf32>, vector<2x8x8xf32> -> vector<2x8x8xf32>
    "tpu.trace_stop"() : () -> ()
    %75 = vector.extract_strided_slice %40 {offsets = [0, 0, 16], sizes = [2, 8, 8], strides = [1, 1, 1]} : vector<2x8x96xf32> to vector<2x8x8xf32>
    %76 = vector.extract_strided_slice %40 {offsets = [0, 0, 48], sizes = [2, 8, 8], strides = [1, 1, 1]} : vector<2x8x96xf32> to vector<2x8x8xf32>
    %77 = vector.extract_strided_slice %40 {offsets = [0, 0, 80], sizes = [2, 8, 8], strides = [1, 1, 1]} : vector<2x8x96xf32> to vector<2x8x8xf32>
    "tpu.trace_start"() <{level = 10 : i32, message = "bqd,bkd->bqk"}> : () -> ()
    %cst_30 = arith.constant dense<0.000000e+00> : vector<2x8x8xf32>
    %78 = tpu.matmul %75, %76, %cst_30 {dimension_numbers = #tpu.dot_dimension_numbers<[2], [2], [1], [1], [0, 0, 0, 1, 1, 1], [0], [0]>} : vector<2x8x8xf32>, vector<2x8x8xf32>, vector<2x8x8xf32> -> vector<2x8x8xf32>
    "tpu.trace_stop"() : () -> ()
    %cst_31 = arith.constant 0.353553385 : f32
    %79 = vector.broadcast %cst_31 : f32 to vector<2x8x8xf32>
    %80 = arith.mulf %78, %79 : vector<2x8x8xf32>
    %cst_32 = arith.constant dense<0xFF800000> : vector<2x8xf32>
    %81 = vector.multi_reduction <maximumf>, %80, %cst_32 [2] : vector<2x8x8xf32> to vector<2x8xf32>
    %82 = vector.shape_cast %81 : vector<2x8xf32> to vector<2x8x1xf32>
    %83 = vector.broadcast %82 : vector<2x8x1xf32> to vector<2x8x8xf32>
    %84 = arith.subf %80, %83 : vector<2x8x8xf32>
    %85 = math.exp %84 : vector<2x8x8xf32>
    %cst_33 = arith.constant dense<0.000000e+00> : vector<2x8xf32>
    %86 = vector.multi_reduction <add>, %85, %cst_33 [2] : vector<2x8x8xf32> to vector<2x8xf32>
    %87 = vector.shape_cast %86 : vector<2x8xf32> to vector<2x8x1xf32>
    %88 = tpu.reciprocal %87 {approx = true} : vector<2x8x1xf32> -> vector<2x8x1xf32>
    %89 = vector.broadcast %88 : vector<2x8x1xf32> to vector<2x8x8xf32>
    %90 = arith.mulf %85, %89 : vector<2x8x8xf32>
    "tpu.trace_start"() <{level = 10 : i32, message = "bqk,bkd->bqd"}> : () -> ()
    %cst_34 = arith.constant dense<0.000000e+00> : vector<2x8x8xf32>
    %91 = tpu.matmul %90, %77, %cst_34 {dimension_numbers = #tpu.dot_dimension_numbers<[2], [1], [1], [2], [0, 0, 0, 1, 1, 2], [0], [0]>} : vector<2x8x8xf32>, vector<2x8x8xf32>, vector<2x8x8xf32> -> vector<2x8x8xf32>
    "tpu.trace_stop"() : () -> ()
    %92 = vector.extract_strided_slice %40 {offsets = [0, 0, 24], sizes = [2, 8, 8], strides = [1, 1, 1]} : vector<2x8x96xf32> to vector<2x8x8xf32>
    %93 = vector.extract_strided_slice %40 {offsets = [0, 0, 56], sizes = [2, 8, 8], strides = [1, 1, 1]} : vector<2x8x96xf32> to vector<2x8x8xf32>
    %94 = vector.extract_strided_slice %40 {offsets = [0, 0, 88], sizes = [2, 8, 8], strides = [1, 1, 1]} : vector<2x8x96xf32> to vector<2x8x8xf32>
    "tpu.trace_start"() <{level = 10 : i32, message = "bqd,bkd->bqk"}> : () -> ()
    %cst_35 = arith.constant dense<0.000000e+00> : vector<2x8x8xf32>
    %95 = tpu.matmul %92, %93, %cst_35 {dimension_numbers = #tpu.dot_dimension_numbers<[2], [2], [1], [1], [0, 0, 0, 1, 1, 1], [0], [0]>} : vector<2x8x8xf32>, vector<2x8x8xf32>, vector<2x8x8xf32> -> vector<2x8x8xf32>
    "tpu.trace_stop"() : () -> ()
    %cst_36 = arith.constant 0.353553385 : f32
    %96 = vector.broadcast %cst_36 : f32 to vector<2x8x8xf32>
    %97 = arith.mulf %95, %96 : vector<2x8x8xf32>
    %cst_37 = arith.constant dense<0xFF800000> : vector<2x8xf32>
    %98 = vector.multi_reduction <maximumf>, %97, %cst_37 [2] : vector<2x8x8xf32> to vector<2x8xf32>
    %99 = vector.shape_cast %98 : vector<2x8xf32> to vector<2x8x1xf32>
    %100 = vector.broadcast %99 : vector<2x8x1xf32> to vector<2x8x8xf32>
    %101 = arith.subf %97, %100 : vector<2x8x8xf32>
    %102 = math.exp %101 : vector<2x8x8xf32>
    %cst_38 = arith.constant dense<0.000000e+00> : vector<2x8xf32>
    %103 = vector.multi_reduction <add>, %102, %cst_38 [2] : vector<2x8x8xf32> to vector<2x8xf32>
    %104 = vector.shape_cast %103 : vector<2x8xf32> to vector<2x8x1xf32>
    %105 = tpu.reciprocal %104 {approx = true} : vector<2x8x1xf32> -> vector<2x8x1xf32>
    %106 = vector.broadcast %105 : vector<2x8x1xf32> to vector<2x8x8xf32>
    %107 = arith.mulf %102, %106 : vector<2x8x8xf32>
    "tpu.trace_start"() <{level = 10 : i32, message = "bqk,bkd->bqd"}> : () -> ()
    %cst_39 = arith.constant dense<0.000000e+00> : vector<2x8x8xf32>
    %108 = tpu.matmul %107, %94, %cst_39 {dimension_numbers = #tpu.dot_dimension_numbers<[2], [1], [1], [2], [0, 0, 0, 1, 1, 2], [0], [0]>} : vector<2x8x8xf32>, vector<2x8x8xf32>, vector<2x8x8xf32> -> vector<2x8x8xf32>
    "tpu.trace_stop"() : () -> ()
    %109 = tpu.concatenate %57, %74, %91, %108 in 2 : vector<2x8x8xf32>, vector<2x8x8xf32>, vector<2x8x8xf32>, vector<2x8x8xf32> -> vector<2x8x32xf32>
    %110 = vector.shape_cast %109 : vector<2x8x32xf32> to vector<16x32xf32>
    %c0_40 = arith.constant 0 : index
    %c0_41 = arith.constant 0 : index
    %c0_42 = arith.constant 0 : index
    %111 = vector.load %arg8[%c0_40, %c0_41, %c0_42] : memref<1x32x32xf32, #tpu.memory_space<vmem>>, vector<1x32x32xf32>
    %112 = vector.shape_cast %111 : vector<1x32x32xf32> to vector<32x32xf32>
    %cst_43 = arith.constant dense<0.000000e+00> : vector<16x32xf32>
    %113 = tpu.matmul %110, %112, %cst_43 {dimension_numbers = #tpu.dot_dimension_numbers<[1], [0], [0], [1], [0, 0, 1, 1], [], []>} : vector<16x32xf32>, vector<32x32xf32>, vector<16x32xf32> -> vector<16x32xf32>
    %c0_44 = arith.constant 0 : index
    %c0_45 = arith.constant 0 : index
    %c0_46 = arith.constant 0 : index
    %114 = vector.load %arg9[%c0_44, %c0_45, %c0_46] : memref<1x1x32xf32, #tpu.memory_space<vmem>>, vector<1x1x32xf32>
    %115 = vector.shape_cast %114 : vector<1x1x32xf32> to vector<1x32xf32>
    %116 = vector.broadcast %115 : vector<1x32xf32> to vector<16x32xf32>
    %117 = arith.addf %113, %116 : vector<16x32xf32>
    %118 = vector.shape_cast %117 : vector<16x32xf32> to vector<2x8x32xf32>
    %119 = arith.addf %3, %118 : vector<2x8x32xf32>
    %c0_47 = arith.constant 0 : index
    %c0_48 = arith.constant 0 : index
    %c0_49 = arith.constant 0 : index
    %120 = vector.load %arg10[%c0_47, %c0_48, %c0_49] : memref<1x1x32xf32, #tpu.memory_space<vmem>>, vector<1x1x32xf32>
    %121 = vector.shape_cast %120 : vector<1x1x32xf32> to vector<1x32xf32>
    %c0_50 = arith.constant 0 : index
    %c0_51 = arith.constant 0 : index
    %c0_52 = arith.constant 0 : index
    %122 = vector.load %arg11[%c0_50, %c0_51, %c0_52] : memref<1x1x32xf32, #tpu.memory_space<vmem>>, vector<1x1x32xf32>
    %123 = vector.shape_cast %122 : vector<1x1x32xf32> to vector<1x32xf32>
    %cst_53 = arith.constant dense<0.000000e+00> : vector<2x8xf32>
    %124 = vector.multi_reduction <add>, %119, %cst_53 [2] : vector<2x8x32xf32> to vector<2x8xf32>
    %125 = vector.shape_cast %124 : vector<2x8xf32> to vector<2x8x1xf32>
    %cst_54 = arith.constant 3.200000e+01 : f32
    %126 = vector.broadcast %cst_54 : f32 to vector<2x8x1xf32>
    %127 = arith.divf %125, %126 : vector<2x8x1xf32>
    %128 = vector.broadcast %127 : vector<2x8x1xf32> to vector<2x8x32xf32>
    %129 = arith.subf %119, %128 : vector<2x8x32xf32>
    %130 = arith.mulf %129, %129 : vector<2x8x32xf32>
    %cst_55 = arith.constant dense<0.000000e+00> : vector<2x8xf32>
    %131 = vector.multi_reduction <add>, %130, %cst_55 [2] : vector<2x8x32xf32> to vector<2x8xf32>
    %132 = vector.shape_cast %131 : vector<2x8xf32> to vector<2x8x1xf32>
    %cst_56 = arith.constant 3.100000e+01 : f32
    %133 = vector.broadcast %cst_56 : f32 to vector<2x8x1xf32>
    %134 = arith.divf %132, %133 : vector<2x8x1xf32>
    %135 = math.sqrt %134 : vector<2x8x1xf32>
    %136 = vector.broadcast %127 : vector<2x8x1xf32> to vector<2x8x32xf32>
    %137 = arith.subf %119, %136 : vector<2x8x32xf32>
    %138 = vector.shape_cast %121 : vector<1x32xf32> to vector<1x1x32xf32>
    %139 = vector.broadcast %138 : vector<1x1x32xf32> to vector<2x8x32xf32>
    %140 = arith.mulf %139, %137 : vector<2x8x32xf32>
    %cst_57 = arith.constant 9.99999997E-7 : f32
    %141 = vector.broadcast %cst_57 : f32 to vector<2x8x1xf32>
    %142 = arith.addf %135, %141 : vector<2x8x1xf32>
    %143 = vector.broadcast %142 : vector<2x8x1xf32> to vector<2x8x32xf32>
    %144 = arith.divf %140, %143 : vector<2x8x32xf32>
    %145 = vector.shape_cast %123 : vector<1x32xf32> to vector<1x1x32xf32>
    %146 = vector.broadcast %145 : vector<1x1x32xf32> to vector<2x8x32xf32>
    %147 = arith.addf %144, %146 : vector<2x8x32xf32>
    %148 = vector.shape_cast %147 : vector<2x8x32xf32> to vector<16x32xf32>
    %c0_58 = arith.constant 0 : index
    %c0_59 = arith.constant 0 : index
    %c0_60 = arith.constant 0 : index
    %149 = vector.load %arg12[%c0_58, %c0_59, %c0_60] : memref<1x32x64xf32, #tpu.memory_space<vmem>>, vector<1x32x64xf32>
    %150 = vector.shape_cast %149 : vector<1x32x64xf32> to vector<32x64xf32>
    %cst_61 = arith.constant dense<0.000000e+00> : vector<16x64xf32>
    %151 = tpu.matmul %148, %150, %cst_61 {dimension_numbers = #tpu.dot_dimension_numbers<[1], [0], [0], [1], [0, 0, 1, 1], [], []>} : vector<16x32xf32>, vector<32x64xf32>, vector<16x64xf32> -> vector<16x64xf32>
    %c0_62 = arith.constant 0 : index
    %c0_63 = arith.constant 0 : index
    %c0_64 = arith.constant 0 : index
    %152 = vector.load %arg13[%c0_62, %c0_63, %c0_64] : memref<1x1x64xf32, #tpu.memory_space<vmem>>, vector<1x1x64xf32>
    %153 = vector.shape_cast %152 : vector<1x1x64xf32> to vector<1x64xf32>
    %154 = vector.broadcast %153 : vector<1x64xf32> to vector<16x64xf32>
    %155 = arith.addf %151, %154 : vector<16x64xf32>
    %cst_65 = arith.constant 0.000000e+00 : f32
    %156 = vector.broadcast %cst_65 : f32 to vector<16x64xf32>
    %157 = arith.maximumf %155, %156 : vector<16x64xf32>
    %c0_66 = arith.constant 0 : index
    %c0_67 = arith.constant 0 : index
    %c0_68 = arith.constant 0 : index
    %158 = vector.load %arg14[%c0_66, %c0_67, %c0_68] : memref<1x64x32xf32, #tpu.memory_space<vmem>>, vector<1x64x32xf32>
    %159 = vector.shape_cast %158 : vector<1x64x32xf32> to vector<64x32xf32>
    %cst_69 = arith.constant dense<0.000000e+00> : vector<16x32xf32>
    %160 = tpu.matmul %157, %159, %cst_69 {dimension_numbers = #tpu.dot_dimension_numbers<[1], [0], [0], [1], [0, 0, 1, 1], [], []>} : vector<16x64xf32>, vector<64x32xf32>, vector<16x32xf32> -> vector<16x32xf32>
    %c0_70 = arith.constant 0 : index
    %c0_71 = arith.constant 0 : index
    %c0_72 = arith.constant 0 : index
    %161 = vector.load %arg15[%c0_70, %c0_71, %c0_72] : memref<1x1x32xf32, #tpu.memory_space<vmem>>, vector<1x1x32xf32>
    %162 = vector.shape_cast %161 : vector<1x1x32xf32> to vector<1x32xf32>
    %163 = vector.broadcast %162 : vector<1x32xf32> to vector<16x32xf32>
    %164 = arith.addf %160, %163 : vector<16x32xf32>
    %165 = vector.shape_cast %164 : vector<16x32xf32> to vector<2x8x32xf32>
    %166 = arith.addf %119, %165 : vector<2x8x32xf32>
    %c0_73 = arith.constant 0 : index
    %c0_74 = arith.constant 0 : index
    %c0_75 = arith.constant 0 : index
    %167 = vector.load %arg22[%c0_73, %c0_74, %c0_75] : memref<2x8x32xf32, #tpu.memory_space<vmem>>, vector<2x8x32xf32>
    tpu.vector_store %arg22[%c0_73, %c0_74, %c0_75], %166 {strides = array<i32>} : memref<2x8x32xf32, #tpu.memory_space<vmem>>, vector<2x8x32xf32>,
    %c1_i32 = arith.constant 1 : i32
    %168 = arith.cmpi eq, %arg1, %c1_i32 : i32
    %169 = arith.extui %168 : i1 to i32
    %c0_i32_76 = arith.constant 0 : i32
    %170 = arith.cmpi ne, %169, %c0_i32_76 : i32
    scf.if %170 {
      %c0_77 = arith.constant 0 : index
      %c0_78 = arith.constant 0 : index
      %171 = vector.load %arg16[%c0_77, %c0_78] : memref<1x32xf32, #tpu.memory_space<vmem>>, vector<1x32xf32>
      %c0_79 = arith.constant 0 : index
      %c0_80 = arith.constant 0 : index
      %172 = vector.load %arg17[%c0_79, %c0_80] : memref<1x32xf32, #tpu.memory_space<vmem>>, vector<1x32xf32>
      %cst_81 = arith.constant dense<0.000000e+00> : vector<2x8xf32>
      %173 = vector.multi_reduction <add>, %166, %cst_81 [2] : vector<2x8x32xf32> to vector<2x8xf32>
      %174 = vector.shape_cast %173 : vector<2x8xf32> to vector<2x8x1xf32>
      %cst_82 = arith.constant 3.200000e+01 : f32
      %175 = vector.broadcast %cst_82 : f32 to vector<2x8x1xf32>
      %176 = arith.divf %174, %175 : vector<2x8x1xf32>
      %177 = vector.broadcast %176 : vector<2x8x1xf32> to vector<2x8x32xf32>
      %178 = arith.subf %166, %177 : vector<2x8x32xf32>
      %179 = arith.mulf %178, %178 : vector<2x8x32xf32>
      %cst_83 = arith.constant dense<0.000000e+00> : vector<2x8xf32>
      %180 = vector.multi_reduction <add>, %179, %cst_83 [2] : vector<2x8x32xf32> to vector<2x8xf32>
      %181 = vector.shape_cast %180 : vector<2x8xf32> to vector<2x8x1xf32>
      %cst_84 = arith.constant 3.100000e+01 : f32
      %182 = vector.broadcast %cst_84 : f32 to vector<2x8x1xf32>
      %183 = arith.divf %181, %182 : vector<2x8x1xf32>
      %184 = math.sqrt %183 : vector<2x8x1xf32>
      %185 = vector.broadcast %176 : vector<2x8x1xf32> to vector<2x8x32xf32>
      %186 = arith.subf %166, %185 : vector<2x8x32xf32>
      %187 = vector.shape_cast %171 : vector<1x32xf32> to vector<1x1x32xf32>
      %188 = vector.broadcast %187 : vector<1x1x32xf32> to vector<2x8x32xf32>
      %189 = arith.mulf %188, %186 : vector<2x8x32xf32>
      %cst_85 = arith.constant 9.99999997E-7 : f32
      %190 = vector.broadcast %cst_85 : f32 to vector<2x8x1xf32>
      %191 = arith.addf %184, %190 : vector<2x8x1xf32>
      %192 = vector.broadcast %191 : vector<2x8x1xf32> to vector<2x8x32xf32>
      %193 = arith.divf %189, %192 : vector<2x8x32xf32>
      %194 = vector.shape_cast %172 : vector<1x32xf32> to vector<1x1x32xf32>
      %195 = vector.broadcast %194 : vector<1x1x32xf32> to vector<2x8x32xf32>
      %196 = arith.addf %193, %195 : vector<2x8x32xf32>
      %cst_86 = arith.constant dense<0.000000e+00> : vector<2x32xf32>
      %197 = vector.multi_reduction <add>, %196, %cst_86 [1] : vector<2x8x32xf32> to vector<2x32xf32>
      %cst_87 = arith.constant 8.000000e+00 : f32
      %198 = vector.broadcast %cst_87 : f32 to vector<2x32xf32>
      %199 = arith.divf %197, %198 : vector<2x32xf32>
      %c0_88 = arith.constant 0 : index
      %c0_89 = arith.constant 0 : index
      %200 = vector.load %arg21[%c0_88, %c0_89] : memref<2x32xf32, #tpu.memory_space<vmem>>, vector<2x32xf32>
      tpu.vector_store %arg21[%c0_88, %c0_89], %199 {strides = array<i32>} : memref<2x32xf32, #tpu.memory_space<vmem>>, vector<2x32xf32>,
      %c0_90 = arith.constant 0 : index
      %c0_91 = arith.constant 0 : index
      %201 = vector.load %arg18[%c0_90, %c0_91] : memref<32x4xf32, #tpu.memory_space<vmem>>, vector<32x4xf32>
      %cst_92 = arith.constant dense<0.000000e+00> : vector<2x4xf32>
      %202 = tpu.matmul %199, %201, %cst_92 {dimension_numbers = #tpu.dot_dimension_numbers<[1], [0], [0], [1], [0, 0, 1, 1], [], []>} : vector<2x32xf32>, vector<32x4xf32>, vector<2x4xf32> -> vector<2x4xf32>
      %c0_93 = arith.constant 0 : index
      %c0_94 = arith.constant 0 : index
      %203 = vector.load %arg19[%c0_93, %c0_94] : memref<1x4xf32, #tpu.memory_space<vmem>>, vector<1x4xf32>
      %204 = vector.broadcast %203 : vector<1x4xf32> to vector<2x4xf32>
      %205 = arith.addf %202, %204 : vector<2x4xf32>
      %c0_95 = arith.constant 0 : index
      %c0_96 = arith.constant 0 : index
      %206 = vector.load %arg20[%c0_95, %c0_96] : memref<2x4xf32, #tpu.memory_space<vmem>>, vector<2x4xf32>
      tpu.vector_store %arg20[%c0_95, %c0_96], %205 {strides = array<i32>} : memref<2x4xf32, #tpu.memory_space<vmem>>, vector<2x4xf32>,
    } else {
    }
    return
  }
  func.func @transform_0(%arg0: i32, %arg1: i32) -> (i32, i32, i32) {
    %c0_i32 = arith.constant 0 : i32
    %c0_i32_0 = arith.constant 0 : i32
    %c0_i32_1 = arith.constant 0 : i32
    return %arg0, %c0_i32, %c0_i32_0 : i32, i32, i32
  }
  func.func @transform_1(%arg0: i32, %arg1: i32) -> (i32, i32) {
    %c0_i32 = arith.constant 0 : i32
    %c0_i32_0 = arith.constant 0 : i32
    %c0_i32_1 = arith.constant 0 : i32
    return %c0_i32, %c0_i32_0 : i32, i32
  }
  func.func @transform_2(%arg0: i32, %arg1: i32) -> (i32, i32, i32) {
    %c0_i32 = arith.constant 0 : i32
    %c0_i32_0 = arith.constant 0 : i32
    %c0_i32_1 = arith.constant 0 : i32
    return %arg1, %c0_i32, %c0_i32_0 : i32, i32, i32
  }
  func.func @transform_3(%arg0: i32, %arg1: i32) -> (i32, i32, i32) {
    %c0_i32 = arith.constant 0 : i32
    %c0_i32_0 = arith.constant 0 : i32
    %c0_i32_1 = arith.constant 0 : i32
    return %arg1, %c0_i32, %c0_i32_0 : i32, i32, i32
  }
  func.func @transform_4(%arg0: i32, %arg1: i32) -> (i32, i32, i32) {
    %c0_i32 = arith.constant 0 : i32
    %c0_i32_0 = arith.constant 0 : i32
    %c0_i32_1 = arith.constant 0 : i32
    return %arg1, %c0_i32, %c0_i32_0 : i32, i32, i32
  }
  func.func @transform_5(%arg0: i32, %arg1: i32) -> (i32, i32, i32) {
    %c0_i32 = arith.constant 0 : i32
    %c0_i32_0 = arith.constant 0 : i32
    %c0_i32_1 = arith.constant 0 : i32
    return %arg1, %c0_i32, %c0_i32_0 : i32, i32, i32
  }
  func.func @transform_6(%arg0: i32, %arg1: i32) -> (i32, i32, i32) {
    %c0_i32 = arith.constant 0 : i32
    %c0_i32_0 = arith.constant 0 : i32
    %c0_i32_1 = arith.constant 0 : i32
    return %arg1, %c0_i32, %c0_i32_0 : i32, i32, i32
  }
  func.func @transform_7(%arg0: i32, %arg1: i32) -> (i32, i32, i32) {
    %c0_i32 = arith.constant 0 : i32
    %c0_i32_0 = arith.constant 0 : i32
    %c0_i32_1 = arith.constant 0 : i32
    return %arg1, %c0_i32, %c0_i32_0 : i32, i32, i32
  }
  func.func @transform_8(%arg0: i32, %arg1: i32) -> (i32, i32, i32) {
    %c0_i32 = arith.constant 0 : i32
    %c0_i32_0 = arith.constant 0 : i32
    %c0_i32_1 = arith.constant 0 : i32
    return %arg1, %c0_i32, %c0_i32_0 : i32, i32, i32
  }
  func.func @transform_9(%arg0: i32, %arg1: i32) -> (i32, i32, i32) {
    %c0_i32 = arith.constant 0 : i32
    %c0_i32_0 = arith.constant 0 : i32
    %c0_i32_1 = arith.constant 0 : i32
    return %arg1, %c0_i32, %c0_i32_0 : i32, i32, i32
  }
  func.func @transform_10(%arg0: i32, %arg1: i32) -> (i32, i32, i32) {
    %c0_i32 = arith.constant 0 : i32
    %c0_i32_0 = arith.constant 0 : i32
    %c0_i32_1 = arith.constant 0 : i32
    return %arg1, %c0_i32, %c0_i32_0 : i32, i32, i32
  }
  func.func @transform_11(%arg0: i32, %arg1: i32) -> (i32, i32, i32) {
    %c0_i32 = arith.constant 0 : i32
    %c0_i32_0 = arith.constant 0 : i32
    %c0_i32_1 = arith.constant 0 : i32
    return %arg1, %c0_i32, %c0_i32_0 : i32, i32, i32
  }
  func.func @transform_12(%arg0: i32, %arg1: i32) -> (i32, i32, i32) {
    %c0_i32 = arith.constant 0 : i32
    %c0_i32_0 = arith.constant 0 : i32
    %c0_i32_1 = arith.constant 0 : i32
    return %arg1, %c0_i32, %c0_i32_0 : i32, i32, i32
  }
  func.func @transform_13(%arg0: i32, %arg1: i32) -> (i32, i32, i32) {
    %c0_i32 = arith.constant 0 : i32
    %c0_i32_0 = arith.constant 0 : i32
    %c0_i32_1 = arith.constant 0 : i32
    return %arg1, %c0_i32, %c0_i32_0 : i32, i32, i32
  }
  func.func @transform_14(%arg0: i32, %arg1: i32) -> (i32, i32) {
    %c0_i32 = arith.constant 0 : i32
    %c0_i32_0 = arith.constant 0 : i32
    %c0_i32_1 = arith.constant 0 : i32
    return %c0_i32, %c0_i32_0 : i32, i32
  }
  func.func @transform_15(%arg0: i32, %arg1: i32) -> (i32, i32) {
    %c0_i32 = arith.constant 0 : i32
    %c0_i32_0 = arith.constant 0 : i32
    %c0_i32_1 = arith.constant 0 : i32
    return %c0_i32, %c0_i32_0 : i32, i32
  }
  func.func @transform_16(%arg0: i32, %arg1: i32) -> (i32, i32) {
    %c0_i32 = arith.constant 0 : i32
    %c0_i32_0 = arith.constant 0 : i32
    %c0_i32_1 = arith.constant 0 : i32
    return %c0_i32, %c0_i32_0 : i32, i32
  }
  func.func @transform_17(%arg0: i32, %arg1: i32) -> (i32, i32) {
    %c0_i32 = arith.constant 0 : i32
    %c0_i32_0 = arith.constant 0 : i32
    %c0_i32_1 = arith.constant 0 : i32
    return %c0_i32, %c0_i32_0 : i32, i32
  }
  func.func @transform_18(%arg0: i32, %arg1: i32) -> (i32, i32) {
    %c0_i32 = arith.constant 0 : i32
    %c0_i32_0 = arith.constant 0 : i32
    return %arg0, %c0_i32 : i32, i32
  }
  func.func @transform_19(%arg0: i32, %arg1: i32) -> (i32, i32) {
    %c0_i32 = arith.constant 0 : i32
    %c0_i32_0 = arith.constant 0 : i32
    return %arg0, %c0_i32 : i32, i32
  }
}

</mosaic_0001>

<llo_original>
// kernel: transformer_pe_real_forward.1
$region0: #{transformer_pe_real_forward.1}
  #allocation0 [shape = 'u32[]', space=smem, size = 0x4, offset = 0x4, fixed_abs, tag = 'smem constant byte address 0x4 - core index']
  #allocation1 [shape = 'u32[144,128]{1,0:T(1,128)}', space=vmem, size = 0x12000, scoped, tag = 'internal scratch']
  #allocation2 [shape = 'f32[2,8,32]{2,1,0:T(8,128)}', space=vmem, size = 0x2000, scoped, tag = 'scratch operand']
  %s0 = inlined_call_operand.vmem [shape: f32[2,8,32], index: 0, kind: input, shape index: {}]
  %s1 = inlined_call_operand.vmem [shape: f32[8,32], index: 1, kind: input, shape index: {}]
  %s2 = inlined_call_operand.vmem [shape: f32[2,1,32], index: 2, kind: input, shape index: {}]
  %s3 = inlined_call_operand.vmem [shape: f32[2,1,32], index: 3, kind: input, shape index: {}]
  %s4 = inlined_call_operand.vmem [shape: f32[2,32,96], index: 4, kind: input, shape index: {}]
  %s5 = inlined_call_operand.vmem [shape: f32[2,1,96], index: 5, kind: input, shape index: {}]
  %s6 = inlined_call_operand.vmem [shape: f32[2,32,32], index: 6, kind: input, shape index: {}]
  %s7 = inlined_call_operand.vmem [shape: f32[2,1,32], index: 7, kind: input, shape index: {}]
  %s8 = inlined_call_operand.vmem [shape: f32[2,1,32], index: 8, kind: input, shape index: {}]
  %s9 = inlined_call_operand.vmem [shape: f32[2,1,32], index: 9, kind: input, shape index: {}]
  %s10 = inlined_call_operand.vmem [shape: f32[2,32,64], index: 10, kind: input, shape index: {}]
  %s11 = inlined_call_operand.vmem [shape: f32[2,1,64], index: 11, kind: input, shape index: {}]
  %s12 = inlined_call_operand.vmem [shape: f32[2,64,32], index: 12, kind: input, shape index: {}]
  %s13 = inlined_call_operand.vmem [shape: f32[2,1,32], index: 13, kind: input, shape index: {}]
  %s14 = inlined_call_operand.vmem [shape: f32[1,32], index: 14, kind: input, shape index: {}]
  %s15 = inlined_call_operand.vmem [shape: f32[1,32], index: 15, kind: input, shape index: {}]
  %s16 = inlined_call_operand.vmem [shape: f32[32,4], index: 16, kind: input, shape index: {}]
  %s17 = inlined_call_operand.vmem [shape: f32[1,4], index: 17, kind: input, shape index: {}]
  %s18 = inlined_call_operand.hbm [shape: f32[2,4], index: 18, kind: output, shape index: {0}]
  %s19 = inlined_call_operand.hbm [shape: f32[2,32], index: 19, kind: output, shape index: {1}]
  %20 = xla_tuple %s18, %s19
  %s21 = sld [smem:[#allocation0]]
  $region121: #{transformer_pe_real_forward.1} parent=0
    _
  %s23 = ssub.s32 1, %s21
  %s24 = scalar_select 0, %s23, %s21
  $region1: #{transformer_pe_real_forward.1} parent=0
    #allocation3 [shape = 'u8[1024]{0}', space=vmem, size = 0x400, scoped, tag = 'output window, operand 0, single buffered']
    #allocation4 [shape = 's32[2]{0}', space=sflag, size = 0x8, scoped, tag = 'scoped memory for transformer_pe_real_forward.1']
    #allocation5 [shape = 'u8[1024]{0}', space=vmem, size = 0x400, scoped, tag = 'output window, operand 1, single buffered']
    #allocation6 [shape = 's32[1]{0}', space=sflag, size = 0x4, scoped, tag = 'scoped memory for transformer_pe_real_forward.1']
    %25 = vsyncpa [#allocation4], 0
    %26 = vsyncpa [#allocation6], 0
    loop: start=0, step=1, limit=4
    $region2: #{transformer_pe_real_forward.1} parent=1 // loop_pre_header
      _
    $region3: #{transformer_pe_real_forward.1} parent=1 // loop_header
      %s28 = sphi 0, %s32
      %p29 = scmp.ge.s32.totalorder %s28, 4
      %s35 = sphi 0, %s47
      %s36 = sphi 0, %s43
      %s37 = sphi 0, %s35
      %s38 = sphi 0, %s36
      %s39 = sphi 0, %s37
      %s40 = sphi 0, %s38
      %s50 = sphi 0, %s52
      %s53 = sphi 0, %s50
      %s54 = sphi 0, %s53
      %s70 = sphi 0, %s54
      %s74 = sphi 0, %s74
      %s76 = sphi 0, %s74
      %s77 = sphi 0, %s76
      %s91 = sphi 0, %s77
      %s97 = sphi 0, %s99
      %s100 = sphi 0, %s97
      %s101 = sphi 0, %s100
      %s117 = sphi 0, %s101
      %s123 = sphi 0, %s125
      %s126 = sphi 0, %s123
      %s127 = sphi 0, %s126
      %s143 = sphi 0, %s127
      %s149 = sphi 0, %s151
      %s152 = sphi 0, %s149
      %s153 = sphi 0, %s152
      %s169 = sphi 0, %s153
      %s175 = sphi 0, %s177
      %s178 = sphi 0, %s175
      %s179 = sphi 0, %s178
      %s195 = sphi 0, %s179
      %s201 = sphi 0, %s203
      %s204 = sphi 0, %s201
      %s205 = sphi 0, %s204
      %s221 = sphi 0, %s205
      %s227 = sphi 0, %s229
      %s230 = sphi 0, %s227
      %s231 = sphi 0, %s230
      %s247 = sphi 0, %s231
      %s253 = sphi 0, %s255
      %s256 = sphi 0, %s253
      %s257 = sphi 0, %s256
      %s273 = sphi 0, %s257
      %s279 = sphi 0, %s281
      %s282 = sphi 0, %s279
      %s283 = sphi 0, %s282
      %s299 = sphi 0, %s283
      %s305 = sphi 0, %s307
      %s308 = sphi 0, %s305
      %s309 = sphi 0, %s308
      %s325 = sphi 0, %s309
      %s331 = sphi 0, %s333
      %s334 = sphi 0, %s331
      %s335 = sphi 0, %s334
      %s351 = sphi 0, %s335
      %s357 = sphi 0, %s359
      %s360 = sphi 0, %s357
      %s361 = sphi 0, %s360
      %s377 = sphi 0, %s361
      %s383 = sphi 0, %s385
      %s386 = sphi 0, %s383
      %s387 = sphi 0, %s386
      %s403 = sphi 0, %s387
      %s407 = sphi 0, %s407
      %s409 = sphi 0, %s407
      %s410 = sphi 0, %s409
      %s424 = sphi 0, %s410
      %s428 = sphi 0, %s428
      %s430 = sphi 0, %s428
      %s431 = sphi 0, %s430
      %s445 = sphi 0, %s431
      %s449 = sphi 0, %s449
      %s451 = sphi 0, %s449
      %s452 = sphi 0, %s451
      %s466 = sphi 0, %s452
      %s470 = sphi 0, %s470
      %s472 = sphi 0, %s470
      %s473 = sphi 0, %s472
      %s487 = sphi 0, %s473
      %s493 = sphi 0, %s495
      %s496 = sphi 0, %s493
      %s497 = sphi 0, %s496
      %s513 = sphi 0, %s497
      %s519 = sphi 0, %s521
      %s522 = sphi 0, %s519
      %s523 = sphi 0, %s522
      %s539 = sphi 0, %s523
    $region4: #{transformer_pe_real_forward.1} parent=1 // loop_header_branch
      %31 = sbr.rel (%p29) target = $region8
    $region5: #{transformer_pe_real_forward.1} parent=1 // loop_body
      %s33 = ssub.s32 %s28, 1
      %s34 = ssub.s32 %s28, 2
      %s41 = sadd.s32 1, %s36
      %p42 = scmp.ge.s32.totalorder %s41, 2
      %s43 = scalar_select %p42, 0, %s41
      %s44 = sadd.s32 1, %s35
      %s45 = scalar_select %p42, %s44, %s35
      %p46 = scmp.ge.s32.totalorder %s45, 1
      %s47 = scalar_select %p46, 0, %s45
      %s48 = ssub.s32 %s35, %s47
      %p49 = scmp.eq.s32.totalorder %s48, 0
      %s51 = sadd.s32 %s50, 1
      %s52 = scalar_select %p49, %s50, %s51
      %p55 = pneg %p49
      %p56 = scmp.eq.s32.totalorder %s28, 1
      %p57 = por %p55, %p56
      %p58 = scmp.ne.s32.totalorder %s50, %s53
      %p59 = scmp.eq.s32.totalorder %s28, 0
      %p60 = por %p58, %p59
      %p61 = scmp.ne.s32.totalorder %s50, %s53
      %p62 = scmp.eq.s32.totalorder %s33, 1
      %p63 = por %p61, %p62
      %p64 = scmp.ne.s32.totalorder %s53, %s54
      %p65 = scmp.eq.s32.totalorder %s33, 0
      %p66 = por %p64, %p65
      %p67 = scmp.ne.s32.totalorder %s53, %s54
      %p68 = scmp.eq.s32.totalorder %s34, 1
      %p69 = por %p67, %p68
      %p71 = scmp.ne.s32.totalorder %s54, %s70
      %p72 = scmp.eq.s32.totalorder %s34, 0
      %p73 = por %p71, %p72
      %s75 = sadd.s32 %s74, 1
      %p78 = scmp.eq.s32.totalorder %s28, 1
      %p79 = scmp.ne.s32.totalorder %s74, %s76
      %p80 = scmp.eq.s32.totalorder %s28, 0
      %p81 = por %p79, %p80
      %p82 = scmp.ne.s32.totalorder %s74, %s76
      %p83 = scmp.eq.s32.totalorder %s33, 1
      %p84 = por %p82, %p83
      %p85 = scmp.ne.s32.totalorder %s76, %s77
      %p86 = scmp.eq.s32.totalorder %s33, 0
      %p87 = por %p85, %p86
      %p88 = scmp.ne.s32.totalorder %s76, %s77
      %p89 = scmp.eq.s32.totalorder %s34, 1
      %p90 = por %p88, %p89
      %p92 = scmp.ne.s32.totalorder %s77, %s91
      %p93 = scmp.eq.s32.totalorder %s34, 0
      %p94 = por %p92, %p93
      %s95 = ssub.s32 %s36, %s43
      %p96 = scmp.eq.s32.totalorder %s95, 0
      %s98 = sadd.s32 %s97, 1
      %s99 = scalar_select %p96, %s97, %s98
      %p102 = pneg %p96
      %p103 = scmp.eq.s32.totalorder %s28, 1
      %p104 = por %p102, %p103
      %p105 = scmp.ne.s32.totalorder %s97, %s100
      %p106 = scmp.eq.s32.totalorder %s28, 0
      %p107 = por %p105, %p106
      %p108 = scmp.ne.s32.totalorder %s97, %s100
      %p109 = scmp.eq.s32.totalorder %s33, 1
      %p110 = por %p108, %p109
      %p111 = scmp.ne.s32.totalorder %s100, %s101
      %p112 = scmp.eq.s32.totalorder %s33, 0
      %p113 = por %p111, %p112
      %p114 = scmp.ne.s32.totalorder %s100, %s101
      %p115 = scmp.eq.s32.totalorder %s34, 1
      %p116 = por %p114, %p115
      %p118 = scmp.ne.s32.totalorder %s101, %s117
      %p119 = scmp.eq.s32.totalorder %s34, 0
      %p120 = por %p118, %p119
      %s121 = ssub.s32 %s36, %s43
      %p122 = scmp.eq.s32.totalorder %s121, 0
      %s124 = sadd.s32 %s123, 1
      %s125 = scalar_select %p122, %s123, %s124
      %p128 = pneg %p122
      %p129 = scmp.eq.s32.totalorder %s28, 1
      %p130 = por %p128, %p129
      %p131 = scmp.ne.s32.totalorder %s123, %s126
      %p132 = scmp.eq.s32.totalorder %s28, 0
      %p133 = por %p131, %p132
      %p134 = scmp.ne.s32.totalorder %s123, %s126
      %p135 = scmp.eq.s32.totalorder %s33, 1
      %p136 = por %p134, %p135
      %p137 = scmp.ne.s32.totalorder %s126, %s127
      %p138 = scmp.eq.s32.totalorder %s33, 0
      %p139 = por %p137, %p138
      %p140 = scmp.ne.s32.totalorder %s126, %s127
      %p141 = scmp.eq.s32.totalorder %s34, 1
      %p142 = por %p140, %p141
      %p144 = scmp.ne.s32.totalorder %s127, %s143
      %p145 = scmp.eq.s32.totalorder %s34, 0
      %p146 = por %p144, %p145
      %s147 = ssub.s32 %s36, %s43
      %p148 = scmp.eq.s32.totalorder %s147, 0
      %s150 = sadd.s32 %s149, 1
      %s151 = scalar_select %p148, %s149, %s150
      %p154 = pneg %p148
      %p155 = scmp.eq.s32.totalorder %s28, 1
      %p156 = por %p154, %p155
      %p157 = scmp.ne.s32.totalorder %s149, %s152
      %p158 = scmp.eq.s32.totalorder %s28, 0
      %p159 = por %p157, %p158
      %p160 = scmp.ne.s32.totalorder %s149, %s152
      %p161 = scmp.eq.s32.totalorder %s33, 1
      %p162 = por %p160, %p161
      %p163 = scmp.ne.s32.totalorder %s152, %s153
      %p164 = scmp.eq.s32.totalorder %s33, 0
      %p165 = por %p163, %p164
      %p166 = scmp.ne.s32.totalorder %s152, %s153
      %p167 = scmp.eq.s32.totalorder %s34, 1
      %p168 = por %p166, %p167
      %p170 = scmp.ne.s32.totalorder %s153, %s169
      %p171 = scmp.eq.s32.totalorder %s34, 0
      %p172 = por %p170, %p171
      %s173 = ssub.s32 %s36, %s43
      %p174 = scmp.eq.s32.totalorder %s173, 0
      %s176 = sadd.s32 %s175, 1
      %s177 = scalar_select %p174, %s175, %s176
      %p180 = pneg %p174
      %p181 = scmp.eq.s32.totalorder %s28, 1
      %p182 = por %p180, %p181
      %p183 = scmp.ne.s32.totalorder %s175, %s178
      %p184 = scmp.eq.s32.totalorder %s28, 0
      %p185 = por %p183, %p184
      %p186 = scmp.ne.s32.totalorder %s175, %s178
      %p187 = scmp.eq.s32.totalorder %s33, 1
      %p188 = por %p186, %p187
      %p189 = scmp.ne.s32.totalorder %s178, %s179
      %p190 = scmp.eq.s32.totalorder %s33, 0
      %p191 = por %p189, %p190
      %p192 = scmp.ne.s32.totalorder %s178, %s179
      %p193 = scmp.eq.s32.totalorder %s34, 1
      %p194 = por %p192, %p193
      %p196 = scmp.ne.s32.totalorder %s179, %s195
      %p197 = scmp.eq.s32.totalorder %s34, 0
      %p198 = por %p196, %p197
      %s199 = ssub.s32 %s36, %s43
      %p200 = scmp.eq.s32.totalorder %s199, 0
      %s202 = sadd.s32 %s201, 1
      %s203 = scalar_select %p200, %s201, %s202
      %p206 = pneg %p200
      %p207 = scmp.eq.s32.totalorder %s28, 1
      %p208 = por %p206, %p207
      %p209 = scmp.ne.s32.totalorder %s201, %s204
      %p210 = scmp.eq.s32.totalorder %s28, 0
      %p211 = por %p209, %p210
      %p212 = scmp.ne.s32.totalorder %s201, %s204
      %p213 = scmp.eq.s32.totalorder %s33, 1
      %p214 = por %p212, %p213
      %p215 = scmp.ne.s32.totalorder %s204, %s205
      %p216 = scmp.eq.s32.totalorder %s33, 0
      %p217 = por %p215, %p216
      %p218 = scmp.ne.s32.totalorder %s204, %s205
      %p219 = scmp.eq.s32.totalorder %s34, 1
      %p220 = por %p218, %p219
      %p222 = scmp.ne.s32.totalorder %s205, %s221
      %p223 = scmp.eq.s32.totalorder %s34, 0
      %p224 = por %p222, %p223
      %s225 = ssub.s32 %s36, %s43
      %p226 = scmp.eq.s32.totalorder %s225, 0
      %s228 = sadd.s32 %s227, 1
      %s229 = scalar_select %p226, %s227, %s228
      %p232 = pneg %p226
      %p233 = scmp.eq.s32.totalorder %s28, 1
      %p234 = por %p232, %p233
      %p235 = scmp.ne.s32.totalorder %s227, %s230
      %p236 = scmp.eq.s32.totalorder %s28, 0
      %p237 = por %p235, %p236
      %p238 = scmp.ne.s32.totalorder %s227, %s230
      %p239 = scmp.eq.s32.totalorder %s33, 1
      %p240 = por %p238, %p239
      %p241 = scmp.ne.s32.totalorder %s230, %s231
      %p242 = scmp.eq.s32.totalorder %s33, 0
      %p243 = por %p241, %p242
      %p244 = scmp.ne.s32.totalorder %s230, %s231
      %p245 = scmp.eq.s32.totalorder %s34, 1
      %p246 = por %p244, %p245
      %p248 = scmp.ne.s32.totalorder %s231, %s247
      %p249 = scmp.eq.s32.totalorder %s34, 0
      %p250 = por %p248, %p249
      %s251 = ssub.s32 %s36, %s43
      %p252 = scmp.eq.s32.totalorder %s251, 0
      %s254 = sadd.s32 %s253, 1
      %s255 = scalar_select %p252, %s253, %s254
      %p258 = pneg %p252
      %p259 = scmp.eq.s32.totalorder %s28, 1
      %p260 = por %p258, %p259
      %p261 = scmp.ne.s32.totalorder %s253, %s256
      %p262 = scmp.eq.s32.totalorder %s28, 0
      %p263 = por %p261, %p262
      %p264 = scmp.ne.s32.totalorder %s253, %s256
      %p265 = scmp.eq.s32.totalorder %s33, 1
      %p266 = por %p264, %p265
      %p267 = scmp.ne.s32.totalorder %s256, %s257
      %p268 = scmp.eq.s32.totalorder %s33, 0
      %p269 = por %p267, %p268
      %p270 = scmp.ne.s32.totalorder %s256, %s257
      %p271 = scmp.eq.s32.totalorder %s34, 1
      %p272 = por %p270, %p271
      %p274 = scmp.ne.s32.totalorder %s257, %s273
      %p275 = scmp.eq.s32.totalorder %s34, 0
      %p276 = por %p274, %p275
      %s277 = ssub.s32 %s36, %s43
      %p278 = scmp.eq.s32.totalorder %s277, 0
      %s280 = sadd.s32 %s279, 1
      %s281 = scalar_select %p278, %s279, %s280
      %p284 = pneg %p278
      %p285 = scmp.eq.s32.totalorder %s28, 1
      %p286 = por %p284, %p285
      %p287 = scmp.ne.s32.totalorder %s279, %s282
      %p288 = scmp.eq.s32.totalorder %s28, 0
      %p289 = por %p287, %p288
      %p290 = scmp.ne.s32.totalorder %s279, %s282
      %p291 = scmp.eq.s32.totalorder %s33, 1
      %p292 = por %p290, %p291
      %p293 = scmp.ne.s32.totalorder %s282, %s283
      %p294 = scmp.eq.s32.totalorder %s33, 0
      %p295 = por %p293, %p294
      %p296 = scmp.ne.s32.totalorder %s282, %s283
      %p297 = scmp.eq.s32.totalorder %s34, 1
      %p298 = por %p296, %p297
      %p300 = scmp.ne.s32.totalorder %s283, %s299
      %p301 = scmp.eq.s32.totalorder %s34, 0
      %p302 = por %p300, %p301
      %s303 = ssub.s32 %s36, %s43
      %p304 = scmp.eq.s32.totalorder %s303, 0
      %s306 = sadd.s32 %s305, 1
      %s307 = scalar_select %p304, %s305, %s306
      %p310 = pneg %p304
      %p311 = scmp.eq.s32.totalorder %s28, 1
      %p312 = por %p310, %p311
      %p313 = scmp.ne.s32.totalorder %s305, %s308
      %p314 = scmp.eq.s32.totalorder %s28, 0
      %p315 = por %p313, %p314
      %p316 = scmp.ne.s32.totalorder %s305, %s308
      %p317 = scmp.eq.s32.totalorder %s33, 1
      %p318 = por %p316, %p317
      %p319 = scmp.ne.s32.totalorder %s308, %s309
      %p320 = scmp.eq.s32.totalorder %s33, 0
      %p321 = por %p319, %p320
      %p322 = scmp.ne.s32.totalorder %s308, %s309
      %p323 = scmp.eq.s32.totalorder %s34, 1
      %p324 = por %p322, %p323
      %p326 = scmp.ne.s32.totalorder %s309, %s325
      %p327 = scmp.eq.s32.totalorder %s34, 0
      %p328 = por %p326, %p327
      %s329 = ssub.s32 %s36, %s43
      %p330 = scmp.eq.s32.totalorder %s329, 0
      %s332 = sadd.s32 %s331, 1
      %s333 = scalar_select %p330, %s331, %s332
      %p336 = pneg %p330
      %p337 = scmp.eq.s32.totalorder %s28, 1
      %p338 = por %p336, %p337
      %p339 = scmp.ne.s32.totalorder %s331, %s334
      %p340 = scmp.eq.s32.totalorder %s28, 0
      %p341 = por %p339, %p340
      %p342 = scmp.ne.s32.totalorder %s331, %s334
      %p343 = scmp.eq.s32.totalorder %s33, 1
      %p344 = por %p342, %p343
      %p345 = scmp.ne.s32.totalorder %s334, %s335
      %p346 = scmp.eq.s32.totalorder %s33, 0
      %p347 = por %p345, %p346
      %p348 = scmp.ne.s32.totalorder %s334, %s335
      %p349 = scmp.eq.s32.totalorder %s34, 1
      %p350 = por %p348, %p349
      %p352 = scmp.ne.s32.totalorder %s335, %s351
      %p353 = scmp.eq.s32.totalorder %s34, 0
      %p354 = por %p352, %p353
      %s355 = ssub.s32 %s36, %s43
      %p356 = scmp.eq.s32.totalorder %s355, 0
      %s358 = sadd.s32 %s357, 1
      %s359 = scalar_select %p356, %s357, %s358
      %p362 = pneg %p356
      %p363 = scmp.eq.s32.totalorder %s28, 1
      %p364 = por %p362, %p363
      %p365 = scmp.ne.s32.totalorder %s357, %s360
      %p366 = scmp.eq.s32.totalorder %s28, 0
      %p367 = por %p365, %p366
      %p368 = scmp.ne.s32.totalorder %s357, %s360
      %p369 = scmp.eq.s32.totalorder %s33, 1
      %p370 = por %p368, %p369
      %p371 = scmp.ne.s32.totalorder %s360, %s361
      %p372 = scmp.eq.s32.totalorder %s33, 0
      %p373 = por %p371, %p372
      %p374 = scmp.ne.s32.totalorder %s360, %s361
      %p375 = scmp.eq.s32.totalorder %s34, 1
      %p376 = por %p374, %p375
      %p378 = scmp.ne.s32.totalorder %s361, %s377
      %p379 = scmp.eq.s32.totalorder %s34, 0
      %p380 = por %p378, %p379
      %s381 = ssub.s32 %s36, %s43
      %p382 = scmp.eq.s32.totalorder %s381, 0
      %s384 = sadd.s32 %s383, 1
      %s385 = scalar_select %p382, %s383, %s384
      %p388 = pneg %p382
      %p389 = scmp.eq.s32.totalorder %s28, 1
      %p390 = por %p388, %p389
      %p391 = scmp.ne.s32.totalorder %s383, %s386
      %p392 = scmp.eq.s32.totalorder %s28, 0
      %p393 = por %p391, %p392
      %p394 = scmp.ne.s32.totalorder %s383, %s386
      %p395 = scmp.eq.s32.totalorder %s33, 1
      %p396 = por %p394, %p395
      %p397 = scmp.ne.s32.totalorder %s386, %s387
      %p398 = scmp.eq.s32.totalorder %s33, 0
      %p399 = por %p397, %p398
      %p400 = scmp.ne.s32.totalorder %s386, %s387
      %p401 = scmp.eq.s32.totalorder %s34, 1
      %p402 = por %p400, %p401
      %p404 = scmp.ne.s32.totalorder %s387, %s403
      %p405 = scmp.eq.s32.totalorder %s34, 0
      %p406 = por %p404, %p405
      %s408 = sadd.s32 %s407, 1
      %p411 = scmp.eq.s32.totalorder %s28, 1
      %p412 = scmp.ne.s32.totalorder %s407, %s409
      %p413 = scmp.eq.s32.totalorder %s28, 0
      %p414 = por %p412, %p413
      %p415 = scmp.ne.s32.totalorder %s407, %s409
      %p416 = scmp.eq.s32.totalorder %s33, 1
      %p417 = por %p415, %p416
      %p418 = scmp.ne.s32.totalorder %s409, %s410
      %p419 = scmp.eq.s32.totalorder %s33, 0
      %p420 = por %p418, %p419
      %p421 = scmp.ne.s32.totalorder %s409, %s410
      %p422 = scmp.eq.s32.totalorder %s34, 1
      %p423 = por %p421, %p422
      %p425 = scmp.ne.s32.totalorder %s410, %s424
      %p426 = scmp.eq.s32.totalorder %s34, 0
      %p427 = por %p425, %p426
      %s429 = sadd.s32 %s428, 1
      %p432 = scmp.eq.s32.totalorder %s28, 1
      %p433 = scmp.ne.s32.totalorder %s428, %s430
      %p434 = scmp.eq.s32.totalorder %s28, 0
      %p435 = por %p433, %p434
      %p436 = scmp.ne.s32.totalorder %s428, %s430
      %p437 = scmp.eq.s32.totalorder %s33, 1
      %p438 = por %p436, %p437
      %p439 = scmp.ne.s32.totalorder %s430, %s431
      %p440 = scmp.eq.s32.totalorder %s33, 0
      %p441 = por %p439, %p440
      %p442 = scmp.ne.s32.totalorder %s430, %s431
      %p443 = scmp.eq.s32.totalorder %s34, 1
      %p444 = por %p442, %p443
      %p446 = scmp.ne.s32.totalorder %s431, %s445
      %p447 = scmp.eq.s32.totalorder %s34, 0
      %p448 = por %p446, %p447
      %s450 = sadd.s32 %s449, 1
      %p453 = scmp.eq.s32.totalorder %s28, 1
      %p454 = scmp.ne.s32.totalorder %s449, %s451
      %p455 = scmp.eq.s32.totalorder %s28, 0
      %p456 = por %p454, %p455
      %p457 = scmp.ne.s32.totalorder %s449, %s451
      %p458 = scmp.eq.s32.totalorder %s33, 1
      %p459 = por %p457, %p458
      %p460 = scmp.ne.s32.totalorder %s451, %s452
      %p461 = scmp.eq.s32.totalorder %s33, 0
      %p462 = por %p460, %p461
      %p463 = scmp.ne.s32.totalorder %s451, %s452
      %p464 = scmp.eq.s32.totalorder %s34, 1
      %p465 = por %p463, %p464
      %p467 = scmp.ne.s32.totalorder %s452, %s466
      %p468 = scmp.eq.s32.totalorder %s34, 0
      %p469 = por %p467, %p468
      %s471 = sadd.s32 %s470, 1
      %p474 = scmp.eq.s32.totalorder %s28, 1
      %p475 = scmp.ne.s32.totalorder %s470, %s472
      %p476 = scmp.eq.s32.totalorder %s28, 0
      %p477 = por %p475, %p476
      %p478 = scmp.ne.s32.totalorder %s470, %s472
      %p479 = scmp.eq.s32.totalorder %s33, 1
      %p480 = por %p478, %p479
      %p481 = scmp.ne.s32.totalorder %s472, %s473
      %p482 = scmp.eq.s32.totalorder %s33, 0
      %p483 = por %p481, %p482
      %p484 = scmp.ne.s32.totalorder %s472, %s473
      %p485 = scmp.eq.s32.totalorder %s34, 1
      %p486 = por %p484, %p485
      %p488 = scmp.ne.s32.totalorder %s473, %s487
      %p489 = scmp.eq.s32.totalorder %s34, 0
      %p490 = por %p488, %p489
      %s491 = ssub.s32 %s35, %s47
      %p492 = scmp.eq.s32.totalorder %s491, 0
      %s494 = sadd.s32 %s493, 1
      %s495 = scalar_select %p492, %s493, %s494
      %p498 = pneg %p492
      %p499 = scmp.eq.s32.totalorder %s28, 1
      %p500 = por %p498, %p499
      %p501 = scmp.ne.s32.totalorder %s493, %s496
      %p502 = scmp.eq.s32.totalorder %s28, 0
      %p503 = por %p501, %p502
      %p504 = scmp.ne.s32.totalorder %s493, %s496
      %p505 = scmp.eq.s32.totalorder %s33, 1
      %p506 = por %p504, %p505
      %p507 = scmp.ne.s32.totalorder %s496, %s497
      %p508 = scmp.eq.s32.totalorder %s33, 0
      %p509 = por %p507, %p508
      %p510 = scmp.ne.s32.totalorder %s496, %s497
      %p511 = scmp.eq.s32.totalorder %s34, 1
      %p512 = por %p510, %p511
      %p514 = scmp.ne.s32.totalorder %s497, %s513
      %p515 = scmp.eq.s32.totalorder %s34, 0
      %p516 = por %p514, %p515
      %s517 = ssub.s32 %s35, %s47
      %p518 = scmp.eq.s32.totalorder %s517, 0
      %s520 = sadd.s32 %s519, 1
      %s521 = scalar_select %p518, %s519, %s520
      %p524 = pneg %p518
      %p525 = scmp.eq.s32.totalorder %s28, 1
      %p526 = por %p524, %p525
      %p527 = scmp.ne.s32.totalorder %s519, %s522
      %p528 = scmp.eq.s32.totalorder %s28, 0
      %p529 = por %p527, %p528
      %p530 = scmp.ne.s32.totalorder %s519, %s522
      %p531 = scmp.eq.s32.totalorder %s33, 1
      %p532 = por %p530, %p531
      %p533 = scmp.ne.s32.totalorder %s522, %s523
      %p534 = scmp.eq.s32.totalorder %s33, 0
      %p535 = por %p533, %p534
      %p536 = scmp.ne.s32.totalorder %s522, %s523
      %p537 = scmp.eq.s32.totalorder %s34, 1
      %p538 = por %p536, %p537
      %p540 = scmp.ne.s32.totalorder %s523, %s539
      %p541 = scmp.eq.s32.totalorder %s34, 0
      %p542 = por %p540, %p541
      %p543 = scmp.le.s32.totalorder 1, %s28
      %p544 = scmp.lt.s32.totalorder %s28, 3
      %p545 = pnand %p543, %p544
      %p546 = pneg %p545
      // Predicated region
      $region9: #{transformer_pe_real_forward.1} parent=5 // pred_check
        _
      $region10: #{transformer_pe_real_forward.1} parent=5 // pred_check_branch
        %548 = sbr.rel (%p545) target = $region12
      $region11: #{transformer_pe_real_forward.1} parent=5 // pred_region
        %s549 = ssub.s32 %s28, 1
        // Predicated region
        $region13: #{transformer_pe_real_forward.1} parent=11 // pred_check
          %p550 = pneg %p66
        $region14: #{transformer_pe_real_forward.1} parent=11 // pred_check_branch
          %552 = sbr.rel (%p550) target = $region16
        $region15: #{transformer_pe_real_forward.1} parent=11 // pred_region
          %s553 = smul.u32 2, %s37
          %p554 = scmp.lt.s32.totalorder %s553, 1
          %s555 = scalar_select %p554, %s553, 1
          %s556 = smul.addr %s555, 8
          %s557 = scalar_lea.vmem %s0, %s556
          %s558 = smul.u32 2, %s37
        $region16: #{transformer_pe_real_forward.1} parent=11 // pred_fallthru
          _
        // Predicated region
        $region17: #{transformer_pe_real_forward.1} parent=11 // pred_check
          %p559 = pneg %p87
        $region18: #{transformer_pe_real_forward.1} parent=11 // pred_check_branch
          %561 = sbr.rel (%p559) target = $region20
        $region19: #{transformer_pe_real_forward.1} parent=11 // pred_region
          _
        $region20: #{transformer_pe_real_forward.1} parent=11 // pred_fallthru
          _
        // Predicated region
        $region21: #{transformer_pe_real_forward.1} parent=11 // pred_check
          %p562 = pneg %p420
        $region22: #{transformer_pe_real_forward.1} parent=11 // pred_check_branch
          %564 = sbr.rel (%p562) target = $region24
        $region23: #{transformer_pe_real_forward.1} parent=11 // pred_region
          _
        $region24: #{transformer_pe_real_forward.1} parent=11 // pred_fallthru
          _
        // Predicated region
        $region25: #{transformer_pe_real_forward.1} parent=11 // pred_check
          %p565 = pneg %p441
        $region26: #{transformer_pe_real_forward.1} parent=11 // pred_check_branch
          %567 = sbr.rel (%p565) target = $region28
        $region27: #{transformer_pe_real_forward.1} parent=11 // pred_region
          _
        $region28: #{transformer_pe_real_forward.1} parent=11 // pred_fallthru
          _
        // Predicated region
        $region29: #{transformer_pe_real_forward.1} parent=11 // pred_check
          %p568 = pneg %p462
        $region30: #{transformer_pe_real_forward.1} parent=11 // pred_check_branch
          %570 = sbr.rel (%p568) target = $region32
        $region31: #{transformer_pe_real_forward.1} parent=11 // pred_region
          _
        $region32: #{transformer_pe_real_forward.1} parent=11 // pred_fallthru
          _
        // Predicated region
        $region33: #{transformer_pe_real_forward.1} parent=11 // pred_check
          %p571 = pneg %p483
        $region34: #{transformer_pe_real_forward.1} parent=11 // pred_check_branch
          %573 = sbr.rel (%p571) target = $region36
        $region35: #{transformer_pe_real_forward.1} parent=11 // pred_region
          _
        $region36: #{transformer_pe_real_forward.1} parent=11 // pred_fallthru
          _
      $region12: #{transformer_pe_real_forward.1} parent=5 // pred_fallthru
        _
      %p574 = scmp.lt.s32.totalorder %s28, 2
      // Predicated region
      $region37: #{transformer_pe_real_forward.1} parent=5 // pred_check
        %p575 = pneg %p574
      $region38: #{transformer_pe_real_forward.1} parent=5 // pred_check_branch
        %577 = sbr.rel (%p575) target = $region40
      $region39: #{transformer_pe_real_forward.1} parent=5 // pred_region
        // Predicated region
        $region41: #{transformer_pe_real_forward.1} parent=39 // pred_check
          %p578 = pneg %p107
        $region42: #{transformer_pe_real_forward.1} parent=39 // pred_check_branch
          %580 = sbr.rel (%p578) target = $region44
        $region43: #{transformer_pe_real_forward.1} parent=39 // pred_region
          %p581 = scmp.lt.s32.totalorder %s36, 1
          %s582 = scalar_select %p581, %s36, 1
          %s583 = scalar_lea.vmem %s2, %s582
        $region44: #{transformer_pe_real_forward.1} parent=39 // pred_fallthru
          _
        // Predicated region
        $region45: #{transformer_pe_real_forward.1} parent=39 // pred_check
          %p584 = pneg %p133
        $region46: #{transformer_pe_real_forward.1} parent=39 // pred_check_branch
          %586 = sbr.rel (%p584) target = $region48
        $region47: #{transformer_pe_real_forward.1} parent=39 // pred_region
          %p587 = scmp.lt.s32.totalorder %s36, 1
          %s588 = scalar_select %p587, %s36, 1
          %s589 = scalar_lea.vmem %s3, %s588
        $region48: #{transformer_pe_real_forward.1} parent=39 // pred_fallthru
          _
        // Predicated region
        $region49: #{transformer_pe_real_forward.1} parent=39 // pred_check
          %p590 = pneg %p159
        $region50: #{transformer_pe_real_forward.1} parent=39 // pred_check_branch
          %592 = sbr.rel (%p590) target = $region52
        $region51: #{transformer_pe_real_forward.1} parent=39 // pred_region
          %p593 = scmp.lt.s32.totalorder %s36, 1
          %s594 = scalar_select %p593, %s36, 1
          %s595 = smul.addr %s594, 4
          %s596 = smul.addr %s595, 8
          %s597 = scalar_lea.vmem %s4, %s596
        $region52: #{transformer_pe_real_forward.1} parent=39 // pred_fallthru
          _
        // Predicated region
        $region53: #{transformer_pe_real_forward.1} parent=39 // pred_check
          %p598 = pneg %p185
        $region54: #{transformer_pe_real_forward.1} parent=39 // pred_check_branch
          %600 = sbr.rel (%p598) target = $region56
        $region55: #{transformer_pe_real_forward.1} parent=39 // pred_region
          %p601 = scmp.lt.s32.totalorder %s36, 1
          %s602 = scalar_select %p601, %s36, 1
          %s603 = scalar_lea.vmem %s5, %s602
        $region56: #{transformer_pe_real_forward.1} parent=39 // pred_fallthru
          _
        // Predicated region
        $region57: #{transformer_pe_real_forward.1} parent=39 // pred_check
          %p604 = pneg %p211
        $region58: #{transformer_pe_real_forward.1} parent=39 // pred_check_branch
          %606 = sbr.rel (%p604) target = $region60
        $region59: #{transformer_pe_real_forward.1} parent=39 // pred_region
          %p607 = scmp.lt.s32.totalorder %s36, 1
          %s608 = scalar_select %p607, %s36, 1
          %s609 = smul.addr %s608, 4
          %s610 = smul.addr %s609, 8
          %s611 = scalar_lea.vmem %s6, %s610
        $region60: #{transformer_pe_real_forward.1} parent=39 // pred_fallthru
          _
        // Predicated region
        $region61: #{transformer_pe_real_forward.1} parent=39 // pred_check
          %p612 = pneg %p237
        $region62: #{transformer_pe_real_forward.1} parent=39 // pred_check_branch
          %614 = sbr.rel (%p612) target = $region64
        $region63: #{transformer_pe_real_forward.1} parent=39 // pred_region
          %p615 = scmp.lt.s32.totalorder %s36, 1
          %s616 = scalar_select %p615, %s36, 1
          %s617 = scalar_lea.vmem %s7, %s616
        $region64: #{transformer_pe_real_forward.1} parent=39 // pred_fallthru
          _
        // Predicated region
        $region65: #{transformer_pe_real_forward.1} parent=39 // pred_check
          %p618 = pneg %p263
        $region66: #{transformer_pe_real_forward.1} parent=39 // pred_check_branch
          %620 = sbr.rel (%p618) target = $region68
        $region67: #{transformer_pe_real_forward.1} parent=39 // pred_region
          %p621 = scmp.lt.s32.totalorder %s36, 1
          %s622 = scalar_select %p621, %s36, 1
          %s623 = scalar_lea.vmem %s8, %s622
        $region68: #{transformer_pe_real_forward.1} parent=39 // pred_fallthru
          _
        // Predicated region
        $region69: #{transformer_pe_real_forward.1} parent=39 // pred_check
          %p624 = pneg %p289
        $region70: #{transformer_pe_real_forward.1} parent=39 // pred_check_branch
          %626 = sbr.rel (%p624) target = $region72
        $region71: #{transformer_pe_real_forward.1} parent=39 // pred_region
          %p627 = scmp.lt.s32.totalorder %s36, 1
          %s628 = scalar_select %p627, %s36, 1
          %s629 = scalar_lea.vmem %s9, %s628
        $region72: #{transformer_pe_real_forward.1} parent=39 // pred_fallthru
          _
        // Predicated region
        $region73: #{transformer_pe_real_forward.1} parent=39 // pred_check
          %p630 = pneg %p315
        $region74: #{transformer_pe_real_forward.1} parent=39 // pred_check_branch
          %632 = sbr.rel (%p630) target = $region76
        $region75: #{transformer_pe_real_forward.1} parent=39 // pred_region
          %p633 = scmp.lt.s32.totalorder %s36, 1
          %s634 = scalar_select %p633, %s36, 1
          %s635 = smul.addr %s634, 4
          %s636 = smul.addr %s635, 8
          %s637 = scalar_lea.vmem %s10, %s636
        $region76: #{transformer_pe_real_forward.1} parent=39 // pred_fallthru
          _
        // Predicated region
        $region77: #{transformer_pe_real_forward.1} parent=39 // pred_check
          %p638 = pneg %p341
        $region78: #{transformer_pe_real_forward.1} parent=39 // pred_check_branch
          %640 = sbr.rel (%p638) target = $region80
        $region79: #{transformer_pe_real_forward.1} parent=39 // pred_region
          %p641 = scmp.lt.s32.totalorder %s36, 1
          %s642 = scalar_select %p641, %s36, 1
          %s643 = scalar_lea.vmem %s11, %s642
        $region80: #{transformer_pe_real_forward.1} parent=39 // pred_fallthru
          _
        // Predicated region
        $region81: #{transformer_pe_real_forward.1} parent=39 // pred_check
          %p644 = pneg %p367
        $region82: #{transformer_pe_real_forward.1} parent=39 // pred_check_branch
          %646 = sbr.rel (%p644) target = $region84
        $region83: #{transformer_pe_real_forward.1} parent=39 // pred_region
          %p647 = scmp.lt.s32.totalorder %s36, 1
          %s648 = scalar_select %p647, %s36, 1
          %s649 = smul.addr %s648, 8
          %s650 = smul.addr %s649, 8
          %s651 = scalar_lea.vmem %s12, %s650
        $region84: #{transformer_pe_real_forward.1} parent=39 // pred_fallthru
          _
        // Predicated region
        $region85: #{transformer_pe_real_forward.1} parent=39 // pred_check
          %p652 = pneg %p393
        $region86: #{transformer_pe_real_forward.1} parent=39 // pred_check_branch
          %654 = sbr.rel (%p652) target = $region88
        $region87: #{transformer_pe_real_forward.1} parent=39 // pred_region
          %p655 = scmp.lt.s32.totalorder %s36, 1
          %s656 = scalar_select %p655, %s36, 1
          %s657 = scalar_lea.vmem %s13, %s656
        $region88: #{transformer_pe_real_forward.1} parent=39 // pred_fallthru
          _
      $region40: #{transformer_pe_real_forward.1} parent=5 // pred_fallthru
        _
      %p658 = scmp.le.s32.totalorder 1, %s28
      %p659 = scmp.lt.s32.totalorder %s28, 3
      %p660 = pnand %p658, %p659
      %p661 = pneg %p660
      // Predicated region
      $region89: #{transformer_pe_real_forward.1} parent=5 // pred_check
        _
      $region90: #{transformer_pe_real_forward.1} parent=5 // pred_check_branch
        %663 = sbr.rel (%p660) target = $region92
      $region91: #{transformer_pe_real_forward.1} parent=5 // pred_region
        %s664 = ssub.s32 %s28, 1
        %s665 = smul.u32 2, %s37
        %p666 = scmp.lt.s32.totalorder %s665, 1
        %s667 = scalar_select %p666, %s665, 1
        %s668 = smul.addr %s667, 8
        %s669 = scalar_lea.vmem %s0, %s668
        %p670 = pneg %p66
        %p671 = pneg %p63
        %p672 = pneg %p87
        %p673 = pneg %p84
        %p674 = scmp.lt.s32.totalorder %s38, 1
        %s675 = scalar_select %p674, %s38, 1
        %s676 = scalar_lea.vmem %s2, %s675
        %p677 = pneg %p113
        %p678 = pneg %p110
        %p679 = scmp.lt.s32.totalorder %s38, 1
        %s680 = scalar_select %p679, %s38, 1
        %s681 = scalar_lea.vmem %s3, %s680
        %p682 = pneg %p139
        %p683 = pneg %p136
        %p684 = scmp.lt.s32.totalorder %s38, 1
        %s685 = scalar_select %p684, %s38, 1
        %s686 = smul.addr %s685, 4
        %s687 = smul.addr %s686, 8
        %s688 = scalar_lea.vmem %s4, %s687
        %p689 = pneg %p165
        %p690 = pneg %p162
        %p691 = scmp.lt.s32.totalorder %s38, 1
        %s692 = scalar_select %p691, %s38, 1
        %s693 = scalar_lea.vmem %s5, %s692
        %p694 = pneg %p191
        %p695 = pneg %p188
        %p696 = scmp.lt.s32.totalorder %s38, 1
        %s697 = scalar_select %p696, %s38, 1
        %s698 = smul.addr %s697, 4
        %s699 = smul.addr %s698, 8
        %s700 = scalar_lea.vmem %s6, %s699
        %p701 = pneg %p217
        %p702 = pneg %p214
        %p703 = scmp.lt.s32.totalorder %s38, 1
        %s704 = scalar_select %p703, %s38, 1
        %s705 = scalar_lea.vmem %s7, %s704
        %p706 = pneg %p243
        %p707 = pneg %p240
        %p708 = scmp.lt.s32.totalorder %s38, 1
        %s709 = scalar_select %p708, %s38, 1
        %s710 = scalar_lea.vmem %s8, %s709
        %p711 = pneg %p269
        %p712 = pneg %p266
        %p713 = scmp.lt.s32.totalorder %s38, 1
        %s714 = scalar_select %p713, %s38, 1
        %s715 = scalar_lea.vmem %s9, %s714
        %p716 = pneg %p295
        %p717 = pneg %p292
        %p718 = scmp.lt.s32.totalorder %s38, 1
        %s719 = scalar_select %p718, %s38, 1
        %s720 = smul.addr %s719, 4
        %s721 = smul.addr %s720, 8
        %s722 = scalar_lea.vmem %s10, %s721
        %p723 = pneg %p321
        %p724 = pneg %p318
        %p725 = scmp.lt.s32.totalorder %s38, 1
        %s726 = scalar_select %p725, %s38, 1
        %s727 = scalar_lea.vmem %s11, %s726
        %p728 = pneg %p347
        %p729 = pneg %p344
        %p730 = scmp.lt.s32.totalorder %s38, 1
        %s731 = scalar_select %p730, %s38, 1
        %s732 = smul.addr %s731, 8
        %s733 = smul.addr %s732, 8
        %s734 = scalar_lea.vmem %s12, %s733
        %p735 = pneg %p373
        %p736 = pneg %p370
        %p737 = scmp.lt.s32.totalorder %s38, 1
        %s738 = scalar_select %p737, %s38, 1
        %s739 = scalar_lea.vmem %s13, %s738
        %p740 = pneg %p399
        %p741 = pneg %p396
        %p742 = pneg %p420
        %p743 = pneg %p417
        %p744 = pneg %p441
        %p745 = pneg %p438
        %p746 = pneg %p462
        %p747 = pneg %p459
        %p748 = pneg %p483
        %p749 = pneg %p480
        %p750 = pneg %p509
        %p751 = pneg %p506
        %p752 = pneg %p535
        %p753 = pneg %p532
        %s754 = smul.u32 2, %s37
        %p755 = scmp.lt.s32.totalorder %s754, 1
        %s756 = scalar_select %p755, %s754, 1
        %s757 = smul.addr %s756, 8
        %s758 = scalar_lea.vmem %s0, %s757
        %s759 = smul.u32 2, %s37
        %p760 = scmp.lt.s32.totalorder %s38, 1
        %s761 = scalar_select %p760, %s38, 1
        %s762 = scalar_lea.vmem %s2, %s761
        %p763 = scmp.lt.s32.totalorder %s38, 1
        %s764 = scalar_select %p763, %s38, 1
        %s765 = scalar_lea.vmem %s3, %s764
        %p766 = scmp.lt.s32.totalorder %s38, 1
        %s767 = scalar_select %p766, %s38, 1
        %s768 = smul.addr %s767, 4
        %s769 = smul.addr %s768, 8
        %s770 = scalar_lea.vmem %s4, %s769
        %p771 = scmp.lt.s32.totalorder %s38, 1
        %s772 = scalar_select %p771, %s38, 1
        %s773 = scalar_lea.vmem %s5, %s772
        %p774 = scmp.lt.s32.totalorder %s38, 1
        %s775 = scalar_select %p774, %s38, 1
        %s776 = smul.addr %s775, 4
        %s777 = smul.addr %s776, 8
        %s778 = scalar_lea.vmem %s6, %s777
        %p779 = scmp.lt.s32.totalorder %s38, 1
        %s780 = scalar_select %p779, %s38, 1
        %s781 = scalar_lea.vmem %s7, %s780
        %p782 = scmp.lt.s32.totalorder %s38, 1
        %s783 = scalar_select %p782, %s38, 1
        %s784 = scalar_lea.vmem %s8, %s783
        %p785 = scmp.lt.s32.totalorder %s38, 1
        %s786 = scalar_select %p785, %s38, 1
        %s787 = scalar_lea.vmem %s9, %s786
        %p788 = scmp.lt.s32.totalorder %s38, 1
        %s789 = scalar_select %p788, %s38, 1
        %s790 = smul.addr %s789, 4
        %s791 = smul.addr %s790, 8
        %s792 = scalar_lea.vmem %s10, %s791
        %p793 = scmp.lt.s32.totalorder %s38, 1
        %s794 = scalar_select %p793, %s38, 1
        %s795 = scalar_lea.vmem %s11, %s794
        %p796 = scmp.lt.s32.totalorder %s38, 1
        %s797 = scalar_select %p796, %s38, 1
        %s798 = smul.addr %s797, 8
        %s799 = smul.addr %s798, 8
        %s800 = scalar_lea.vmem %s12, %s799
        %p801 = scmp.lt.s32.totalorder %s38, 1
        %s802 = scalar_select %p801, %s38, 1
        %s803 = scalar_lea.vmem %s13, %s802
        %p804 = scmp.eq.s32.totalorder %s38, 0
        // Predicated region
        $region93: #{transformer_pe_real_forward.1} parent=91 // pred_check
          %p805 = pneg %p804
        $region94: #{transformer_pe_real_forward.1} parent=91 // pred_check_branch
          %807 = sbr.rel (%p805) target = $region96
        $region95: #{transformer_pe_real_forward.1} parent=91 // pred_region
          %v808 = vld [vmem:[%s758] sm:$0xff]
          %v809 = vld [vmem:[%s758 + $0x8] sm:$0xff]
          %v810 = vld [vmem:[%s1] sm:$0xff]
          %v811 = vadd.f32 %v808, %v810
          %v812 = vadd.f32 %v809, %v810
          %vm813 = vcmask 261120
          %814 = vst.msk [vmem:[#allocation2] sm:$0xff] %vm813, %v811
          %815 = vst.msk [vmem:[#allocation2 + $0x8] sm:$0xff] %vm813, %v812
        $region96: #{transformer_pe_real_forward.1} parent=91 // pred_fallthru
          _
        %v816 = vld [vmem:[#allocation2] sm:$0xff]
        %v817 = vld [vmem:[#allocation2 + $0x8] sm:$0xff]
        %v818 = vld [vmem:[%s762] sm:$0x1]
        %v819 = vld [vmem:[%s765] sm:$0x1]
        %vm820 = vcmask 261120
        %v821 = vsel %vm820, %v816, 0.0
        %822 = vadd.xlane.f32.xlu0 %v821
        %v823 = vpop.xlane.xlu0 %822
        %v824 = vsel %vm820, %v817, 0.0
        %825 = vadd.xlane.f32.xlu0 %v824
        %v826 = vpop.xlane.xlu0 %825
        %v827 = vrcp.pop 32.0
        %v828 = vmul.f32 %v823, %v827
        %v829 = vmul.f32 %v826, %v827
        %v830 = vsub.f32 %v816, %v828
        %v831 = vsub.f32 %v817, %v829
        %v832 = vmul.f32 %v830, %v830
        %v833 = vmul.f32 %v831, %v831
        %v834 = vsel %vm820, %v832, 0.0
        %835 = vadd.xlane.f32.xlu0 %v834
        %v836 = vpop.xlane.xlu0 %835
        %v837 = vsel %vm820, %v833, 0.0
        %838 = vadd.xlane.f32.xlu0 %v837
        %v839 = vpop.xlane.xlu0 %838
        %v840 = vrcp.pop 31.0
        %v841 = vmul.f32 %v836, %v840
        %v842 = vmul.f32 %v839, %v840
        %v843 = vrsqrt.pop %v841
        %v844 = vmul.f32 %v841, %v843
        %vm845 = vcmp.eq.f32.partialorder %v841, inf
        %v846 = vsel %vm845, %v841, %v844
        %vm847 = vcmp.eq.f32.partialorder %v841, 0.0
        %v848 = vand.u32 %v841, 2147483648
        %v849 = vsel %vm847, %v848, %v846
        %v850 = vrsqrt.pop %v842
        %v851 = vmul.f32 %v842, %v850
        %vm852 = vcmp.eq.f32.partialorder %v842, inf
        %v853 = vsel %vm852, %v842, %v851
        %vm854 = vcmp.eq.f32.partialorder %v842, 0.0
        %v855 = vand.u32 %v842, 2147483648
        %v856 = vsel %vm854, %v855, %v853
        %v858 = vlaneseq
        %v859 = vshrl.u32 %v858, 7
        %v860 = vsub.s32 0, %v859
        %v861 = vrot.slane %v818, %v860
        %v863 = vmul.f32 %v861, %v830
        %v864 = vmul.f32 %v861, %v831
        %v865 = vadd.f32 %v849, 1e-06
        %v866 = vadd.f32 %v856, 1e-06
        %v867 = vrcp.pop %v865
        %v868 = vmul.f32 %v863, %v867
        %v869 = vrcp.pop %v866
        %v870 = vmul.f32 %v864, %v869
        %v872 = vlaneseq
        %v873 = vshrl.u32 %v872, 7
        %v874 = vsub.s32 0, %v873
        %v875 = vrot.slane %v819, %v874
        %v877 = vadd.f32 %v868, %v875
        %v878 = vadd.f32 %v870, %v875
        %v879 = vld [vmem:[%s770] sm:$0xff]
        %v880 = vld [vmem:[%s770 + $0x8] sm:$0xff]
        %v881 = vld [vmem:[%s770 + $0x10] sm:$0xff]
        %v882 = vld [vmem:[%s770 + $0x18] sm:$0xff]
        %v883 = vld [vmem:[%s773] sm:$0x1]
        %v885 = vlaneseq
        %v886 = vshrl.u32 %v885, 7
        %v887 = vsub.s32 0, %v886
        %v888 = vrot.slane %v883, %v887
        %v891 = vsel %vm820, %v877, 0
        %v894 = vsel %vm820, %v878, 0
        %896 = vmatprep.subr.mxu0 0.0
        %897 = vmatpush1.msra.mxu0 %v879
        %898 = vmatprep.subr.mxu0 0.0
        %899 = vmatpush1.msra.mxu0 %v880
        %900 = vmatprep.subr.mxu0 0.0
        %901 = vmatpush1.msra.mxu0 %v881
        %902 = vmatprep.subr.mxu0 0.0
        %903 = vmatpush1.msra.mxu0 %v882
        %904 = vmatprep.subr.mxu0 0.0
        %905 = vmatpush1.msra.mxu0 0.0
        %906 = vmatprep.subr.mxu0 0.0
        %907 = vmatpush1.msra.mxu0 0.0
        %908 = vmatprep.subr.mxu0 0.0
        %909 = vmatpush1.msra.mxu0 0.0
        %910 = vmatprep.subr.mxu0 0.0
        %911 = vmatpush1.msra.mxu0 0.0
        %912 = vmatprep.subr.mxu0 0.0
        %913 = vmatpush1.msra.mxu0 0.0
        %914 = vmatprep.subr.mxu0 0.0
        %915 = vmatpush1.msra.mxu0 0.0
        %916 = vmatprep.subr.mxu0 0.0
        %917 = vmatpush1.msra.mxu0 0.0
        %918 = vmatprep.subr.mxu0 0.0
        %919 = vmatpush1.msra.mxu0 0.0
        %920 = vmatprep.subr.mxu0 0.0
        %921 = vmatpush1.msra.mxu0 0.0
        %922 = vmatprep.subr.mxu0 0.0
        %923 = vmatpush1.msra.mxu0 0.0
        %924 = vmatprep.subr.mxu0 0.0
        %925 = vmatpush1.msra.mxu0 0.0
        %926 = vmatprep.subr.mxu0 0.0
        %927 = vmatpush1.msra.mxu0 0.0
        %928 = vmatprep.subr.mxu0 0.0
        %929 = vmatpush1.msra.mxu0 0.0
        %930 = vmatprep.subr.mxu0 0.0
        %931 = vmatpush1.msra.mxu0 0.0
        %932 = vmatprep.subr.mxu0 0.0
        %933 = vmatpush1.msra.mxu0 0.0
        %934 = vmatprep.subr.mxu0 0.0
        %935 = vmatpush1.msra.mxu0 0.0
        %936 = vmatprep.subr.mxu0 0.0
        %937 = vmatpush1.msra.mxu0 0.0
        %938 = vmatprep.subr.mxu0 0.0
        %939 = vmatpush1.msra.mxu0 0.0
        %940 = vmatprep.subr.mxu0 0.0
        %941 = vmatpush1.msra.mxu0 0.0
        %942 = vmatprep.subr.mxu0 0.0
        %943 = vmatpush1.msra.mxu0 0.0
        %944 = vmatprep.subr.mxu0 0.0
        %945 = vmatpush1.msra.mxu0 0.0
        %946 = vmatprep.subr.mxu0 0.0
        %947 = vmatpush1.msra.mxu0 0.0
        %948 = vmatprep.subr.mxu0 0.0
        %949 = vmatpush1.msra.mxu0 0.0
        %950 = vmatprep.subr.mxu0 0.0
        %951 = vmatpush1.msra.mxu0 0.0
        %952 = vmatprep.subr.mxu0 0.0
        %953 = vmatpush1.msra.mxu0 0.0
        %954 = vmatprep.subr.mxu0 0.0
        %955 = vmatpush1.msra.mxu0 0.0
        %956 = vmatprep.subr.mxu0 0.0
        %957 = vmatpush1.msra.mxu0 0.0
        %958 = vmatprep.subr.mxu0 0.0
        %959 = vmatpush1.msra.mxu0 0.0
        %960 = vmatprep.mubr.f32.mxu0 0.0
        %961 = vmatmul.mubr.f32.gmra.mrb[0].mxu0 %v891
        %v962 = vpop.f32.mrb[0].mxu0
        %v963 = vadd.f32 %v888, %v962
        %v964 = vpop.f32.mrb[0].mxu0
        %965 = vmatprep.mubr.f32.mxu0 0.0
        %966 = vmatmul.mubr.f32.gmra.mrb[0].mxu0 %v894
        %v967 = vpop.f32.mrb[0].mxu0
        %v968 = vadd.f32 %v888, %v967
        %v969 = vpop.f32.mrb[0].mxu0
        %970 = vdwg.mxu0
        %972 = vrot.lane.b32.xlu0 %v963, 96
        %v973 = vpop.permute.xlu0 %972
        %vm974 = vcmask 64512
        %v975 = vsel %vm974, %v963, 0
        %v977 = vsel %vm974, %v973, 0
        %979 = vmatprep.subr.mxu0 0.0
        %980 = vmatpush1.xpose.msra.mxu0 %v977
        %981 = vmatprep.subr.mxu0 0.0
        %982 = vmatpush1.xpose.msra.mxu0 0.0
        %983 = vmatprep.subr.mxu0 0.0
        %984 = vmatpush1.xpose.msra.mxu0 0.0
        %985 = vmatprep.subr.mxu0 0.0
        %986 = vmatpush1.xpose.msra.mxu0 0.0
        %987 = vmatprep.subr.mxu0 0.0
        %988 = vmatpush1.xpose.msra.mxu0 0.0
        %989 = vmatprep.subr.mxu0 0.0
        %990 = vmatpush1.xpose.msra.mxu0 0.0
        %991 = vmatprep.subr.mxu0 0.0
        %992 = vmatpush1.xpose.msra.mxu0 0.0
        %993 = vmatprep.subr.mxu0 0.0
        %994 = vmatpush1.xpose.msra.mxu0 0.0
        %995 = vmatprep.subr.mxu0 0.0
        %996 = vmatpush1.xpose.msra.mxu0 0.0
        %997 = vmatprep.subr.mxu0 0.0
        %998 = vmatpush1.xpose.msra.mxu0 0.0
        %999 = vmatprep.subr.mxu0 0.0
        %1000 = vmatpush1.xpose.msra.mxu0 0.0
        %1001 = vmatprep.subr.mxu0 0.0
        %1002 = vmatpush1.xpose.msra.mxu0 0.0
        %1003 = vmatprep.subr.mxu0 0.0
        %1004 = vmatpush1.xpose.msra.mxu0 0.0
        %1005 = vmatprep.subr.mxu0 0.0
        %1006 = vmatpush1.xpose.msra.mxu0 0.0
        %1007 = vmatprep.subr.mxu0 0.0
        %1008 = vmatpush1.xpose.msra.mxu0 0.0
        %1009 = vmatprep.subr.mxu0 0.0
        %1010 = vmatpush1.xpose.msra.mxu0 0.0
        %1011 = vmatprep.subr.mxu0 0.0
        %1012 = vmatpush1.xpose.msra.mxu0 0.0
        %1013 = vmatprep.subr.mxu0 0.0
        %1014 = vmatpush1.xpose.msra.mxu0 0.0
        %1015 = vmatprep.subr.mxu0 0.0
        %1016 = vmatpush1.xpose.msra.mxu0 0.0
        %1017 = vmatprep.subr.mxu0 0.0
        %1018 = vmatpush1.xpose.msra.mxu0 0.0
        %1019 = vmatprep.subr.mxu0 0.0
        %1020 = vmatpush1.xpose.msra.mxu0 0.0
        %1021 = vmatprep.subr.mxu0 0.0
        %1022 = vmatpush1.xpose.msra.mxu0 0.0
        %1023 = vmatprep.subr.mxu0 0.0
        %1024 = vmatpush1.xpose.msra.mxu0 0.0
        %1025 = vmatprep.subr.mxu0 0.0
        %1026 = vmatpush1.xpose.msra.mxu0 0.0
        %1027 = vmatprep.subr.mxu0 0.0
        %1028 = vmatpush1.xpose.msra.mxu0 0.0
        %1029 = vmatprep.subr.mxu0 0.0
        %1030 = vmatpush1.xpose.msra.mxu0 0.0
        %1031 = vmatprep.subr.mxu0 0.0
        %1032 = vmatpush1.xpose.msra.mxu0 0.0
        %1033 = vmatprep.subr.mxu0 0.0
        %1034 = vmatpush1.xpose.msra.mxu0 0.0
        %1035 = vmatprep.subr.mxu0 0.0
        %1036 = vmatpush1.xpose.msra.mxu0 0.0
        %1037 = vmatprep.subr.mxu0 0.0
        %1038 = vmatpush1.xpose.msra.mxu0 0.0
        %1039 = vmatprep.subr.mxu0 0.0
        %1040 = vmatpush1.xpose.msra.mxu0 0.0
        %1041 = vmatprep.subr.mxu0 0.0
        %1042 = vmatpush1.xpose.msra.mxu0 0.0
        %1043 = vmatprep.mubr.f32.mxu0 0.0
        %1044 = vmatmul.mubr.f32.gmra.mrb[0].mxu0 %v975
        %v1045 = vpop.f32.mrb[0].mxu0
        %v1046 = vadd.f32 0.0, %v1045
        %v1047 = vpop.f32.mrb[0].mxu0
        %1048 = vdwg.mxu0
        %1050 = vrot.lane.b32.xlu0 %v968, 96
        %v1051 = vpop.permute.xlu0 %1050
        %v1052 = vsel %vm974, %v968, 0
        %v1054 = vsel %vm974, %v1051, 0
        %1056 = vmatprep.subr.mxu0 0.0
        %1057 = vmatpush1.xpose.msra.mxu0 %v1054
        %1058 = vmatprep.subr.mxu0 0.0
        %1059 = vmatpush1.xpose.msra.mxu0 0.0
        %1060 = vmatprep.subr.mxu0 0.0
        %1061 = vmatpush1.xpose.msra.mxu0 0.0
        %1062 = vmatprep.subr.mxu0 0.0
        %1063 = vmatpush1.xpose.msra.mxu0 0.0
        %1064 = vmatprep.subr.mxu0 0.0
        %1065 = vmatpush1.xpose.msra.mxu0 0.0
        %1066 = vmatprep.subr.mxu0 0.0
        %1067 = vmatpush1.xpose.msra.mxu0 0.0
        %1068 = vmatprep.subr.mxu0 0.0
        %1069 = vmatpush1.xpose.msra.mxu0 0.0
        %1070 = vmatprep.subr.mxu0 0.0
        %1071 = vmatpush1.xpose.msra.mxu0 0.0
        %1072 = vmatprep.subr.mxu0 0.0
        %1073 = vmatpush1.xpose.msra.mxu0 0.0
        %1074 = vmatprep.subr.mxu0 0.0
        %1075 = vmatpush1.xpose.msra.mxu0 0.0
        %1076 = vmatprep.subr.mxu0 0.0
        %1077 = vmatpush1.xpose.msra.mxu0 0.0
        %1078 = vmatprep.subr.mxu0 0.0
        %1079 = vmatpush1.xpose.msra.mxu0 0.0
        %1080 = vmatprep.subr.mxu0 0.0
        %1081 = vmatpush1.xpose.msra.mxu0 0.0
        %1082 = vmatprep.subr.mxu0 0.0
        %1083 = vmatpush1.xpose.msra.mxu0 0.0
        %1084 = vmatprep.subr.mxu0 0.0
        %1085 = vmatpush1.xpose.msra.mxu0 0.0
        %1086 = vmatprep.subr.mxu0 0.0
        %1087 = vmatpush1.xpose.msra.mxu0 0.0
        %1088 = vmatprep.subr.mxu0 0.0
        %1089 = vmatpush1.xpose.msra.mxu0 0.0
        %1090 = vmatprep.subr.mxu0 0.0
        %1091 = vmatpush1.xpose.msra.mxu0 0.0
        %1092 = vmatprep.subr.mxu0 0.0
        %1093 = vmatpush1.xpose.msra.mxu0 0.0
        %1094 = vmatprep.subr.mxu0 0.0
        %1095 = vmatpush1.xpose.msra.mxu0 0.0
        %1096 = vmatprep.subr.mxu0 0.0
        %1097 = vmatpush1.xpose.msra.mxu0 0.0
        %1098 = vmatprep.subr.mxu0 0.0
        %1099 = vmatpush1.xpose.msra.mxu0 0.0
        %1100 = vmatprep.subr.mxu0 0.0
        %1101 = vmatpush1.xpose.msra.mxu0 0.0
        %1102 = vmatprep.subr.mxu0 0.0
        %1103 = vmatpush1.xpose.msra.mxu0 0.0
        %1104 = vmatprep.subr.mxu0 0.0
        %1105 = vmatpush1.xpose.msra.mxu0 0.0
        %1106 = vmatprep.subr.mxu0 0.0
        %1107 = vmatpush1.xpose.msra.mxu0 0.0
        %1108 = vmatprep.subr.mxu0 0.0
        %1109 = vmatpush1.xpose.msra.mxu0 0.0
        %1110 = vmatprep.subr.mxu0 0.0
        %1111 = vmatpush1.xpose.msra.mxu0 0.0
        %1112 = vmatprep.subr.mxu0 0.0
        %1113 = vmatpush1.xpose.msra.mxu0 0.0
        %1114 = vmatprep.subr.mxu0 0.0
        %1115 = vmatpush1.xpose.msra.mxu0 0.0
        %1116 = vmatprep.subr.mxu0 0.0
        %1117 = vmatpush1.xpose.msra.mxu0 0.0
        %1118 = vmatprep.subr.mxu0 0.0
        %1119 = vmatpush1.xpose.msra.mxu0 0.0
        %1120 = vmatprep.mubr.f32.mxu0 0.0
        %1121 = vmatmul.mubr.f32.gmra.mrb[0].mxu0 %v1052
        %v1122 = vpop.f32.mrb[0].mxu0
        %v1123 = vadd.f32 0.0, %v1122
        %v1124 = vpop.f32.mrb[0].mxu0
        %1125 = vdwg.mxu0
        %v1126 = vmul.f32 %v1046, 0.35355338
        %v1127 = vmul.f32 %v1123, 0.35355338
        %v1128 = vsel %vm974, %v1126, -inf
        %1129 = vmax.xlane.f32.xlu0 %v1128
        %v1130 = vpop.xlane.xlu0 %1129
        %v1131 = vsel %vm974, %v1127, -inf
        %1132 = vmax.xlane.f32.xlu0 %v1131
        %v1133 = vpop.xlane.xlu0 %1132
        %v1134 = vsub.f32 %v1126, %v1130
        %v1135 = vsub.f32 %v1127, %v1133
        %v1136 = vmul.f32 %v1134, 1.442695
        %v1137 = vpow.pop %v1136
        %v1138 = vmul.f32 %v1135, 1.442695
        %v1139 = vpow.pop %v1138
        %v1140 = vsel %vm974, %v1137, 0.0
        %1141 = vadd.xlane.f32.xlu0 %v1140
        %v1142 = vpop.xlane.xlu0 %1141
        %v1143 = vsel %vm974, %v1139, 0.0
        %1144 = vadd.xlane.f32.xlu0 %v1143
        %v1145 = vpop.xlane.xlu0 %1144
        %v1146 = vrcp.pop %v1142
        %v1147 = vrcp.pop %v1145
        %v1148 = vmul.f32 %v1137, %v1146
        %v1149 = vmul.f32 %v1139, %v1147
        %1150 = vrot.lane.b32.xlu0 %v963, 64
        %v1151 = vpop.permute.xlu0 %1150
        %v1154 = vsel %vm974, %v1148, 0
        %1156 = vmatprep.subr.mxu0 0.0
        %1157 = vmatpush1.msra.mxu0 %v1151
        %1158 = vmatprep.subr.mxu0 0.0
        %1159 = vmatpush1.msra.mxu0 0.0
        %1160 = vmatprep.subr.mxu0 0.0
        %1161 = vmatpush1.msra.mxu0 0.0
        %1162 = vmatprep.subr.mxu0 0.0
        %1163 = vmatpush1.msra.mxu0 0.0
        %1164 = vmatprep.subr.mxu0 0.0
        %1165 = vmatpush1.msra.mxu0 0.0
        %1166 = vmatprep.subr.mxu0 0.0
        %1167 = vmatpush1.msra.mxu0 0.0
        %1168 = vmatprep.subr.mxu0 0.0
        %1169 = vmatpush1.msra.mxu0 0.0
        %1170 = vmatprep.subr.mxu0 0.0
        %1171 = vmatpush1.msra.mxu0 0.0
        %1172 = vmatprep.subr.mxu0 0.0
        %1173 = vmatpush1.msra.mxu0 0.0
        %1174 = vmatprep.subr.mxu0 0.0
        %1175 = vmatpush1.msra.mxu0 0.0
        %1176 = vmatprep.subr.mxu0 0.0
        %1177 = vmatpush1.msra.mxu0 0.0
        %1178 = vmatprep.subr.mxu0 0.0
        %1179 = vmatpush1.msra.mxu0 0.0
        %1180 = vmatprep.subr.mxu0 0.0
        %1181 = vmatpush1.msra.mxu0 0.0
        %1182 = vmatprep.subr.mxu0 0.0
        %1183 = vmatpush1.msra.mxu0 0.0
        %1184 = vmatprep.subr.mxu0 0.0
        %1185 = vmatpush1.msra.mxu0 0.0
        %1186 = vmatprep.subr.mxu0 0.0
        %1187 = vmatpush1.msra.mxu0 0.0
        %1188 = vmatprep.subr.mxu0 0.0
        %1189 = vmatpush1.msra.mxu0 0.0
        %1190 = vmatprep.subr.mxu0 0.0
        %1191 = vmatpush1.msra.mxu0 0.0
        %1192 = vmatprep.subr.mxu0 0.0
        %1193 = vmatpush1.msra.mxu0 0.0
        %1194 = vmatprep.subr.mxu0 0.0
        %1195 = vmatpush1.msra.mxu0 0.0
        %1196 = vmatprep.subr.mxu0 0.0
        %1197 = vmatpush1.msra.mxu0 0.0
        %1198 = vmatprep.subr.mxu0 0.0
        %1199 = vmatpush1.msra.mxu0 0.0
        %1200 = vmatprep.subr.mxu0 0.0
        %1201 = vmatpush1.msra.mxu0 0.0
        %1202 = vmatprep.subr.mxu0 0.0
        %1203 = vmatpush1.msra.mxu0 0.0
        %1204 = vmatprep.subr.mxu0 0.0
        %1205 = vmatpush1.msra.mxu0 0.0
        %1206 = vmatprep.subr.mxu0 0.0
        %1207 = vmatpush1.msra.mxu0 0.0
        %1208 = vmatprep.subr.mxu0 0.0
        %1209 = vmatpush1.msra.mxu0 0.0
        %1210 = vmatprep.subr.mxu0 0.0
        %1211 = vmatpush1.msra.mxu0 0.0
        %1212 = vmatprep.subr.mxu0 0.0
        %1213 = vmatpush1.msra.mxu0 0.0
        %1214 = vmatprep.subr.mxu0 0.0
        %1215 = vmatpush1.msra.mxu0 0.0
        %1216 = vmatprep.subr.mxu0 0.0
        %1217 = vmatpush1.msra.mxu0 0.0
        %1218 = vmatprep.subr.mxu0 0.0
        %1219 = vmatpush1.msra.mxu0 0.0
        %1220 = vmatprep.mubr.f32.mxu0 0.0
        %1221 = vmatmul.mubr.f32.gmra.mrb[0].mxu0 %v1154
        %v1222 = vpop.f32.mrb[0].mxu0
        %v1223 = vadd.f32 0.0, %v1222
        %v1224 = vpop.f32.mrb[0].mxu0
        %1225 = vdwg.mxu0
        %1226 = vrot.lane.b32.xlu0 %v968, 64
        %v1227 = vpop.permute.xlu0 %1226
        %v1230 = vsel %vm974, %v1149, 0
        %1232 = vmatprep.subr.mxu0 0.0
        %1233 = vmatpush1.msra.mxu0 %v1227
        %1234 = vmatprep.subr.mxu0 0.0
        %1235 = vmatpush1.msra.mxu0 0.0
        %1236 = vmatprep.subr.mxu0 0.0
        %1237 = vmatpush1.msra.mxu0 0.0
        %1238 = vmatprep.subr.mxu0 0.0
        %1239 = vmatpush1.msra.mxu0 0.0
        %1240 = vmatprep.subr.mxu0 0.0
        %1241 = vmatpush1.msra.mxu0 0.0
        %1242 = vmatprep.subr.mxu0 0.0
        %1243 = vmatpush1.msra.mxu0 0.0
        %1244 = vmatprep.subr.mxu0 0.0
        %1245 = vmatpush1.msra.mxu0 0.0
        %1246 = vmatprep.subr.mxu0 0.0
        %1247 = vmatpush1.msra.mxu0 0.0
        %1248 = vmatprep.subr.mxu0 0.0
        %1249 = vmatpush1.msra.mxu0 0.0
        %1250 = vmatprep.subr.mxu0 0.0
        %1251 = vmatpush1.msra.mxu0 0.0
        %1252 = vmatprep.subr.mxu0 0.0
        %1253 = vmatpush1.msra.mxu0 0.0
        %1254 = vmatprep.subr.mxu0 0.0
        %1255 = vmatpush1.msra.mxu0 0.0
        %1256 = vmatprep.subr.mxu0 0.0
        %1257 = vmatpush1.msra.mxu0 0.0
        %1258 = vmatprep.subr.mxu0 0.0
        %1259 = vmatpush1.msra.mxu0 0.0
        %1260 = vmatprep.subr.mxu0 0.0
        %1261 = vmatpush1.msra.mxu0 0.0
        %1262 = vmatprep.subr.mxu0 0.0
        %1263 = vmatpush1.msra.mxu0 0.0
        %1264 = vmatprep.subr.mxu0 0.0
        %1265 = vmatpush1.msra.mxu0 0.0
        %1266 = vmatprep.subr.mxu0 0.0
        %1267 = vmatpush1.msra.mxu0 0.0
        %1268 = vmatprep.subr.mxu0 0.0
        %1269 = vmatpush1.msra.mxu0 0.0
        %1270 = vmatprep.subr.mxu0 0.0
        %1271 = vmatpush1.msra.mxu0 0.0
        %1272 = vmatprep.subr.mxu0 0.0
        %1273 = vmatpush1.msra.mxu0 0.0
        %1274 = vmatprep.subr.mxu0 0.0
        %1275 = vmatpush1.msra.mxu0 0.0
        %1276 = vmatprep.subr.mxu0 0.0
        %1277 = vmatpush1.msra.mxu0 0.0
        %1278 = vmatprep.subr.mxu0 0.0
        %1279 = vmatpush1.msra.mxu0 0.0
        %1280 = vmatprep.subr.mxu0 0.0
        %1281 = vmatpush1.msra.mxu0 0.0
        %1282 = vmatprep.subr.mxu0 0.0
        %1283 = vmatpush1.msra.mxu0 0.0
        %1284 = vmatprep.subr.mxu0 0.0
        %1285 = vmatpush1.msra.mxu0 0.0
        %1286 = vmatprep.subr.mxu0 0.0
        %1287 = vmatpush1.msra.mxu0 0.0
        %1288 = vmatprep.subr.mxu0 0.0
        %1289 = vmatpush1.msra.mxu0 0.0
        %1290 = vmatprep.subr.mxu0 0.0
        %1291 = vmatpush1.msra.mxu0 0.0
        %1292 = vmatprep.subr.mxu0 0.0
        %1293 = vmatpush1.msra.mxu0 0.0
        %1294 = vmatprep.subr.mxu0 0.0
        %1295 = vmatpush1.msra.mxu0 0.0
        %1296 = vmatprep.mubr.f32.mxu0 0.0
        %1297 = vmatmul.mubr.f32.gmra.mrb[0].mxu0 %v1230
        %v1298 = vpop.f32.mrb[0].mxu0
        %v1299 = vadd.f32 0.0, %v1298
        %v1300 = vpop.f32.mrb[0].mxu0
        %1301 = vdwg.mxu0
        %1302 = vrot.lane.b32.xlu0 %v963, 120
        %v1303 = vpop.permute.xlu0 %1302
        %1304 = vrot.lane.b32.xlu0 %v963, 88
        %v1305 = vpop.permute.xlu0 %1304
        %v1306 = vsel %vm974, %v1303, 0
        %v1308 = vsel %vm974, %v1305, 0
        %1310 = vmatprep.subr.mxu0 0.0
        %1311 = vmatpush1.xpose.msra.mxu0 %v1308
        %1312 = vmatprep.subr.mxu0 0.0
        %1313 = vmatpush1.xpose.msra.mxu0 0.0
        %1314 = vmatprep.subr.mxu0 0.0
        %1315 = vmatpush1.xpose.msra.mxu0 0.0
        %1316 = vmatprep.subr.mxu0 0.0
        %1317 = vmatpush1.xpose.msra.mxu0 0.0
        %1318 = vmatprep.subr.mxu0 0.0
        %1319 = vmatpush1.xpose.msra.mxu0 0.0
        %1320 = vmatprep.subr.mxu0 0.0
        %1321 = vmatpush1.xpose.msra.mxu0 0.0
        %1322 = vmatprep.subr.mxu0 0.0
        %1323 = vmatpush1.xpose.msra.mxu0 0.0
        %1324 = vmatprep.subr.mxu0 0.0
        %1325 = vmatpush1.xpose.msra.mxu0 0.0
        %1326 = vmatprep.subr.mxu0 0.0
        %1327 = vmatpush1.xpose.msra.mxu0 0.0
        %1328 = vmatprep.subr.mxu0 0.0
        %1329 = vmatpush1.xpose.msra.mxu0 0.0
        %1330 = vmatprep.subr.mxu0 0.0
        %1331 = vmatpush1.xpose.msra.mxu0 0.0
        %1332 = vmatprep.subr.mxu0 0.0
        %1333 = vmatpush1.xpose.msra.mxu0 0.0
        %1334 = vmatprep.subr.mxu0 0.0
        %1335 = vmatpush1.xpose.msra.mxu0 0.0
        %1336 = vmatprep.subr.mxu0 0.0
        %1337 = vmatpush1.xpose.msra.mxu0 0.0
        %1338 = vmatprep.subr.mxu0 0.0
        %1339 = vmatpush1.xpose.msra.mxu0 0.0
        %1340 = vmatprep.subr.mxu0 0.0
        %1341 = vmatpush1.xpose.msra.mxu0 0.0
        %1342 = vmatprep.subr.mxu0 0.0
        %1343 = vmatpush1.xpose.msra.mxu0 0.0
        %1344 = vmatprep.subr.mxu0 0.0
        %1345 = vmatpush1.xpose.msra.mxu0 0.0
        %1346 = vmatprep.subr.mxu0 0.0
        %1347 = vmatpush1.xpose.msra.mxu0 0.0
        %1348 = vmatprep.subr.mxu0 0.0
        %1349 = vmatpush1.xpose.msra.mxu0 0.0
        %1350 = vmatprep.subr.mxu0 0.0
        %1351 = vmatpush1.xpose.msra.mxu0 0.0
        %1352 = vmatprep.subr.mxu0 0.0
        %1353 = vmatpush1.xpose.msra.mxu0 0.0
        %1354 = vmatprep.subr.mxu0 0.0
        %1355 = vmatpush1.xpose.msra.mxu0 0.0
        %1356 = vmatprep.subr.mxu0 0.0
        %1357 = vmatpush1.xpose.msra.mxu0 0.0
        %1358 = vmatprep.subr.mxu0 0.0
        %1359 = vmatpush1.xpose.msra.mxu0 0.0
        %1360 = vmatprep.subr.mxu0 0.0
        %1361 = vmatpush1.xpose.msra.mxu0 0.0
        %1362 = vmatprep.subr.mxu0 0.0
        %1363 = vmatpush1.xpose.msra.mxu0 0.0
        %1364 = vmatprep.subr.mxu0 0.0
        %1365 = vmatpush1.xpose.msra.mxu0 0.0
        %1366 = vmatprep.subr.mxu0 0.0
        %1367 = vmatpush1.xpose.msra.mxu0 0.0
        %1368 = vmatprep.subr.mxu0 0.0
        %1369 = vmatpush1.xpose.msra.mxu0 0.0
        %1370 = vmatprep.subr.mxu0 0.0
        %1371 = vmatpush1.xpose.msra.mxu0 0.0
        %1372 = vmatprep.subr.mxu0 0.0
        %1373 = vmatpush1.xpose.msra.mxu0 0.0
        %1374 = vmatprep.mubr.f32.mxu0 0.0
        %1375 = vmatmul.mubr.f32.gmra.mrb[0].mxu0 %v1306
        %v1376 = vpop.f32.mrb[0].mxu0
        %v1377 = vadd.f32 0.0, %v1376
        %v1378 = vpop.f32.mrb[0].mxu0
        %1379 = vdwg.mxu0
        %1380 = vrot.lane.b32.xlu0 %v968, 120
        %v1381 = vpop.permute.xlu0 %1380
        %1382 = vrot.lane.b32.xlu0 %v968, 88
        %v1383 = vpop.permute.xlu0 %1382
        %v1384 = vsel %vm974, %v1381, 0
        %v1386 = vsel %vm974, %v1383, 0
        %1388 = vmatprep.subr.mxu0 0.0
        %1389 = vmatpush1.xpose.msra.mxu0 %v1386
        %1390 = vmatprep.subr.mxu0 0.0
        %1391 = vmatpush1.xpose.msra.mxu0 0.0
        %1392 = vmatprep.subr.mxu0 0.0
        %1393 = vmatpush1.xpose.msra.mxu0 0.0
        %1394 = vmatprep.subr.mxu0 0.0
        %1395 = vmatpush1.xpose.msra.mxu0 0.0
        %1396 = vmatprep.subr.mxu0 0.0
        %1397 = vmatpush1.xpose.msra.mxu0 0.0
        %1398 = vmatprep.subr.mxu0 0.0
        %1399 = vmatpush1.xpose.msra.mxu0 0.0
        %1400 = vmatprep.subr.mxu0 0.0
        %1401 = vmatpush1.xpose.msra.mxu0 0.0
        %1402 = vmatprep.subr.mxu0 0.0
        %1403 = vmatpush1.xpose.msra.mxu0 0.0
        %1404 = vmatprep.subr.mxu0 0.0
        %1405 = vmatpush1.xpose.msra.mxu0 0.0
        %1406 = vmatprep.subr.mxu0 0.0
        %1407 = vmatpush1.xpose.msra.mxu0 0.0
        %1408 = vmatprep.subr.mxu0 0.0
        %1409 = vmatpush1.xpose.msra.mxu0 0.0
        %1410 = vmatprep.subr.mxu0 0.0
        %1411 = vmatpush1.xpose.msra.mxu0 0.0
        %1412 = vmatprep.subr.mxu0 0.0
        %1413 = vmatpush1.xpose.msra.mxu0 0.0
        %1414 = vmatprep.subr.mxu0 0.0
        %1415 = vmatpush1.xpose.msra.mxu0 0.0
        %1416 = vmatprep.subr.mxu0 0.0
        %1417 = vmatpush1.xpose.msra.mxu0 0.0
        %1418 = vmatprep.subr.mxu0 0.0
        %1419 = vmatpush1.xpose.msra.mxu0 0.0
        %1420 = vmatprep.subr.mxu0 0.0
        %1421 = vmatpush1.xpose.msra.mxu0 0.0
        %1422 = vmatprep.subr.mxu0 0.0
        %1423 = vmatpush1.xpose.msra.mxu0 0.0
        %1424 = vmatprep.subr.mxu0 0.0
        %1425 = vmatpush1.xpose.msra.mxu0 0.0
        %1426 = vmatprep.subr.mxu0 0.0
        %1427 = vmatpush1.xpose.msra.mxu0 0.0
        %1428 = vmatprep.subr.mxu0 0.0
        %1429 = vmatpush1.xpose.msra.mxu0 0.0
        %1430 = vmatprep.subr.mxu0 0.0
        %1431 = vmatpush1.xpose.msra.mxu0 0.0
        %1432 = vmatprep.subr.mxu0 0.0
        %1433 = vmatpush1.xpose.msra.mxu0 0.0
        %1434 = vmatprep.subr.mxu0 0.0
        %1435 = vmatpush1.xpose.msra.mxu0 0.0
        %1436 = vmatprep.subr.mxu0 0.0
        %1437 = vmatpush1.xpose.msra.mxu0 0.0
        %1438 = vmatprep.subr.mxu0 0.0
        %1439 = vmatpush1.xpose.msra.mxu0 0.0
        %1440 = vmatprep.subr.mxu0 0.0
        %1441 = vmatpush1.xpose.msra.mxu0 0.0
        %1442 = vmatprep.subr.mxu0 0.0
        %1443 = vmatpush1.xpose.msra.mxu0 0.0
        %1444 = vmatprep.subr.mxu0 0.0
        %1445 = vmatpush1.xpose.msra.mxu0 0.0
        %1446 = vmatprep.subr.mxu0 0.0
        %1447 = vmatpush1.xpose.msra.mxu0 0.0
        %1448 = vmatprep.subr.mxu0 0.0
        %1449 = vmatpush1.xpose.msra.mxu0 0.0
        %1450 = vmatprep.subr.mxu0 0.0
        %1451 = vmatpush1.xpose.msra.mxu0 0.0
        %1452 = vmatprep.mubr.f32.mxu0 0.0
        %1453 = vmatmul.mubr.f32.gmra.mrb[0].mxu0 %v1384
        %v1454 = vpop.f32.mrb[0].mxu0
        %v1455 = vadd.f32 0.0, %v1454
        %v1456 = vpop.f32.mrb[0].mxu0
        %1457 = vdwg.mxu0
        %v1458 = vmul.f32 %v1377, 0.35355338
        %v1459 = vmul.f32 %v1455, 0.35355338
        %v1460 = vsel %vm974, %v1458, -inf
        %1461 = vmax.xlane.f32.xlu0 %v1460
        %v1462 = vpop.xlane.xlu0 %1461
        %v1463 = vsel %vm974, %v1459, -inf
        %1464 = vmax.xlane.f32.xlu0 %v1463
        %v1465 = vpop.xlane.xlu0 %1464
        %v1466 = vsub.f32 %v1458, %v1462
        %v1467 = vsub.f32 %v1459, %v1465
        %v1468 = vmul.f32 %v1466, 1.442695
        %v1469 = vpow.pop %v1468
        %v1470 = vmul.f32 %v1467, 1.442695
        %v1471 = vpow.pop %v1470
        %v1472 = vsel %vm974, %v1469, 0.0
        %1473 = vadd.xlane.f32.xlu0 %v1472
        %v1474 = vpop.xlane.xlu0 %1473
        %v1475 = vsel %vm974, %v1471, 0.0
        %1476 = vadd.xlane.f32.xlu0 %v1475
        %v1477 = vpop.xlane.xlu0 %1476
        %v1478 = vrcp.pop %v1474
        %v1479 = vrcp.pop %v1477
        %v1480 = vmul.f32 %v1469, %v1478
        %v1481 = vmul.f32 %v1471, %v1479
        %1482 = vrot.lane.b32.xlu0 %v963, 56
        %v1483 = vpop.permute.xlu0 %1482
        %v1486 = vsel %vm974, %v1480, 0
        %1488 = vmatprep.subr.mxu0 0.0
        %1489 = vmatpush1.msra.mxu0 %v1483
        %1490 = vmatprep.subr.mxu0 0.0
        %1491 = vmatpush1.msra.mxu0 0.0
        %1492 = vmatprep.subr.mxu0 0.0
        %1493 = vmatpush1.msra.mxu0 0.0
        %1494 = vmatprep.subr.mxu0 0.0
        %1495 = vmatpush1.msra.mxu0 0.0
        %1496 = vmatprep.subr.mxu0 0.0
        %1497 = vmatpush1.msra.mxu0 0.0
        %1498 = vmatprep.subr.mxu0 0.0
        %1499 = vmatpush1.msra.mxu0 0.0
        %1500 = vmatprep.subr.mxu0 0.0
        %1501 = vmatpush1.msra.mxu0 0.0
        %1502 = vmatprep.subr.mxu0 0.0
        %1503 = vmatpush1.msra.mxu0 0.0
        %1504 = vmatprep.subr.mxu0 0.0
        %1505 = vmatpush1.msra.mxu0 0.0
        %1506 = vmatprep.subr.mxu0 0.0
        %1507 = vmatpush1.msra.mxu0 0.0
        %1508 = vmatprep.subr.mxu0 0.0
        %1509 = vmatpush1.msra.mxu0 0.0
        %1510 = vmatprep.subr.mxu0 0.0
        %1511 = vmatpush1.msra.mxu0 0.0
        %1512 = vmatprep.subr.mxu0 0.0
        %1513 = vmatpush1.msra.mxu0 0.0
        %1514 = vmatprep.subr.mxu0 0.0
        %1515 = vmatpush1.msra.mxu0 0.0
        %1516 = vmatprep.subr.mxu0 0.0
        %1517 = vmatpush1.msra.mxu0 0.0
        %1518 = vmatprep.subr.mxu0 0.0
        %1519 = vmatpush1.msra.mxu0 0.0
        %1520 = vmatprep.subr.mxu0 0.0
        %1521 = vmatpush1.msra.mxu0 0.0
        %1522 = vmatprep.subr.mxu0 0.0
        %1523 = vmatpush1.msra.mxu0 0.0
        %1524 = vmatprep.subr.mxu0 0.0
        %1525 = vmatpush1.msra.mxu0 0.0
        %1526 = vmatprep.subr.mxu0 0.0
        %1527 = vmatpush1.msra.mxu0 0.0
        %1528 = vmatprep.subr.mxu0 0.0
        %1529 = vmatpush1.msra.mxu0 0.0
        %1530 = vmatprep.subr.mxu0 0.0
        %1531 = vmatpush1.msra.mxu0 0.0
        %1532 = vmatprep.subr.mxu0 0.0
        %1533 = vmatpush1.msra.mxu0 0.0
        %1534 = vmatprep.subr.mxu0 0.0
        %1535 = vmatpush1.msra.mxu0 0.0
        %1536 = vmatprep.subr.mxu0 0.0
        %1537 = vmatpush1.msra.mxu0 0.0
        %1538 = vmatprep.subr.mxu0 0.0
        %1539 = vmatpush1.msra.mxu0 0.0
        %1540 = vmatprep.subr.mxu0 0.0
        %1541 = vmatpush1.msra.mxu0 0.0
        %1542 = vmatprep.subr.mxu0 0.0
        %1543 = vmatpush1.msra.mxu0 0.0
        %1544 = vmatprep.subr.mxu0 0.0
        %1545 = vmatpush1.msra.mxu0 0.0
        %1546 = vmatprep.subr.mxu0 0.0
        %1547 = vmatpush1.msra.mxu0 0.0
        %1548 = vmatprep.subr.mxu0 0.0
        %1549 = vmatpush1.msra.mxu0 0.0
        %1550 = vmatprep.subr.mxu0 0.0
        %1551 = vmatpush1.msra.mxu0 0.0
        %1552 = vmatprep.mubr.f32.mxu0 0.0
        %1553 = vmatmul.mubr.f32.gmra.mrb[0].mxu0 %v1486
        %v1554 = vpop.f32.mrb[0].mxu0
        %v1555 = vadd.f32 0.0, %v1554
        %v1556 = vpop.f32.mrb[0].mxu0
        %1557 = vdwg.mxu0
        %1558 = vrot.lane.b32.xlu0 %v968, 56
        %v1559 = vpop.permute.xlu0 %1558
        %v1562 = vsel %vm974, %v1481, 0
        %1564 = vmatprep.subr.mxu0 0.0
        %1565 = vmatpush1.msra.mxu0 %v1559
        %1566 = vmatprep.subr.mxu0 0.0
        %1567 = vmatpush1.msra.mxu0 0.0
        %1568 = vmatprep.subr.mxu0 0.0
        %1569 = vmatpush1.msra.mxu0 0.0
        %1570 = vmatprep.subr.mxu0 0.0
        %1571 = vmatpush1.msra.mxu0 0.0
        %1572 = vmatprep.subr.mxu0 0.0
        %1573 = vmatpush1.msra.mxu0 0.0
        %1574 = vmatprep.subr.mxu0 0.0
        %1575 = vmatpush1.msra.mxu0 0.0
        %1576 = vmatprep.subr.mxu0 0.0
        %1577 = vmatpush1.msra.mxu0 0.0
        %1578 = vmatprep.subr.mxu0 0.0
        %1579 = vmatpush1.msra.mxu0 0.0
        %1580 = vmatprep.subr.mxu0 0.0
        %1581 = vmatpush1.msra.mxu0 0.0
        %1582 = vmatprep.subr.mxu0 0.0
        %1583 = vmatpush1.msra.mxu0 0.0
        %1584 = vmatprep.subr.mxu0 0.0
        %1585 = vmatpush1.msra.mxu0 0.0
        %1586 = vmatprep.subr.mxu0 0.0
        %1587 = vmatpush1.msra.mxu0 0.0
        %1588 = vmatprep.subr.mxu0 0.0
        %1589 = vmatpush1.msra.mxu0 0.0
        %1590 = vmatprep.subr.mxu0 0.0
        %1591 = vmatpush1.msra.mxu0 0.0
        %1592 = vmatprep.subr.mxu0 0.0
        %1593 = vmatpush1.msra.mxu0 0.0
        %1594 = vmatprep.subr.mxu0 0.0
        %1595 = vmatpush1.msra.mxu0 0.0
        %1596 = vmatprep.subr.mxu0 0.0
        %1597 = vmatpush1.msra.mxu0 0.0
        %1598 = vmatprep.subr.mxu0 0.0
        %1599 = vmatpush1.msra.mxu0 0.0
        %1600 = vmatprep.subr.mxu0 0.0
        %1601 = vmatpush1.msra.mxu0 0.0
        %1602 = vmatprep.subr.mxu0 0.0
        %1603 = vmatpush1.msra.mxu0 0.0
        %1604 = vmatprep.subr.mxu0 0.0
        %1605 = vmatpush1.msra.mxu0 0.0
        %1606 = vmatprep.subr.mxu0 0.0
        %1607 = vmatpush1.msra.mxu0 0.0
        %1608 = vmatprep.subr.mxu0 0.0
        %1609 = vmatpush1.msra.mxu0 0.0
        %1610 = vmatprep.subr.mxu0 0.0
        %1611 = vmatpush1.msra.mxu0 0.0
        %1612 = vmatprep.subr.mxu0 0.0
        %1613 = vmatpush1.msra.mxu0 0.0
        %1614 = vmatprep.subr.mxu0 0.0
        %1615 = vmatpush1.msra.mxu0 0.0
        %1616 = vmatprep.subr.mxu0 0.0
        %1617 = vmatpush1.msra.mxu0 0.0
        %1618 = vmatprep.subr.mxu0 0.0
        %1619 = vmatpush1.msra.mxu0 0.0
        %1620 = vmatprep.subr.mxu0 0.0
        %1621 = vmatpush1.msra.mxu0 0.0
        %1622 = vmatprep.subr.mxu0 0.0
        %1623 = vmatpush1.msra.mxu0 0.0
        %1624 = vmatprep.subr.mxu0 0.0
        %1625 = vmatpush1.msra.mxu0 0.0
        %1626 = vmatprep.subr.mxu0 0.0
        %1627 = vmatpush1.msra.mxu0 0.0
        %1628 = vmatprep.mubr.f32.mxu0 0.0
        %1629 = vmatmul.mubr.f32.gmra.mrb[0].mxu0 %v1562
        %v1630 = vpop.f32.mrb[0].mxu0
        %v1631 = vadd.f32 0.0, %v1630
        %v1632 = vpop.f32.mrb[0].mxu0
        %1633 = vdwg.mxu0
        %1634 = vrot.lane.b32.xlu0 %v963, 112
        %v1635 = vpop.permute.xlu0 %1634
        %1636 = vrot.lane.b32.xlu0 %v963, 80
        %v1637 = vpop.permute.xlu0 %1636
        %v1638 = vsel %vm974, %v1635, 0
        %v1640 = vsel %vm974, %v1637, 0
        %1642 = vmatprep.subr.mxu0 0.0
        %1643 = vmatpush1.xpose.msra.mxu0 %v1640
        %1644 = vmatprep.subr.mxu0 0.0
        %1645 = vmatpush1.xpose.msra.mxu0 0.0
        %1646 = vmatprep.subr.mxu0 0.0
        %1647 = vmatpush1.xpose.msra.mxu0 0.0
        %1648 = vmatprep.subr.mxu0 0.0
        %1649 = vmatpush1.xpose.msra.mxu0 0.0
        %1650 = vmatprep.subr.mxu0 0.0
        %1651 = vmatpush1.xpose.msra.mxu0 0.0
        %1652 = vmatprep.subr.mxu0 0.0
        %1653 = vmatpush1.xpose.msra.mxu0 0.0
        %1654 = vmatprep.subr.mxu0 0.0
        %1655 = vmatpush1.xpose.msra.mxu0 0.0
        %1656 = vmatprep.subr.mxu0 0.0
        %1657 = vmatpush1.xpose.msra.mxu0 0.0
        %1658 = vmatprep.subr.mxu0 0.0
        %1659 = vmatpush1.xpose.msra.mxu0 0.0
        %1660 = vmatprep.subr.mxu0 0.0
        %1661 = vmatpush1.xpose.msra.mxu0 0.0
        %1662 = vmatprep.subr.mxu0 0.0
        %1663 = vmatpush1.xpose.msra.mxu0 0.0
        %1664 = vmatprep.subr.mxu0 0.0
        %1665 = vmatpush1.xpose.msra.mxu0 0.0
        %1666 = vmatprep.subr.mxu0 0.0
        %1667 = vmatpush1.xpose.msra.mxu0 0.0
        %1668 = vmatprep.subr.mxu0 0.0
        %1669 = vmatpush1.xpose.msra.mxu0 0.0
        %1670 = vmatprep.subr.mxu0 0.0
        %1671 = vmatpush1.xpose.msra.mxu0 0.0
        %1672 = vmatprep.subr.mxu0 0.0
        %1673 = vmatpush1.xpose.msra.mxu0 0.0
        %1674 = vmatprep.subr.mxu0 0.0
        %1675 = vmatpush1.xpose.msra.mxu0 0.0
        %1676 = vmatprep.subr.mxu0 0.0
        %1677 = vmatpush1.xpose.msra.mxu0 0.0
        %1678 = vmatprep.subr.mxu0 0.0
        %1679 = vmatpush1.xpose.msra.mxu0 0.0
        %1680 = vmatprep.subr.mxu0 0.0
        %1681 = vmatpush1.xpose.msra.mxu0 0.0
        %1682 = vmatprep.subr.mxu0 0.0
        %1683 = vmatpush1.xpose.msra.mxu0 0.0
        %1684 = vmatprep.subr.mxu0 0.0
        %1685 = vmatpush1.xpose.msra.mxu0 0.0
        %1686 = vmatprep.subr.mxu0 0.0
        %1687 = vmatpush1.xpose.msra.mxu0 0.0
        %1688 = vmatprep.subr.mxu0 0.0
        %1689 = vmatpush1.xpose.msra.mxu0 0.0
        %1690 = vmatprep.subr.mxu0 0.0
        %1691 = vmatpush1.xpose.msra.mxu0 0.0
        %1692 = vmatprep.subr.mxu0 0.0
        %1693 = vmatpush1.xpose.msra.mxu0 0.0
        %1694 = vmatprep.subr.mxu0 0.0
        %1695 = vmatpush1.xpose.msra.mxu0 0.0
        %1696 = vmatprep.subr.mxu0 0.0
        %1697 = vmatpush1.xpose.msra.mxu0 0.0
        %1698 = vmatprep.subr.mxu0 0.0
        %1699 = vmatpush1.xpose.msra.mxu0 0.0
        %1700 = vmatprep.subr.mxu0 0.0
        %1701 = vmatpush1.xpose.msra.mxu0 0.0
        %1702 = vmatprep.subr.mxu0 0.0
        %1703 = vmatpush1.xpose.msra.mxu0 0.0
        %1704 = vmatprep.subr.mxu0 0.0
        %1705 = vmatpush1.xpose.msra.mxu0 0.0
        %1706 = vmatprep.mubr.f32.mxu0 0.0
        %1707 = vmatmul.mubr.f32.gmra.mrb[0].mxu0 %v1638
        %v1708 = vpop.f32.mrb[0].mxu0
        %v1709 = vadd.f32 0.0, %v1708
        %v1710 = vpop.f32.mrb[0].mxu0
        %1711 = vdwg.mxu0
        %1712 = vrot.lane.b32.xlu0 %v968, 112
        %v1713 = vpop.permute.xlu0 %1712
        %1714 = vrot.lane.b32.xlu0 %v968, 80
        %v1715 = vpop.permute.xlu0 %1714
        %v1716 = vsel %vm974, %v1713, 0
        %v1718 = vsel %vm974, %v1715, 0
        %1720 = vmatprep.subr.mxu0 0.0
        %1721 = vmatpush1.xpose.msra.mxu0 %v1718
        %1722 = vmatprep.subr.mxu0 0.0
        %1723 = vmatpush1.xpose.msra.mxu0 0.0
        %1724 = vmatprep.subr.mxu0 0.0
        %1725 = vmatpush1.xpose.msra.mxu0 0.0
        %1726 = vmatprep.subr.mxu0 0.0
        %1727 = vmatpush1.xpose.msra.mxu0 0.0
        %1728 = vmatprep.subr.mxu0 0.0
        %1729 = vmatpush1.xpose.msra.mxu0 0.0
        %1730 = vmatprep.subr.mxu0 0.0
        %1731 = vmatpush1.xpose.msra.mxu0 0.0
        %1732 = vmatprep.subr.mxu0 0.0
        %1733 = vmatpush1.xpose.msra.mxu0 0.0
        %1734 = vmatprep.subr.mxu0 0.0
        %1735 = vmatpush1.xpose.msra.mxu0 0.0
        %1736 = vmatprep.subr.mxu0 0.0
        %1737 = vmatpush1.xpose.msra.mxu0 0.0
        %1738 = vmatprep.subr.mxu0 0.0
        %1739 = vmatpush1.xpose.msra.mxu0 0.0
        %1740 = vmatprep.subr.mxu0 0.0
        %1741 = vmatpush1.xpose.msra.mxu0 0.0
        %1742 = vmatprep.subr.mxu0 0.0
        %1743 = vmatpush1.xpose.msra.mxu0 0.0
        %1744 = vmatprep.subr.mxu0 0.0
        %1745 = vmatpush1.xpose.msra.mxu0 0.0
        %1746 = vmatprep.subr.mxu0 0.0
        %1747 = vmatpush1.xpose.msra.mxu0 0.0
        %1748 = vmatprep.subr.mxu0 0.0
        %1749 = vmatpush1.xpose.msra.mxu0 0.0
        %1750 = vmatprep.subr.mxu0 0.0
        %1751 = vmatpush1.xpose.msra.mxu0 0.0
        %1752 = vmatprep.subr.mxu0 0.0
        %1753 = vmatpush1.xpose.msra.mxu0 0.0
        %1754 = vmatprep.subr.mxu0 0.0
        %1755 = vmatpush1.xpose.msra.mxu0 0.0
        %1756 = vmatprep.subr.mxu0 0.0
        %1757 = vmatpush1.xpose.msra.mxu0 0.0
        %1758 = vmatprep.subr.mxu0 0.0
        %1759 = vmatpush1.xpose.msra.mxu0 0.0
        %1760 = vmatprep.subr.mxu0 0.0
        %1761 = vmatpush1.xpose.msra.mxu0 0.0
        %1762 = vmatprep.subr.mxu0 0.0
        %1763 = vmatpush1.xpose.msra.mxu0 0.0
        %1764 = vmatprep.subr.mxu0 0.0
        %1765 = vmatpush1.xpose.msra.mxu0 0.0
        %1766 = vmatprep.subr.mxu0 0.0
        %1767 = vmatpush1.xpose.msra.mxu0 0.0
        %1768 = vmatprep.subr.mxu0 0.0
        %1769 = vmatpush1.xpose.msra.mxu0 0.0
        %1770 = vmatprep.subr.mxu0 0.0
        %1771 = vmatpush1.xpose.msra.mxu0 0.0
        %1772 = vmatprep.subr.mxu0 0.0
        %1773 = vmatpush1.xpose.msra.mxu0 0.0
        %1774 = vmatprep.subr.mxu0 0.0
        %1775 = vmatpush1.xpose.msra.mxu0 0.0
        %1776 = vmatprep.subr.mxu0 0.0
        %1777 = vmatpush1.xpose.msra.mxu0 0.0
        %1778 = vmatprep.subr.mxu0 0.0
        %1779 = vmatpush1.xpose.msra.mxu0 0.0
        %1780 = vmatprep.subr.mxu0 0.0
        %1781 = vmatpush1.xpose.msra.mxu0 0.0
        %1782 = vmatprep.subr.mxu0 0.0
        %1783 = vmatpush1.xpose.msra.mxu0 0.0
        %1784 = vmatprep.mubr.f32.mxu0 0.0
        %1785 = vmatmul.mubr.f32.gmra.mrb[0].mxu0 %v1716
        %v1786 = vpop.f32.mrb[0].mxu0
        %v1787 = vadd.f32 0.0, %v1786
        %v1788 = vpop.f32.mrb[0].mxu0
        %1789 = vdwg.mxu0
        %v1790 = vmul.f32 %v1709, 0.35355338
        %v1791 = vmul.f32 %v1787, 0.35355338
        %v1792 = vsel %vm974, %v1790, -inf
        %1793 = vmax.xlane.f32.xlu0 %v1792
        %v1794 = vpop.xlane.xlu0 %1793
        %v1795 = vsel %vm974, %v1791, -inf
        %1796 = vmax.xlane.f32.xlu0 %v1795
        %v1797 = vpop.xlane.xlu0 %1796
        %v1798 = vsub.f32 %v1790, %v1794
        %v1799 = vsub.f32 %v1791, %v1797
        %v1800 = vmul.f32 %v1798, 1.442695
        %v1801 = vpow.pop %v1800
        %v1802 = vmul.f32 %v1799, 1.442695
        %v1803 = vpow.pop %v1802
        %v1804 = vsel %vm974, %v1801, 0.0
        %1805 = vadd.xlane.f32.xlu0 %v1804
        %v1806 = vpop.xlane.xlu0 %1805
        %v1807 = vsel %vm974, %v1803, 0.0
        %1808 = vadd.xlane.f32.xlu0 %v1807
        %v1809 = vpop.xlane.xlu0 %1808
        %v1810 = vrcp.pop %v1806
        %v1811 = vrcp.pop %v1809
        %v1812 = vmul.f32 %v1801, %v1810
        %v1813 = vmul.f32 %v1803, %v1811
        %1814 = vrot.lane.b32.xlu0 %v963, 48
        %v1815 = vpop.permute.xlu0 %1814
        %v1818 = vsel %vm974, %v1812, 0
        %1820 = vmatprep.subr.mxu0 0.0
        %1821 = vmatpush1.msra.mxu0 %v1815
        %1822 = vmatprep.subr.mxu0 0.0
        %1823 = vmatpush1.msra.mxu0 0.0
        %1824 = vmatprep.subr.mxu0 0.0
        %1825 = vmatpush1.msra.mxu0 0.0
        %1826 = vmatprep.subr.mxu0 0.0
        %1827 = vmatpush1.msra.mxu0 0.0
        %1828 = vmatprep.subr.mxu0 0.0
        %1829 = vmatpush1.msra.mxu0 0.0
        %1830 = vmatprep.subr.mxu0 0.0
        %1831 = vmatpush1.msra.mxu0 0.0
        %1832 = vmatprep.subr.mxu0 0.0
        %1833 = vmatpush1.msra.mxu0 0.0
        %1834 = vmatprep.subr.mxu0 0.0
        %1835 = vmatpush1.msra.mxu0 0.0
        %1836 = vmatprep.subr.mxu0 0.0
        %1837 = vmatpush1.msra.mxu0 0.0
        %1838 = vmatprep.subr.mxu0 0.0
        %1839 = vmatpush1.msra.mxu0 0.0
        %1840 = vmatprep.subr.mxu0 0.0
        %1841 = vmatpush1.msra.mxu0 0.0
        %1842 = vmatprep.subr.mxu0 0.0
        %1843 = vmatpush1.msra.mxu0 0.0
        %1844 = vmatprep.subr.mxu0 0.0
        %1845 = vmatpush1.msra.mxu0 0.0
        %1846 = vmatprep.subr.mxu0 0.0
        %1847 = vmatpush1.msra.mxu0 0.0
        %1848 = vmatprep.subr.mxu0 0.0
        %1849 = vmatpush1.msra.mxu0 0.0
        %1850 = vmatprep.subr.mxu0 0.0
        %1851 = vmatpush1.msra.mxu0 0.0
        %1852 = vmatprep.subr.mxu0 0.0
        %1853 = vmatpush1.msra.mxu0 0.0
        %1854 = vmatprep.subr.mxu0 0.0
        %1855 = vmatpush1.msra.mxu0 0.0
        %1856 = vmatprep.subr.mxu0 0.0
        %1857 = vmatpush1.msra.mxu0 0.0
        %1858 = vmatprep.subr.mxu0 0.0
        %1859 = vmatpush1.msra.mxu0 0.0
        %1860 = vmatprep.subr.mxu0 0.0
        %1861 = vmatpush1.msra.mxu0 0.0
        %1862 = vmatprep.subr.mxu0 0.0
        %1863 = vmatpush1.msra.mxu0 0.0
        %1864 = vmatprep.subr.mxu0 0.0
        %1865 = vmatpush1.msra.mxu0 0.0
        %1866 = vmatprep.subr.mxu0 0.0
        %1867 = vmatpush1.msra.mxu0 0.0
        %1868 = vmatprep.subr.mxu0 0.0
        %1869 = vmatpush1.msra.mxu0 0.0
        %1870 = vmatprep.subr.mxu0 0.0
        %1871 = vmatpush1.msra.mxu0 0.0
        %1872 = vmatprep.subr.mxu0 0.0
        %1873 = vmatpush1.msra.mxu0 0.0
        %1874 = vmatprep.subr.mxu0 0.0
        %1875 = vmatpush1.msra.mxu0 0.0
        %1876 = vmatprep.subr.mxu0 0.0
        %1877 = vmatpush1.msra.mxu0 0.0
        %1878 = vmatprep.subr.mxu0 0.0
        %1879 = vmatpush1.msra.mxu0 0.0
        %1880 = vmatprep.subr.mxu0 0.0
        %1881 = vmatpush1.msra.mxu0 0.0
        %1882 = vmatprep.subr.mxu0 0.0
        %1883 = vmatpush1.msra.mxu0 0.0
        %1884 = vmatprep.mubr.f32.mxu0 0.0
        %1885 = vmatmul.mubr.f32.gmra.mrb[0].mxu0 %v1818
        %v1886 = vpop.f32.mrb[0].mxu0
        %v1887 = vadd.f32 0.0, %v1886
        %v1888 = vpop.f32.mrb[0].mxu0
        %1889 = vdwg.mxu0
        %1890 = vrot.lane.b32.xlu0 %v968, 48
        %v1891 = vpop.permute.xlu0 %1890
        %v1894 = vsel %vm974, %v1813, 0
        %1896 = vmatprep.subr.mxu0 0.0
        %1897 = vmatpush1.msra.mxu0 %v1891
        %1898 = vmatprep.subr.mxu0 0.0
        %1899 = vmatpush1.msra.mxu0 0.0
        %1900 = vmatprep.subr.mxu0 0.0
        %1901 = vmatpush1.msra.mxu0 0.0
        %1902 = vmatprep.subr.mxu0 0.0
        %1903 = vmatpush1.msra.mxu0 0.0
        %1904 = vmatprep.subr.mxu0 0.0
        %1905 = vmatpush1.msra.mxu0 0.0
        %1906 = vmatprep.subr.mxu0 0.0
        %1907 = vmatpush1.msra.mxu0 0.0
        %1908 = vmatprep.subr.mxu0 0.0
        %1909 = vmatpush1.msra.mxu0 0.0
        %1910 = vmatprep.subr.mxu0 0.0
        %1911 = vmatpush1.msra.mxu0 0.0
        %1912 = vmatprep.subr.mxu0 0.0
        %1913 = vmatpush1.msra.mxu0 0.0
        %1914 = vmatprep.subr.mxu0 0.0
        %1915 = vmatpush1.msra.mxu0 0.0
        %1916 = vmatprep.subr.mxu0 0.0
        %1917 = vmatpush1.msra.mxu0 0.0
        %1918 = vmatprep.subr.mxu0 0.0
        %1919 = vmatpush1.msra.mxu0 0.0
        %1920 = vmatprep.subr.mxu0 0.0
        %1921 = vmatpush1.msra.mxu0 0.0
        %1922 = vmatprep.subr.mxu0 0.0
        %1923 = vmatpush1.msra.mxu0 0.0
        %1924 = vmatprep.subr.mxu0 0.0
        %1925 = vmatpush1.msra.mxu0 0.0
        %1926 = vmatprep.subr.mxu0 0.0
        %1927 = vmatpush1.msra.mxu0 0.0
        %1928 = vmatprep.subr.mxu0 0.0
        %1929 = vmatpush1.msra.mxu0 0.0
        %1930 = vmatprep.subr.mxu0 0.0
        %1931 = vmatpush1.msra.mxu0 0.0
        %1932 = vmatprep.subr.mxu0 0.0
        %1933 = vmatpush1.msra.mxu0 0.0
        %1934 = vmatprep.subr.mxu0 0.0
        %1935 = vmatpush1.msra.mxu0 0.0
        %1936 = vmatprep.subr.mxu0 0.0
        %1937 = vmatpush1.msra.mxu0 0.0
        %1938 = vmatprep.subr.mxu0 0.0
        %1939 = vmatpush1.msra.mxu0 0.0
        %1940 = vmatprep.subr.mxu0 0.0
        %1941 = vmatpush1.msra.mxu0 0.0
        %1942 = vmatprep.subr.mxu0 0.0
        %1943 = vmatpush1.msra.mxu0 0.0
        %1944 = vmatprep.subr.mxu0 0.0
        %1945 = vmatpush1.msra.mxu0 0.0
        %1946 = vmatprep.subr.mxu0 0.0
        %1947 = vmatpush1.msra.mxu0 0.0
        %1948 = vmatprep.subr.mxu0 0.0
        %1949 = vmatpush1.msra.mxu0 0.0
        %1950 = vmatprep.subr.mxu0 0.0
        %1951 = vmatpush1.msra.mxu0 0.0
        %1952 = vmatprep.subr.mxu0 0.0
        %1953 = vmatpush1.msra.mxu0 0.0
        %1954 = vmatprep.subr.mxu0 0.0
        %1955 = vmatpush1.msra.mxu0 0.0
        %1956 = vmatprep.subr.mxu0 0.0
        %1957 = vmatpush1.msra.mxu0 0.0
        %1958 = vmatprep.subr.mxu0 0.0
        %1959 = vmatpush1.msra.mxu0 0.0
        %1960 = vmatprep.mubr.f32.mxu0 0.0
        %1961 = vmatmul.mubr.f32.gmra.mrb[0].mxu0 %v1894
        %v1962 = vpop.f32.mrb[0].mxu0
        %v1963 = vadd.f32 0.0, %v1962
        %v1964 = vpop.f32.mrb[0].mxu0
        %1965 = vdwg.mxu0
        %1966 = vrot.lane.b32.xlu0 %v963, 104
        %v1967 = vpop.permute.xlu0 %1966
        %1968 = vrot.lane.b32.xlu0 %v963, 72
        %v1969 = vpop.permute.xlu0 %1968
        %v1970 = vsel %vm974, %v1967, 0
        %v1972 = vsel %vm974, %v1969, 0
        %1974 = vmatprep.subr.mxu0 0.0
        %1975 = vmatpush1.xpose.msra.mxu0 %v1972
        %1976 = vmatprep.subr.mxu0 0.0
        %1977 = vmatpush1.xpose.msra.mxu0 0.0
        %1978 = vmatprep.subr.mxu0 0.0
        %1979 = vmatpush1.xpose.msra.mxu0 0.0
        %1980 = vmatprep.subr.mxu0 0.0
        %1981 = vmatpush1.xpose.msra.mxu0 0.0
        %1982 = vmatprep.subr.mxu0 0.0
        %1983 = vmatpush1.xpose.msra.mxu0 0.0
        %1984 = vmatprep.subr.mxu0 0.0
        %1985 = vmatpush1.xpose.msra.mxu0 0.0
        %1986 = vmatprep.subr.mxu0 0.0
        %1987 = vmatpush1.xpose.msra.mxu0 0.0
        %1988 = vmatprep.subr.mxu0 0.0
        %1989 = vmatpush1.xpose.msra.mxu0 0.0
        %1990 = vmatprep.subr.mxu0 0.0
        %1991 = vmatpush1.xpose.msra.mxu0 0.0
        %1992 = vmatprep.subr.mxu0 0.0
        %1993 = vmatpush1.xpose.msra.mxu0 0.0
        %1994 = vmatprep.subr.mxu0 0.0
        %1995 = vmatpush1.xpose.msra.mxu0 0.0
        %1996 = vmatprep.subr.mxu0 0.0
        %1997 = vmatpush1.xpose.msra.mxu0 0.0
        %1998 = vmatprep.subr.mxu0 0.0
        %1999 = vmatpush1.xpose.msra.mxu0 0.0
        %2000 = vmatprep.subr.mxu0 0.0
        %2001 = vmatpush1.xpose.msra.mxu0 0.0
        %2002 = vmatprep.subr.mxu0 0.0
        %2003 = vmatpush1.xpose.msra.mxu0 0.0
        %2004 = vmatprep.subr.mxu0 0.0
        %2005 = vmatpush1.xpose.msra.mxu0 0.0
        %2006 = vmatprep.subr.mxu0 0.0
        %2007 = vmatpush1.xpose.msra.mxu0 0.0
        %2008 = vmatprep.subr.mxu0 0.0
        %2009 = vmatpush1.xpose.msra.mxu0 0.0
        %2010 = vmatprep.subr.mxu0 0.0
        %2011 = vmatpush1.xpose.msra.mxu0 0.0
        %2012 = vmatprep.subr.mxu0 0.0
        %2013 = vmatpush1.xpose.msra.mxu0 0.0
        %2014 = vmatprep.subr.mxu0 0.0
        %2015 = vmatpush1.xpose.msra.mxu0 0.0
        %2016 = vmatprep.subr.mxu0 0.0
        %2017 = vmatpush1.xpose.msra.mxu0 0.0
        %2018 = vmatprep.subr.mxu0 0.0
        %2019 = vmatpush1.xpose.msra.mxu0 0.0
        %2020 = vmatprep.subr.mxu0 0.0
        %2021 = vmatpush1.xpose.msra.mxu0 0.0
        %2022 = vmatprep.subr.mxu0 0.0
        %2023 = vmatpush1.xpose.msra.mxu0 0.0
        %2024 = vmatprep.subr.mxu0 0.0
        %2025 = vmatpush1.xpose.msra.mxu0 0.0
        %2026 = vmatprep.subr.mxu0 0.0
        %2027 = vmatpush1.xpose.msra.mxu0 0.0
        %2028 = vmatprep.subr.mxu0 0.0
        %2029 = vmatpush1.xpose.msra.mxu0 0.0
        %2030 = vmatprep.subr.mxu0 0.0
        %2031 = vmatpush1.xpose.msra.mxu0 0.0
        %2032 = vmatprep.subr.mxu0 0.0
        %2033 = vmatpush1.xpose.msra.mxu0 0.0
        %2034 = vmatprep.subr.mxu0 0.0
        %2035 = vmatpush1.xpose.msra.mxu0 0.0
        %2036 = vmatprep.subr.mxu0 0.0
        %2037 = vmatpush1.xpose.msra.mxu0 0.0
        %2038 = vmatprep.mubr.f32.mxu0 0.0
        %2039 = vmatmul.mubr.f32.gmra.mrb[0].mxu0 %v1970
        %v2040 = vpop.f32.mrb[0].mxu0
        %v2041 = vadd.f32 0.0, %v2040
        %v2042 = vpop.f32.mrb[0].mxu0
        %2043 = vdwg.mxu0
        %2044 = vrot.lane.b32.xlu0 %v968, 104
        %v2045 = vpop.permute.xlu0 %2044
        %2046 = vrot.lane.b32.xlu0 %v968, 72
        %v2047 = vpop.permute.xlu0 %2046
        %v2048 = vsel %vm974, %v2045, 0
        %v2050 = vsel %vm974, %v2047, 0
        %2052 = vmatprep.subr.mxu0 0.0
        %2053 = vmatpush1.xpose.msra.mxu0 %v2050
        %2054 = vmatprep.subr.mxu0 0.0
        %2055 = vmatpush1.xpose.msra.mxu0 0.0
        %2056 = vmatprep.subr.mxu0 0.0
        %2057 = vmatpush1.xpose.msra.mxu0 0.0
        %2058 = vmatprep.subr.mxu0 0.0
        %2059 = vmatpush1.xpose.msra.mxu0 0.0
        %2060 = vmatprep.subr.mxu0 0.0
        %2061 = vmatpush1.xpose.msra.mxu0 0.0
        %2062 = vmatprep.subr.mxu0 0.0
        %2063 = vmatpush1.xpose.msra.mxu0 0.0
        %2064 = vmatprep.subr.mxu0 0.0
        %2065 = vmatpush1.xpose.msra.mxu0 0.0
        %2066 = vmatprep.subr.mxu0 0.0
        %2067 = vmatpush1.xpose.msra.mxu0 0.0
        %2068 = vmatprep.subr.mxu0 0.0
        %2069 = vmatpush1.xpose.msra.mxu0 0.0
        %2070 = vmatprep.subr.mxu0 0.0
        %2071 = vmatpush1.xpose.msra.mxu0 0.0
        %2072 = vmatprep.subr.mxu0 0.0
        %2073 = vmatpush1.xpose.msra.mxu0 0.0
        %2074 = vmatprep.subr.mxu0 0.0
        %2075 = vmatpush1.xpose.msra.mxu0 0.0
        %2076 = vmatprep.subr.mxu0 0.0
        %2077 = vmatpush1.xpose.msra.mxu0 0.0
        %2078 = vmatprep.subr.mxu0 0.0
        %2079 = vmatpush1.xpose.msra.mxu0 0.0
        %2080 = vmatprep.subr.mxu0 0.0
        %2081 = vmatpush1.xpose.msra.mxu0 0.0
        %2082 = vmatprep.subr.mxu0 0.0
        %2083 = vmatpush1.xpose.msra.mxu0 0.0
        %2084 = vmatprep.subr.mxu0 0.0
        %2085 = vmatpush1.xpose.msra.mxu0 0.0
        %2086 = vmatprep.subr.mxu0 0.0
        %2087 = vmatpush1.xpose.msra.mxu0 0.0
        %2088 = vmatprep.subr.mxu0 0.0
        %2089 = vmatpush1.xpose.msra.mxu0 0.0
        %2090 = vmatprep.subr.mxu0 0.0
        %2091 = vmatpush1.xpose.msra.mxu0 0.0
        %2092 = vmatprep.subr.mxu0 0.0
        %2093 = vmatpush1.xpose.msra.mxu0 0.0
        %2094 = vmatprep.subr.mxu0 0.0
        %2095 = vmatpush1.xpose.msra.mxu0 0.0
        %2096 = vmatprep.subr.mxu0 0.0
        %2097 = vmatpush1.xpose.msra.mxu0 0.0
        %2098 = vmatprep.subr.mxu0 0.0
        %2099 = vmatpush1.xpose.msra.mxu0 0.0
        %2100 = vmatprep.subr.mxu0 0.0
        %2101 = vmatpush1.xpose.msra.mxu0 0.0
        %2102 = vmatprep.subr.mxu0 0.0
        %2103 = vmatpush1.xpose.msra.mxu0 0.0
        %2104 = vmatprep.subr.mxu0 0.0
        %2105 = vmatpush1.xpose.msra.mxu0 0.0
        %2106 = vmatprep.subr.mxu0 0.0
        %2107 = vmatpush1.xpose.msra.mxu0 0.0
        %2108 = vmatprep.subr.mxu0 0.0
        %2109 = vmatpush1.xpose.msra.mxu0 0.0
        %2110 = vmatprep.subr.mxu0 0.0
        %2111 = vmatpush1.xpose.msra.mxu0 0.0
        %2112 = vmatprep.subr.mxu0 0.0
        %2113 = vmatpush1.xpose.msra.mxu0 0.0
        %2114 = vmatprep.subr.mxu0 0.0
        %2115 = vmatpush1.xpose.msra.mxu0 0.0
        %2116 = vmatprep.mubr.f32.mxu0 0.0
        %2117 = vmatmul.mubr.f32.gmra.mrb[0].mxu0 %v2048
        %v2118 = vpop.f32.mrb[0].mxu0
        %v2119 = vadd.f32 0.0, %v2118
        %v2120 = vpop.f32.mrb[0].mxu0
        %2121 = vdwg.mxu0
        %v2122 = vmul.f32 %v2041, 0.35355338
        %v2123 = vmul.f32 %v2119, 0.35355338
        %v2124 = vsel %vm974, %v2122, -inf
        %2125 = vmax.xlane.f32.xlu0 %v2124
        %v2126 = vpop.xlane.xlu0 %2125
        %v2127 = vsel %vm974, %v2123, -inf
        %2128 = vmax.xlane.f32.xlu0 %v2127
        %v2129 = vpop.xlane.xlu0 %2128
        %v2130 = vsub.f32 %v2122, %v2126
        %v2131 = vsub.f32 %v2123, %v2129
        %v2132 = vmul.f32 %v2130, 1.442695
        %v2133 = vpow.pop %v2132
        %v2134 = vmul.f32 %v2131, 1.442695
        %v2135 = vpow.pop %v2134
        %v2136 = vsel %vm974, %v2133, 0.0
        %2137 = vadd.xlane.f32.xlu0 %v2136
        %v2138 = vpop.xlane.xlu0 %2137
        %v2139 = vsel %vm974, %v2135, 0.0
        %2140 = vadd.xlane.f32.xlu0 %v2139
        %v2141 = vpop.xlane.xlu0 %2140
        %v2142 = vrcp.pop %v2138
        %v2143 = vrcp.pop %v2141
        %v2144 = vmul.f32 %v2133, %v2142
        %v2145 = vmul.f32 %v2135, %v2143
        %2146 = vrot.lane.b32.xlu0 %v963, 40
        %v2147 = vpop.permute.xlu0 %2146
        %v2150 = vsel %vm974, %v2144, 0
        %2152 = vmatprep.subr.mxu0 0.0
        %2153 = vmatpush1.msra.mxu0 %v2147
        %2154 = vmatprep.subr.mxu0 0.0
        %2155 = vmatpush1.msra.mxu0 0.0
        %2156 = vmatprep.subr.mxu0 0.0
        %2157 = vmatpush1.msra.mxu0 0.0
        %2158 = vmatprep.subr.mxu0 0.0
        %2159 = vmatpush1.msra.mxu0 0.0
        %2160 = vmatprep.subr.mxu0 0.0
        %2161 = vmatpush1.msra.mxu0 0.0
        %2162 = vmatprep.subr.mxu0 0.0
        %2163 = vmatpush1.msra.mxu0 0.0
        %2164 = vmatprep.subr.mxu0 0.0
        %2165 = vmatpush1.msra.mxu0 0.0
        %2166 = vmatprep.subr.mxu0 0.0
        %2167 = vmatpush1.msra.mxu0 0.0
        %2168 = vmatprep.subr.mxu0 0.0
        %2169 = vmatpush1.msra.mxu0 0.0
        %2170 = vmatprep.subr.mxu0 0.0
        %2171 = vmatpush1.msra.mxu0 0.0
        %2172 = vmatprep.subr.mxu0 0.0
        %2173 = vmatpush1.msra.mxu0 0.0
        %2174 = vmatprep.subr.mxu0 0.0
        %2175 = vmatpush1.msra.mxu0 0.0
        %2176 = vmatprep.subr.mxu0 0.0
        %2177 = vmatpush1.msra.mxu0 0.0
        %2178 = vmatprep.subr.mxu0 0.0
        %2179 = vmatpush1.msra.mxu0 0.0
        %2180 = vmatprep.subr.mxu0 0.0
        %2181 = vmatpush1.msra.mxu0 0.0
        %2182 = vmatprep.subr.mxu0 0.0
        %2183 = vmatpush1.msra.mxu0 0.0
        %2184 = vmatprep.subr.mxu0 0.0
        %2185 = vmatpush1.msra.mxu0 0.0
        %2186 = vmatprep.subr.mxu0 0.0
        %2187 = vmatpush1.msra.mxu0 0.0
        %2188 = vmatprep.subr.mxu0 0.0
        %2189 = vmatpush1.msra.mxu0 0.0
        %2190 = vmatprep.subr.mxu0 0.0
        %2191 = vmatpush1.msra.mxu0 0.0
        %2192 = vmatprep.subr.mxu0 0.0
        %2193 = vmatpush1.msra.mxu0 0.0
        %2194 = vmatprep.subr.mxu0 0.0
        %2195 = vmatpush1.msra.mxu0 0.0
        %2196 = vmatprep.subr.mxu0 0.0
        %2197 = vmatpush1.msra.mxu0 0.0
        %2198 = vmatprep.subr.mxu0 0.0
        %2199 = vmatpush1.msra.mxu0 0.0
        %2200 = vmatprep.subr.mxu0 0.0
        %2201 = vmatpush1.msra.mxu0 0.0
        %2202 = vmatprep.subr.mxu0 0.0
        %2203 = vmatpush1.msra.mxu0 0.0
        %2204 = vmatprep.subr.mxu0 0.0
        %2205 = vmatpush1.msra.mxu0 0.0
        %2206 = vmatprep.subr.mxu0 0.0
        %2207 = vmatpush1.msra.mxu0 0.0
        %2208 = vmatprep.subr.mxu0 0.0
        %2209 = vmatpush1.msra.mxu0 0.0
        %2210 = vmatprep.subr.mxu0 0.0
        %2211 = vmatpush1.msra.mxu0 0.0
        %2212 = vmatprep.subr.mxu0 0.0
        %2213 = vmatpush1.msra.mxu0 0.0
        %2214 = vmatprep.subr.mxu0 0.0
        %2215 = vmatpush1.msra.mxu0 0.0
        %2216 = vmatprep.mubr.f32.mxu0 0.0
        %2217 = vmatmul.mubr.f32.gmra.mrb[0].mxu0 %v2150
        %v2218 = vpop.f32.mrb[0].mxu0
        %v2219 = vadd.f32 0.0, %v2218
        %v2220 = vpop.f32.mrb[0].mxu0
        %2221 = vdwg.mxu0
        %2222 = vrot.lane.b32.xlu0 %v968, 40
        %v2223 = vpop.permute.xlu0 %2222
        %v2226 = vsel %vm974, %v2145, 0
        %2228 = vmatprep.subr.mxu0 0.0
        %2229 = vmatpush1.msra.mxu0 %v2223
        %2230 = vmatprep.subr.mxu0 0.0
        %2231 = vmatpush1.msra.mxu0 0.0
        %2232 = vmatprep.subr.mxu0 0.0
        %2233 = vmatpush1.msra.mxu0 0.0
        %2234 = vmatprep.subr.mxu0 0.0
        %2235 = vmatpush1.msra.mxu0 0.0
        %2236 = vmatprep.subr.mxu0 0.0
        %2237 = vmatpush1.msra.mxu0 0.0
        %2238 = vmatprep.subr.mxu0 0.0
        %2239 = vmatpush1.msra.mxu0 0.0
        %2240 = vmatprep.subr.mxu0 0.0
        %2241 = vmatpush1.msra.mxu0 0.0
        %2242 = vmatprep.subr.mxu0 0.0
        %2243 = vmatpush1.msra.mxu0 0.0
        %2244 = vmatprep.subr.mxu0 0.0
        %2245 = vmatpush1.msra.mxu0 0.0
        %2246 = vmatprep.subr.mxu0 0.0
        %2247 = vmatpush1.msra.mxu0 0.0
        %2248 = vmatprep.subr.mxu0 0.0
        %2249 = vmatpush1.msra.mxu0 0.0
        %2250 = vmatprep.subr.mxu0 0.0
        %2251 = vmatpush1.msra.mxu0 0.0
        %2252 = vmatprep.subr.mxu0 0.0
        %2253 = vmatpush1.msra.mxu0 0.0
        %2254 = vmatprep.subr.mxu0 0.0
        %2255 = vmatpush1.msra.mxu0 0.0
        %2256 = vmatprep.subr.mxu0 0.0
        %2257 = vmatpush1.msra.mxu0 0.0
        %2258 = vmatprep.subr.mxu0 0.0
        %2259 = vmatpush1.msra.mxu0 0.0
        %2260 = vmatprep.subr.mxu0 0.0
        %2261 = vmatpush1.msra.mxu0 0.0
        %2262 = vmatprep.subr.mxu0 0.0
        %2263 = vmatpush1.msra.mxu0 0.0
        %2264 = vmatprep.subr.mxu0 0.0
        %2265 = vmatpush1.msra.mxu0 0.0
        %2266 = vmatprep.subr.mxu0 0.0
        %2267 = vmatpush1.msra.mxu0 0.0
        %2268 = vmatprep.subr.mxu0 0.0
        %2269 = vmatpush1.msra.mxu0 0.0
        %2270 = vmatprep.subr.mxu0 0.0
        %2271 = vmatpush1.msra.mxu0 0.0
        %2272 = vmatprep.subr.mxu0 0.0
        %2273 = vmatpush1.msra.mxu0 0.0
        %2274 = vmatprep.subr.mxu0 0.0
        %2275 = vmatpush1.msra.mxu0 0.0
        %2276 = vmatprep.subr.mxu0 0.0
        %2277 = vmatpush1.msra.mxu0 0.0
        %2278 = vmatprep.subr.mxu0 0.0
        %2279 = vmatpush1.msra.mxu0 0.0
        %2280 = vmatprep.subr.mxu0 0.0
        %2281 = vmatpush1.msra.mxu0 0.0
        %2282 = vmatprep.subr.mxu0 0.0
        %2283 = vmatpush1.msra.mxu0 0.0
        %2284 = vmatprep.subr.mxu0 0.0
        %2285 = vmatpush1.msra.mxu0 0.0
        %2286 = vmatprep.subr.mxu0 0.0
        %2287 = vmatpush1.msra.mxu0 0.0
        %2288 = vmatprep.subr.mxu0 0.0
        %2289 = vmatpush1.msra.mxu0 0.0
        %2290 = vmatprep.subr.mxu0 0.0
        %2291 = vmatpush1.msra.mxu0 0.0
        %2292 = vmatprep.mubr.f32.mxu0 0.0
        %2293 = vmatmul.mubr.f32.gmra.mrb[0].mxu0 %v2226
        %v2294 = vpop.f32.mrb[0].mxu0
        %v2295 = vadd.f32 0.0, %v2294
        %v2296 = vpop.f32.mrb[0].mxu0
        %2297 = vdwg.mxu0
        %2300 = vrot.lane.b32.xlu0 %v1555, 8
        %v2301 = vpop.permute.xlu0 %2300
        %2302 = vrot.lane.b32.xlu0 %v1631, 8
        %v2303 = vpop.permute.xlu0 %2302
        %2308 = vrot.lane.b32.xlu0 %v1887, 16
        %v2309 = vpop.permute.xlu0 %2308
        %2310 = vrot.lane.b32.xlu0 %v1963, 16
        %v2311 = vpop.permute.xlu0 %2310
        %2316 = vrot.lane.b32.xlu0 %v2219, 24
        %v2317 = vpop.permute.xlu0 %2316
        %2318 = vrot.lane.b32.xlu0 %v2295, 24
        %v2319 = vpop.permute.xlu0 %2318
        %v2322 = vsel %vm974, %v1223, %v2301
        %v2323 = vsel %vm974, %v1299, %v2303
        %vm2324 = vcmask 130048
        %v2325 = vsel %vm2324, %v2322, %v2309
        %v2326 = vsel %vm2324, %v2323, %v2311
        %vm2327 = vcmask 195584
        %v2328 = vsel %vm2327, %v2325, %v2317
        %v2329 = vsel %vm2327, %v2326, %v2319
        %v2330 = vld [vmem:[%s778] sm:$0xff]
        %v2331 = vld [vmem:[%s778 + $0x8] sm:$0xff]
        %v2332 = vld [vmem:[%s778 + $0x10] sm:$0xff]
        %v2333 = vld [vmem:[%s778 + $0x18] sm:$0xff]
        %v2334 = vld [vmem:[%s781] sm:$0x1]
        %v2336 = vlaneseq
        %v2337 = vshrl.u32 %v2336, 7
        %v2338 = vsub.s32 0, %v2337
        %v2339 = vrot.slane %v2334, %v2338
        %v2342 = vsel %vm820, %v2328, 0
        %v2345 = vsel %vm820, %v2329, 0
        %2347 = vmatprep.subr.mxu0 0.0
        %2348 = vmatpush1.msra.mxu0 %v2330
        %2349 = vmatprep.subr.mxu0 0.0
        %2350 = vmatpush1.msra.mxu0 %v2331
        %2351 = vmatprep.subr.mxu0 0.0
        %2352 = vmatpush1.msra.mxu0 %v2332
        %2353 = vmatprep.subr.mxu0 0.0
        %2354 = vmatpush1.msra.mxu0 %v2333
        %2355 = vmatprep.subr.mxu0 0.0
        %2356 = vmatpush1.msra.mxu0 0.0
        %2357 = vmatprep.subr.mxu0 0.0
        %2358 = vmatpush1.msra.mxu0 0.0
        %2359 = vmatprep.subr.mxu0 0.0
        %2360 = vmatpush1.msra.mxu0 0.0
        %2361 = vmatprep.subr.mxu0 0.0
        %2362 = vmatpush1.msra.mxu0 0.0
        %2363 = vmatprep.subr.mxu0 0.0
        %2364 = vmatpush1.msra.mxu0 0.0
        %2365 = vmatprep.subr.mxu0 0.0
        %2366 = vmatpush1.msra.mxu0 0.0
        %2367 = vmatprep.subr.mxu0 0.0
        %2368 = vmatpush1.msra.mxu0 0.0
        %2369 = vmatprep.subr.mxu0 0.0
        %2370 = vmatpush1.msra.mxu0 0.0
        %2371 = vmatprep.subr.mxu0 0.0
        %2372 = vmatpush1.msra.mxu0 0.0
        %2373 = vmatprep.subr.mxu0 0.0
        %2374 = vmatpush1.msra.mxu0 0.0
        %2375 = vmatprep.subr.mxu0 0.0
        %2376 = vmatpush1.msra.mxu0 0.0
        %2377 = vmatprep.subr.mxu0 0.0
        %2378 = vmatpush1.msra.mxu0 0.0
        %2379 = vmatprep.subr.mxu0 0.0
        %2380 = vmatpush1.msra.mxu0 0.0
        %2381 = vmatprep.subr.mxu0 0.0
        %2382 = vmatpush1.msra.mxu0 0.0
        %2383 = vmatprep.subr.mxu0 0.0
        %2384 = vmatpush1.msra.mxu0 0.0
        %2385 = vmatprep.subr.mxu0 0.0
        %2386 = vmatpush1.msra.mxu0 0.0
        %2387 = vmatprep.subr.mxu0 0.0
        %2388 = vmatpush1.msra.mxu0 0.0
        %2389 = vmatprep.subr.mxu0 0.0
        %2390 = vmatpush1.msra.mxu0 0.0
        %2391 = vmatprep.subr.mxu0 0.0
        %2392 = vmatpush1.msra.mxu0 0.0
        %2393 = vmatprep.subr.mxu0 0.0
        %2394 = vmatpush1.msra.mxu0 0.0
        %2395 = vmatprep.subr.mxu0 0.0
        %2396 = vmatpush1.msra.mxu0 0.0
        %2397 = vmatprep.subr.mxu0 0.0
        %2398 = vmatpush1.msra.mxu0 0.0
        %2399 = vmatprep.subr.mxu0 0.0
        %2400 = vmatpush1.msra.mxu0 0.0
        %2401 = vmatprep.subr.mxu0 0.0
        %2402 = vmatpush1.msra.mxu0 0.0
        %2403 = vmatprep.subr.mxu0 0.0
        %2404 = vmatpush1.msra.mxu0 0.0
        %2405 = vmatprep.subr.mxu0 0.0
        %2406 = vmatpush1.msra.mxu0 0.0
        %2407 = vmatprep.subr.mxu0 0.0
        %2408 = vmatpush1.msra.mxu0 0.0
        %2409 = vmatprep.subr.mxu0 0.0
        %2410 = vmatpush1.msra.mxu0 0.0
        %2411 = vmatprep.mubr.f32.mxu0 0.0
        %2412 = vmatmul.mubr.f32.gmra.mrb[0].mxu0 %v2342
        %v2413 = vpop.f32.mrb[0].mxu0
        %v2414 = vadd.f32 %v2339, %v2413
        %v2415 = vpop.f32.mrb[0].mxu0
        %2416 = vmatprep.mubr.f32.mxu0 0.0
        %2417 = vmatmul.mubr.f32.gmra.mrb[0].mxu0 %v2345
        %v2418 = vpop.f32.mrb[0].mxu0
        %v2419 = vadd.f32 %v2339, %v2418
        %v2420 = vpop.f32.mrb[0].mxu0
        %2421 = vdwg.mxu0
        %v2422 = vadd.f32 %v816, %v2414
        %v2423 = vadd.f32 %v817, %v2419
        %v2424 = vld [vmem:[%s784] sm:$0x1]
        %v2425 = vld [vmem:[%s787] sm:$0x1]
        %v2426 = vsel %vm820, %v2422, 0.0
        %2427 = vadd.xlane.f32.xlu0 %v2426
        %v2428 = vpop.xlane.xlu0 %2427
        %v2429 = vsel %vm820, %v2423, 0.0
        %2430 = vadd.xlane.f32.xlu0 %v2429
        %v2431 = vpop.xlane.xlu0 %2430
        %v2432 = vmul.f32 %v2428, %v827
        %v2433 = vmul.f32 %v2431, %v827
        %v2434 = vsub.f32 %v2422, %v2432
        %v2435 = vsub.f32 %v2423, %v2433
        %v2436 = vmul.f32 %v2434, %v2434
        %v2437 = vmul.f32 %v2435, %v2435
        %v2438 = vsel %vm820, %v2436, 0.0
        %2439 = vadd.xlane.f32.xlu0 %v2438
        %v2440 = vpop.xlane.xlu0 %2439
        %v2441 = vsel %vm820, %v2437, 0.0
        %2442 = vadd.xlane.f32.xlu0 %v2441
        %v2443 = vpop.xlane.xlu0 %2442
        %v2444 = vmul.f32 %v2440, %v840
        %v2445 = vmul.f32 %v2443, %v840
        %v2446 = vrsqrt.pop %v2444
        %v2447 = vmul.f32 %v2444, %v2446
        %vm2448 = vcmp.eq.f32.partialorder %v2444, inf
        %v2449 = vsel %vm2448, %v2444, %v2447
        %vm2450 = vcmp.eq.f32.partialorder %v2444, 0.0
        %v2451 = vand.u32 %v2444, 2147483648
        %v2452 = vsel %vm2450, %v2451, %v2449
        %v2453 = vrsqrt.pop %v2445
        %v2454 = vmul.f32 %v2445, %v2453
        %vm2455 = vcmp.eq.f32.partialorder %v2445, inf
        %v2456 = vsel %vm2455, %v2445, %v2454
        %vm2457 = vcmp.eq.f32.partialorder %v2445, 0.0
        %v2458 = vand.u32 %v2445, 2147483648
        %v2459 = vsel %vm2457, %v2458, %v2456
        %v2461 = vlaneseq
        %v2462 = vshrl.u32 %v2461, 7
        %v2463 = vsub.s32 0, %v2462
        %v2464 = vrot.slane %v2424, %v2463
        %v2466 = vmul.f32 %v2464, %v2434
        %v2467 = vmul.f32 %v2464, %v2435
        %v2468 = vadd.f32 %v2452, 1e-06
        %v2469 = vadd.f32 %v2459, 1e-06
        %v2470 = vrcp.pop %v2468
        %v2471 = vmul.f32 %v2466, %v2470
        %v2472 = vrcp.pop %v2469
        %v2473 = vmul.f32 %v2467, %v2472
        %v2475 = vlaneseq
        %v2476 = vshrl.u32 %v2475, 7
        %v2477 = vsub.s32 0, %v2476
        %v2478 = vrot.slane %v2425, %v2477
        %v2480 = vadd.f32 %v2471, %v2478
        %v2481 = vadd.f32 %v2473, %v2478
        %v2482 = vld [vmem:[%s792] sm:$0xff]
        %v2483 = vld [vmem:[%s792 + $0x8] sm:$0xff]
        %v2484 = vld [vmem:[%s792 + $0x10] sm:$0xff]
        %v2485 = vld [vmem:[%s792 + $0x18] sm:$0xff]
        %v2486 = vld [vmem:[%s795] sm:$0x1]
        %v2488 = vlaneseq
        %v2489 = vshrl.u32 %v2488, 7
        %v2490 = vsub.s32 0, %v2489
        %v2491 = vrot.slane %v2486, %v2490
        %v2494 = vsel %vm820, %v2480, 0
        %v2497 = vsel %vm820, %v2481, 0
        %2499 = vmatprep.subr.mxu0 0.0
        %2500 = vmatpush1.msra.mxu0 %v2482
        %2501 = vmatprep.subr.mxu0 0.0
        %2502 = vmatpush1.msra.mxu0 %v2483
        %2503 = vmatprep.subr.mxu0 0.0
        %2504 = vmatpush1.msra.mxu0 %v2484
        %2505 = vmatprep.subr.mxu0 0.0
        %2506 = vmatpush1.msra.mxu0 %v2485
        %2507 = vmatprep.subr.mxu0 0.0
        %2508 = vmatpush1.msra.mxu0 0.0
        %2509 = vmatprep.subr.mxu0 0.0
        %2510 = vmatpush1.msra.mxu0 0.0
        %2511 = vmatprep.subr.mxu0 0.0
        %2512 = vmatpush1.msra.mxu0 0.0
        %2513 = vmatprep.subr.mxu0 0.0
        %2514 = vmatpush1.msra.mxu0 0.0
        %2515 = vmatprep.subr.mxu0 0.0
        %2516 = vmatpush1.msra.mxu0 0.0
        %2517 = vmatprep.subr.mxu0 0.0
        %2518 = vmatpush1.msra.mxu0 0.0
        %2519 = vmatprep.subr.mxu0 0.0
        %2520 = vmatpush1.msra.mxu0 0.0
        %2521 = vmatprep.subr.mxu0 0.0
        %2522 = vmatpush1.msra.mxu0 0.0
        %2523 = vmatprep.subr.mxu0 0.0
        %2524 = vmatpush1.msra.mxu0 0.0
        %2525 = vmatprep.subr.mxu0 0.0
        %2526 = vmatpush1.msra.mxu0 0.0
        %2527 = vmatprep.subr.mxu0 0.0
        %2528 = vmatpush1.msra.mxu0 0.0
        %2529 = vmatprep.subr.mxu0 0.0
        %2530 = vmatpush1.msra.mxu0 0.0
        %2531 = vmatprep.subr.mxu0 0.0
        %2532 = vmatpush1.msra.mxu0 0.0
        %2533 = vmatprep.subr.mxu0 0.0
        %2534 = vmatpush1.msra.mxu0 0.0
        %2535 = vmatprep.subr.mxu0 0.0
        %2536 = vmatpush1.msra.mxu0 0.0
        %2537 = vmatprep.subr.mxu0 0.0
        %2538 = vmatpush1.msra.mxu0 0.0
        %2539 = vmatprep.subr.mxu0 0.0
        %2540 = vmatpush1.msra.mxu0 0.0
        %2541 = vmatprep.subr.mxu0 0.0
        %2542 = vmatpush1.msra.mxu0 0.0
        %2543 = vmatprep.subr.mxu0 0.0
        %2544 = vmatpush1.msra.mxu0 0.0
        %2545 = vmatprep.subr.mxu0 0.0
        %2546 = vmatpush1.msra.mxu0 0.0
        %2547 = vmatprep.subr.mxu0 0.0
        %2548 = vmatpush1.msra.mxu0 0.0
        %2549 = vmatprep.subr.mxu0 0.0
        %2550 = vmatpush1.msra.mxu0 0.0
        %2551 = vmatprep.subr.mxu0 0.0
        %2552 = vmatpush1.msra.mxu0 0.0
        %2553 = vmatprep.subr.mxu0 0.0
        %2554 = vmatpush1.msra.mxu0 0.0
        %2555 = vmatprep.subr.mxu0 0.0
        %2556 = vmatpush1.msra.mxu0 0.0
        %2557 = vmatprep.subr.mxu0 0.0
        %2558 = vmatpush1.msra.mxu0 0.0
        %2559 = vmatprep.subr.mxu0 0.0
        %2560 = vmatpush1.msra.mxu0 0.0
        %2561 = vmatprep.subr.mxu0 0.0
        %2562 = vmatpush1.msra.mxu0 0.0
        %2563 = vmatprep.mubr.f32.mxu0 0.0
        %2564 = vmatmul.mubr.f32.gmra.mrb[0].mxu0 %v2494
        %v2565 = vpop.f32.mrb[0].mxu0
        %v2566 = vadd.f32 %v2491, %v2565
        %v2567 = vpop.f32.mrb[0].mxu0
        %2568 = vmatprep.mubr.f32.mxu0 0.0
        %2569 = vmatmul.mubr.f32.gmra.mrb[0].mxu0 %v2497
        %v2570 = vpop.f32.mrb[0].mxu0
        %v2571 = vadd.f32 %v2491, %v2570
        %v2572 = vpop.f32.mrb[0].mxu0
        %2573 = vdwg.mxu0
        %v2574 = vmax.f32 %v2566, 0.0
        %v2575 = vmax.f32 %v2571, 0.0
        %v2576 = vld [vmem:[%s800] sm:$0xff]
        %v2577 = vld [vmem:[%s800 + $0x8] sm:$0xff]
        %v2578 = vld [vmem:[%s800 + $0x10] sm:$0xff]
        %v2579 = vld [vmem:[%s800 + $0x18] sm:$0xff]
        %v2580 = vld [vmem:[%s800 + $0x20] sm:$0xff]
        %v2581 = vld [vmem:[%s800 + $0x28] sm:$0xff]
        %v2582 = vld [vmem:[%s800 + $0x30] sm:$0xff]
        %v2583 = vld [vmem:[%s800 + $0x38] sm:$0xff]
        %v2584 = vld [vmem:[%s803] sm:$0x1]
        %v2586 = vlaneseq
        %v2587 = vshrl.u32 %v2586, 7
        %v2588 = vsub.s32 0, %v2587
        %v2589 = vrot.slane %v2584, %v2588
        %vm2591 = vcmask 523264
        %v2593 = vsel %vm2591, %v2574, 0
        %v2596 = vsel %vm2591, %v2575, 0
        %2598 = vmatprep.subr.mxu0 0.0
        %2599 = vmatpush1.msra.mxu0 %v2576
        %2600 = vmatprep.subr.mxu0 0.0
        %2601 = vmatpush1.msra.mxu0 %v2577
        %2602 = vmatprep.subr.mxu0 0.0
        %2603 = vmatpush1.msra.mxu0 %v2578
        %2604 = vmatprep.subr.mxu0 0.0
        %2605 = vmatpush1.msra.mxu0 %v2579
        %2606 = vmatprep.subr.mxu0 0.0
        %2607 = vmatpush1.msra.mxu0 %v2580
        %2608 = vmatprep.subr.mxu0 0.0
        %2609 = vmatpush1.msra.mxu0 %v2581
        %2610 = vmatprep.subr.mxu0 0.0
        %2611 = vmatpush1.msra.mxu0 %v2582
        %2612 = vmatprep.subr.mxu0 0.0
        %2613 = vmatpush1.msra.mxu0 %v2583
        %2614 = vmatprep.subr.mxu0 0.0
        %2615 = vmatpush1.msra.mxu0 0.0
        %2616 = vmatprep.subr.mxu0 0.0
        %2617 = vmatpush1.msra.mxu0 0.0
        %2618 = vmatprep.subr.mxu0 0.0
        %2619 = vmatpush1.msra.mxu0 0.0
        %2620 = vmatprep.subr.mxu0 0.0
        %2621 = vmatpush1.msra.mxu0 0.0
        %2622 = vmatprep.subr.mxu0 0.0
        %2623 = vmatpush1.msra.mxu0 0.0
        %2624 = vmatprep.subr.mxu0 0.0
        %2625 = vmatpush1.msra.mxu0 0.0
        %2626 = vmatprep.subr.mxu0 0.0
        %2627 = vmatpush1.msra.mxu0 0.0
        %2628 = vmatprep.subr.mxu0 0.0
        %2629 = vmatpush1.msra.mxu0 0.0
        %2630 = vmatprep.subr.mxu0 0.0
        %2631 = vmatpush1.msra.mxu0 0.0
        %2632 = vmatprep.subr.mxu0 0.0
        %2633 = vmatpush1.msra.mxu0 0.0
        %2634 = vmatprep.subr.mxu0 0.0
        %2635 = vmatpush1.msra.mxu0 0.0
        %2636 = vmatprep.subr.mxu0 0.0
        %2637 = vmatpush1.msra.mxu0 0.0
        %2638 = vmatprep.subr.mxu0 0.0
        %2639 = vmatpush1.msra.mxu0 0.0
        %2640 = vmatprep.subr.mxu0 0.0
        %2641 = vmatpush1.msra.mxu0 0.0
        %2642 = vmatprep.subr.mxu0 0.0
        %2643 = vmatpush1.msra.mxu0 0.0
        %2644 = vmatprep.subr.mxu0 0.0
        %2645 = vmatpush1.msra.mxu0 0.0
        %2646 = vmatprep.subr.mxu0 0.0
        %2647 = vmatpush1.msra.mxu0 0.0
        %2648 = vmatprep.subr.mxu0 0.0
        %2649 = vmatpush1.msra.mxu0 0.0
        %2650 = vmatprep.subr.mxu0 0.0
        %2651 = vmatpush1.msra.mxu0 0.0
        %2652 = vmatprep.subr.mxu0 0.0
        %2653 = vmatpush1.msra.mxu0 0.0
        %2654 = vmatprep.subr.mxu0 0.0
        %2655 = vmatpush1.msra.mxu0 0.0
        %2656 = vmatprep.subr.mxu0 0.0
        %2657 = vmatpush1.msra.mxu0 0.0
        %2658 = vmatprep.subr.mxu0 0.0
        %2659 = vmatpush1.msra.mxu0 0.0
        %2660 = vmatprep.subr.mxu0 0.0
        %2661 = vmatpush1.msra.mxu0 0.0
        %2662 = vmatprep.mubr.f32.mxu0 0.0
        %2663 = vmatmul.mubr.f32.gmra.mrb[0].mxu0 %v2593
        %v2664 = vpop.f32.mrb[0].mxu0
        %v2665 = vadd.f32 %v2589, %v2664
        %v2666 = vpop.f32.mrb[0].mxu0
        %2667 = vmatprep.mubr.f32.mxu0 0.0
        %2668 = vmatmul.mubr.f32.gmra.mrb[0].mxu0 %v2596
        %v2669 = vpop.f32.mrb[0].mxu0
        %v2670 = vadd.f32 %v2589, %v2669
        %v2671 = vpop.f32.mrb[0].mxu0
        %2672 = vdwg.mxu0
        %v2673 = vadd.f32 %v2422, %v2665
        %v2674 = vadd.f32 %v2423, %v2670
        %2675 = vst.msk [vmem:[#allocation2] sm:$0xff] %vm820, %v2673
        %2676 = vst.msk [vmem:[#allocation2 + $0x8] sm:$0xff] %vm820, %v2674
        %p2677 = scmp.eq.s32.totalorder %s38, 1
        // Predicated region
        $region97: #{transformer_pe_real_forward.1} parent=91 // pred_check
          %p2678 = pneg %p2677
        $region98: #{transformer_pe_real_forward.1} parent=91 // pred_check_branch
          %2680 = sbr.rel (%p2678) target = $region100
        $region99: #{transformer_pe_real_forward.1} parent=91 // pred_region
          %v2681 = vld [vmem:[%s14] sm:$0x1]
          %v2682 = vld [vmem:[%s15] sm:$0x1]
          %v2683 = vsel %vm820, %v2673, 0.0
          %2684 = vadd.xlane.f32.xlu0 %v2683
          %v2685 = vpop.xlane.xlu0 %2684
          %v2686 = vsel %vm820, %v2674, 0.0
          %2687 = vadd.xlane.f32.xlu0 %v2686
          %v2688 = vpop.xlane.xlu0 %2687
          %v2689 = vmul.f32 %v2685, %v827
          %v2690 = vmul.f32 %v2688, %v827
          %v2691 = vsub.f32 %v2673, %v2689
          %v2692 = vsub.f32 %v2674, %v2690
          %v2693 = vmul.f32 %v2691, %v2691
          %v2694 = vmul.f32 %v2692, %v2692
          %v2695 = vsel %vm820, %v2693, 0.0
          %2696 = vadd.xlane.f32.xlu0 %v2695
          %v2697 = vpop.xlane.xlu0 %2696
          %v2698 = vsel %vm820, %v2694, 0.0
          %2699 = vadd.xlane.f32.xlu0 %v2698
          %v2700 = vpop.xlane.xlu0 %2699
          %v2701 = vmul.f32 %v2697, %v840
          %v2702 = vmul.f32 %v2700, %v840
          %v2703 = vrsqrt.pop %v2701
          %v2704 = vmul.f32 %v2701, %v2703
          %vm2705 = vcmp.eq.f32.partialorder %v2701, inf
          %v2706 = vsel %vm2705, %v2701, %v2704
          %vm2707 = vcmp.eq.f32.partialorder %v2701, 0.0
          %v2708 = vand.u32 %v2701, 2147483648
          %v2709 = vsel %vm2707, %v2708, %v2706
          %v2710 = vrsqrt.pop %v2702
          %v2711 = vmul.f32 %v2702, %v2710
          %vm2712 = vcmp.eq.f32.partialorder %v2702, inf
          %v2713 = vsel %vm2712, %v2702, %v2711
          %vm2714 = vcmp.eq.f32.partialorder %v2702, 0.0
          %v2715 = vand.u32 %v2702, 2147483648
          %v2716 = vsel %vm2714, %v2715, %v2713
          %v2718 = vlaneseq
          %v2719 = vshrl.u32 %v2718, 7
          %v2720 = vsub.s32 0, %v2719
          %v2721 = vrot.slane %v2681, %v2720
          %v2723 = vmul.f32 %v2721, %v2691
          %v2724 = vmul.f32 %v2721, %v2692
          %v2725 = vadd.f32 %v2709, 1e-06
          %v2726 = vadd.f32 %v2716, 1e-06
          %v2727 = vrcp.pop %v2725
          %v2728 = vmul.f32 %v2723, %v2727
          %v2729 = vrcp.pop %v2726
          %v2730 = vmul.f32 %v2724, %v2729
          %v2732 = vlaneseq
          %v2733 = vshrl.u32 %v2732, 7
          %v2734 = vsub.s32 0, %v2733
          %v2735 = vrot.slane %v2682, %v2734
          %v2737 = vadd.f32 %v2728, %v2735
          %v2738 = vadd.f32 %v2730, %v2735
          %v2739 = vsel %vm820, %v2737, 0.0
          %v2740 = vrot.slane %v2739, 4
          %v2741 = vadd.f32 %v2739, %v2740
          %v2742 = vrot.slane %v2741, 2
          %v2743 = vadd.f32 %v2741, %v2742
          %v2744 = vrot.slane %v2743, 1
          %v2745 = vadd.f32 %v2743, %v2744
          %v2746 = vsel %vm820, %v2738, 0.0
          %v2747 = vrot.slane %v2746, 4
          %v2748 = vadd.f32 %v2746, %v2747
          %v2749 = vrot.slane %v2748, 2
          %v2750 = vadd.f32 %v2748, %v2749
          %v2751 = vrot.slane %v2750, 1
          %v2752 = vadd.f32 %v2750, %v2751
          %v2753 = vrcp.pop 8.0
          %v2754 = vmul.f32 %v2745, %v2753
          %v2755 = vmul.f32 %v2752, %v2753
          %vm2758 = vcmask 1041409
          %v2759 = vsel %vm2758, %v2755, %v2754
          %vm2761 = vcmask 254976
          %2762 = vst.msk [vmem:[#allocation5] sm:$0x3] %vm2761, %v2759
          %v2763 = vld [vmem:[%s16] sm:$0xff]
          %v2764 = vld [vmem:[%s16 + $0x8] sm:$0xff]
          %v2765 = vld [vmem:[%s16 + $0x10] sm:$0xff]
          %v2766 = vld [vmem:[%s16 + $0x18] sm:$0xff]
          %v2767 = vld [vmem:[%s17] sm:$0x1]
          %v2769 = vlaneseq
          %v2770 = vshrl.u32 %v2769, 7
          %v2771 = vsub.s32 0, %v2770
          %v2772 = vrot.slane %v2767, %v2771
          %v2774 = vsel %vm820, %v2759, 0
          %2776 = vmatprep.subr.mxu0 0.0
          %2777 = vmatpush1.msra.mxu0 %v2763
          %2778 = vmatprep.subr.mxu0 0.0
          %2779 = vmatpush1.msra.mxu0 %v2764
          %2780 = vmatprep.subr.mxu0 0.0
          %2781 = vmatpush1.msra.mxu0 %v2765
          %2782 = vmatprep.subr.mxu0 0.0
          %2783 = vmatpush1.msra.mxu0 %v2766
          %2784 = vmatprep.subr.mxu0 0.0
          %2785 = vmatpush1.msra.mxu0 0.0
          %2786 = vmatprep.subr.mxu0 0.0
          %2787 = vmatpush1.msra.mxu0 0.0
          %2788 = vmatprep.subr.mxu0 0.0
          %2789 = vmatpush1.msra.mxu0 0.0
          %2790 = vmatprep.subr.mxu0 0.0
          %2791 = vmatpush1.msra.mxu0 0.0
          %2792 = vmatprep.subr.mxu0 0.0
          %2793 = vmatpush1.msra.mxu0 0.0
          %2794 = vmatprep.subr.mxu0 0.0
          %2795 = vmatpush1.msra.mxu0 0.0
          %2796 = vmatprep.subr.mxu0 0.0
          %2797 = vmatpush1.msra.mxu0 0.0
          %2798 = vmatprep.subr.mxu0 0.0
          %2799 = vmatpush1.msra.mxu0 0.0
          %2800 = vmatprep.subr.mxu0 0.0
          %2801 = vmatpush1.msra.mxu0 0.0
          %2802 = vmatprep.subr.mxu0 0.0
          %2803 = vmatpush1.msra.mxu0 0.0
          %2804 = vmatprep.subr.mxu0 0.0
          %2805 = vmatpush1.msra.mxu0 0.0
          %2806 = vmatprep.subr.mxu0 0.0
          %2807 = vmatpush1.msra.mxu0 0.0
          %2808 = vmatprep.subr.mxu0 0.0
          %2809 = vmatpush1.msra.mxu0 0.0
          %2810 = vmatprep.subr.mxu0 0.0
          %2811 = vmatpush1.msra.mxu0 0.0
          %2812 = vmatprep.subr.mxu0 0.0
          %2813 = vmatpush1.msra.mxu0 0.0
          %2814 = vmatprep.subr.mxu0 0.0
          %2815 = vmatpush1.msra.mxu0 0.0
          %2816 = vmatprep.subr.mxu0 0.0
          %2817 = vmatpush1.msra.mxu0 0.0
          %2818 = vmatprep.subr.mxu0 0.0
          %2819 = vmatpush1.msra.mxu0 0.0
          %2820 = vmatprep.subr.mxu0 0.0
          %2821 = vmatpush1.msra.mxu0 0.0
          %2822 = vmatprep.subr.mxu0 0.0
          %2823 = vmatpush1.msra.mxu0 0.0
          %2824 = vmatprep.subr.mxu0 0.0
          %2825 = vmatpush1.msra.mxu0 0.0
          %2826 = vmatprep.subr.mxu0 0.0
          %2827 = vmatpush1.msra.mxu0 0.0
          %2828 = vmatprep.subr.mxu0 0.0
          %2829 = vmatpush1.msra.mxu0 0.0
          %2830 = vmatprep.subr.mxu0 0.0
          %2831 = vmatpush1.msra.mxu0 0.0
          %2832 = vmatprep.subr.mxu0 0.0
          %2833 = vmatpush1.msra.mxu0 0.0
          %2834 = vmatprep.subr.mxu0 0.0
          %2835 = vmatpush1.msra.mxu0 0.0
          %2836 = vmatprep.subr.mxu0 0.0
          %2837 = vmatpush1.msra.mxu0 0.0
          %2838 = vmatprep.subr.mxu0 0.0
          %2839 = vmatpush1.msra.mxu0 0.0
          %2840 = vmatprep.mubr.f32.mxu0 0.0
          %2841 = vmatmul.mubr.f32.gmra.mrb[0].mxu0 %v2774
          %v2842 = vpop.f32.mrb[0].mxu0
          %v2843 = vadd.f32 %v2772, %v2842
          %v2844 = vpop.f32.mrb[0].mxu0
          %2845 = vdwg.mxu0
          %vm2846 = vcmask 25600
          %2847 = vst.msk [vmem:[#allocation3] sm:$0x3] %vm2846, %v2843
        $region100: #{transformer_pe_real_forward.1} parent=91 // pred_fallthru
          _
        // Predicated region
        $region101: #{transformer_pe_real_forward.1} parent=91 // pred_check
          %p2848 = pneg %p506
        $region102: #{transformer_pe_real_forward.1} parent=91 // pred_check_branch
          %2850 = sbr.rel (%p2848) target = $region104
        $region103: #{transformer_pe_real_forward.1} parent=91 // pred_region
          %s2852 = ssub.s32 32, 32
          %2853 = vsyncadd [#allocation4], %s2852
          %s2854 = smul.addr %s37, 32
          %s2855 = scalar_lea.hbm %s18, %s2854
          %s2857 = sshll.u32 [#allocation3], 4
          %s2858 = int_to_ptr.vmem [resolvable:$true] %s2857
          %2860 = dma.vmem_to_hbm [thread:$0]  %s2858, 32, %s2855, [#allocation4]
        $region104: #{transformer_pe_real_forward.1} parent=91 // pred_fallthru
          _
        // Predicated region
        $region105: #{transformer_pe_real_forward.1} parent=91 // pred_check
          %p2861 = pneg %p532
        $region106: #{transformer_pe_real_forward.1} parent=91 // pred_check_branch
          %2863 = sbr.rel (%p2861) target = $region108
        $region107: #{transformer_pe_real_forward.1} parent=91 // pred_region
          %s2865 = ssub.s32 32, 32
          %2866 = vsyncadd [#allocation6], %s2865
          %s2867 = smul.addr %s37, 32
          %s2868 = scalar_lea.hbm %s19, %s2867
          %s2870 = sshll.u32 [#allocation5], 4
          %s2871 = int_to_ptr.vmem [resolvable:$true] %s2870
          %2873 = dma.vmem_to_hbm [thread:$0]  %s2871, 32, %s2868, [#allocation6]
        $region108: #{transformer_pe_real_forward.1} parent=91 // pred_fallthru
          _
        // Predicated region
        $region109: #{transformer_pe_real_forward.1} parent=91 // pred_check
          %p2874 = pneg %p506
        $region110: #{transformer_pe_real_forward.1} parent=91 // pred_check_branch
          %2876 = sbr.rel (%p2874) target = $region112
        $region111: #{transformer_pe_real_forward.1} parent=91 // pred_region
          %2877 = dma.done [#allocation4], 32
        $region112: #{transformer_pe_real_forward.1} parent=91 // pred_fallthru
          _
        // Predicated region
        $region113: #{transformer_pe_real_forward.1} parent=91 // pred_check
          %p2878 = pneg %p532
        $region114: #{transformer_pe_real_forward.1} parent=91 // pred_check_branch
          %2880 = sbr.rel (%p2878) target = $region116
        $region115: #{transformer_pe_real_forward.1} parent=91 // pred_region
          %2881 = dma.done [#allocation6], 32
        $region116: #{transformer_pe_real_forward.1} parent=91 // pred_fallthru
          _
      $region92: #{transformer_pe_real_forward.1} parent=5 // pred_fallthru
        _
      %p2882 = scmp.le.s32.totalorder 2, %s28
      // Predicated region
      $region117: #{transformer_pe_real_forward.1} parent=5 // pred_check
        %p2883 = pneg %p2882
      $region118: #{transformer_pe_real_forward.1} parent=5 // pred_check_branch
        %2885 = sbr.rel (%p2883) target = $region120
      $region119: #{transformer_pe_real_forward.1} parent=5 // pred_region
        %s2886 = ssub.s32 %s28, 2
      $region120: #{transformer_pe_real_forward.1} parent=5 // pred_fallthru
        _
    $region6: #{transformer_pe_real_forward.1} parent=1 // loop_footer
      %s32 = sadd.s32 1, %s28
    $region7: #{transformer_pe_real_forward.1} parent=1 // loop_footer_branch
      %27 = sbr.rel target = $region3
    $region8: #{transformer_pe_real_forward.1} parent=1 // loop_exit
      _
    %2887 = vsyncpa [#allocation4], 1
    %s2888 = scalar_lea.sflag [#allocation4], 1
    %2889 = vsyncpa %s2888, 1
    %2890 = vsyncpa [#allocation6], 1

</llo_original>
